<compile_context>
chip_gen: v5e
topology: v5e:2x2
jax: 0.10.0
libtpu: 0.0.40
codegen_flags: <defaults>
</compile_context>

<pallas_src>
import functools

import jax
import jax.numpy as jnp
from jax import lax
from jax.experimental import pallas as pl
from jax.experimental.pallas import tpu as pltpu

G_CH_1X = 48           # in_channel
G_CH_2X = 64
LRELU_SLOPE = 0.1
GROUP_NUM = 16
OFFSET_NUM = 2
MAX_RESIDUE_MAGNITUDE = 40.0
AUX_FEATURE_NUM = G_CH_1X + 3 + 2   # 53
AUX_PAD = 64                        # aux channels zero-padded to a lane-friendly 64


def _round_up(v, m):
    return -(-v // m) * m


# ----------------------------------------------------------------------------
# Pallas kernel 1: fused conv_offset chain + bilinear x2 upsample + tail
#   grid = (B,)   (one batch item per step; intermediates stay in VMEM)
#   aux_ref : space-to-depth aux feature, (H/2+1, W/2+1, 4*AUX_PAD)  bf16
#   outputs : offset (H, W, 64) f32  and  mask (H, W, 32) bf16  (full res)
# TODO(synk): row-band tiling (manual halo DMA, double-buffered) so the per-
#             batch spatial block / scratch buffers stay bounded at large frames.
# ----------------------------------------------------------------------------
def _offset_pipeline_kernel(aux_ref, flow_ref, w1_ref, b1_ref, w2_ref, b2_ref,
                            w3_ref, b3_ref, u_ref, off_ref, mask_ref,
                            c1_buf, c2_buf, c3_buf, *, h2, w2, max_mag):
    f32 = jnp.float32
    c_mid = w1_ref.shape[-1]          # 64
    c_out3 = w3_ref.shape[-1]         # 96 = 3 * group_num * offset_num
    n_off = 2 * (c_out3 // 3)         # 64
    n_mask = c_out3 // 3              # 32

    # Zero halo rows of the row buffers (halo columns are added per row below).
    zrow = jnp.zeros((w2 + 2, c_mid), f32)
    zcol = jnp.zeros((1, c_mid), f32)
    c1_buf[0] = zrow
    c1_buf[h2 + 1] = zrow
    c2_buf[0] = zrow
    c2_buf[h2 + 1] = zrow

    # ---- conv1: 3x3 / stride 2 / pad 1 via the space-to-depth phase trick ----
    # aux[2r+py, 2c+px, :] == aux_ref[r+1, c+1, AUX_PAD*(2*py+px):...]
    # tap (dy, dx): full-res row 2r-1+dy -> phase py=(dy+1)%2, half-row shift
    # dr = -1 if dy == 0 else 0 (same for columns).
    def c1_body(r, carry):
        acc = jnp.zeros((w2, c_mid), f32) + b1_ref[...]
        for dy in range(3):
            py = (dy + 1) % 2
            dr = 0 if dy else -1
            row = aux_ref[r + dr + 1].astype(f32)           # (w2+1, 4*AUX_PAD)
            for dx in range(3):
                px = (dx + 1) % 2
                dc = 0 if dx else -1
                p = 2 * py + px
                patch = row[dc + 1:dc + 1 + w2, AUX_PAD * p:AUX_PAD * (p + 1)]
                acc = acc + jnp.dot(patch, w1_ref[3 * dy + dx],
                                    preferred_element_type=f32)
        acc = jnp.where(acc >= 0.0, acc, LRELU_SLOPE * acc)
        c1_buf[r + 1] = jnp.concatenate([zcol, acc, zcol], axis=0)
        return carry

    lax.fori_loop(0, h2, c1_body, 0)

    # ---- conv2: 3x3 / stride 1 / pad 1 + LeakyReLU, VMEM -> VMEM ------------
    def c2_body(r, carry):
        acc = jnp.zeros((w2, c_mid), f32) + b2_ref[...]
        for dy in range(3):
            row = c1_buf[r + dy]                            # (w2+2, 64)
            for dx in range(3):
                acc = acc + jnp.dot(row[dx:dx + w2, :], w2_ref[3 * dy + dx],
                                    preferred_element_type=f32)
        acc = jnp.where(acc >= 0.0, acc, LRELU_SLOPE * acc)
        c2_buf[r + 1] = jnp.concatenate([zcol, acc, zcol], axis=0)
        return carry

    lax.fori_loop(0, h2, c2_body, 0)

    # ---- conv3: 3x3 / stride 1 / pad 1 (no activation), VMEM -> VMEM --------
    def c3_body(r, carry):
        acc = jnp.zeros((w2, c_out3), f32) + b3_ref[...]
        for dy in range(3):
            row = c2_buf[r + dy]
            for dx in range(3):
                acc = acc + jnp.dot(row[dx:dx + w2, :], w3_ref[3 * dy + dx],
                                    preferred_element_type=f32)
        c3_buf[r] = acc
        return carry

    lax.fori_loop(0, h2, c3_body, 0)

    # ---- bilinear x2 upsample (align_corners=False) + offset/mask tail ------
    # H direction: in-register row mixing; W direction: constant matmul with the
    # interpolation matrix u_ref.  Two full-resolution rows are emitted per step.
    u = u_ref[...]                                          # (W, w2) f32

    def tail_body(r, carry):
        c30 = c3_buf[r]
        c3m = c3_buf[jnp.maximum(r - 1, 0)]
        c3p = c3_buf[jnp.minimum(r + 1, h2 - 1)]
        half_rows = (0.75 * c30 + 0.25 * c3m,               # full-res row 2r
                     0.75 * c30 + 0.25 * c3p)               # full-res row 2r+1
        for par in range(2):
            rr = 2 * r + par
            up_row = jnp.dot(u, half_rows[par], preferred_element_type=f32)
            fl = flow_ref[rr]                               # (W, 2)
            lane = lax.broadcasted_iota(jnp.int32, (up_row.shape[0], n_off), 1)
            # flow.repeat(1, gn*on, 1, 1): even lanes <- flow_x, odd <- flow_y
            flow_rep = jnp.where(lane % 2 == 0, fl[:, 0:1], fl[:, 1:2])
            off = max_mag * jnp.tanh(up_row[:, :n_off]) + flow_rep
            msk = pl.reciprocal(1.0 + jnp.exp(-up_row[:, n_off:n_off + n_mask]),
                                approx=True)
            off_ref[rr] = off.astype(off_ref.dtype)
            mask_ref[rr] = msk.astype(mask_ref.dtype)
        return carry

    lax.fori_loop(0, h2, tail_body, 0)


def conv_offset_upsample(aux_nchw, flow_nchw, params, *, max_mag):
    """conv_offset chain + x2 bilinear upsample + tanh/flow/sigmoid tail."""
    b, caux, h, w = aux_nchw.shape
    assert h % 2 == 0 and w % 2 == 0
    h2, w2 = h // 2, w // 2

    # NHWC, pad aux channels 53 -> 64, space-to-depth to half resolution,
    # one zero halo row/col at top/left (all the stride-2 taps ever need).
    aux = jnp.transpose(aux_nchw, (0, 2, 3, 1))
    aux = jnp.pad(aux, ((0, 0), (0, 0), (0, 0), (0, AUX_PAD - caux)))
    s2d = aux.reshape(b, h2, 2, w2, 2, AUX_PAD).transpose(0, 1, 3, 2, 4, 5)
    s2d = s2d.reshape(b, h2, w2, 4 * AUX_PAD)
    s2d = jnp.pad(s2d, ((0, 0), (1, 0), (1, 0), (0, 0))).astype(jnp.bfloat16)

    flow_nhwc = jnp.transpose(flow_nchw, (0, 2, 3, 1)).astype(jnp.float32)

    # weights: HWIO -> (9, cin, cout), tap index = 3*dy + dx
    w1 = jnp.pad(params["c1"]["w"], ((0, 0), (0, 0), (0, AUX_PAD - caux), (0, 0)))
    w1 = w1.reshape(9, AUX_PAD, -1).astype(jnp.float32)
    b1 = params["c1"]["b"].reshape(1, -1).astype(jnp.float32)
    w2_ = params["c2"]["w"].reshape(9, G_CH_2X, -1).astype(jnp.float32)
    b2 = params["c2"]["b"].reshape(1, -1).astype(jnp.float32)
    w3_ = params["c3"]["w"].reshape(9, G_CH_2X, -1).astype(jnp.float32)
    b3 = params["c3"]["b"].reshape(1, -1).astype(jnp.float32)
    c3out = w3_.shape[-1]
    n_off = 2 * (c3out // 3)
    n_mask = c3out // 3

    # Width-direction bilinear (align_corners=False) as a constant matmul.
    iw = jnp.arange(w2)
    u = jnp.zeros((w, w2), jnp.float32)
    u = u.at[2 * iw, iw].add(0.75)
    u = u.at[2 * iw, jnp.maximum(iw - 1, 0)].add(0.25)
    u = u.at[2 * iw + 1, iw].add(0.75)
    u = u.at[2 * iw + 1, jnp.minimum(iw + 1, w2 - 1)].add(0.25)

    kernel = functools.partial(_offset_pipeline_kernel,
                               h2=h2, w2=w2, max_mag=float(max_mag))
    off, mask = pl.pallas_call(
        kernel,
        out_shape=(jax.ShapeDtypeStruct((b, h, w, n_off), jnp.float32),
                   jax.ShapeDtypeStruct((b, h, w, n_mask), jnp.bfloat16)),
        grid=(b,),
        in_specs=[
            pl.BlockSpec((None, h2 + 1, w2 + 1, 4 * AUX_PAD), lambda i: (i, 0, 0, 0)),
            pl.BlockSpec((None, h, w, 2), lambda i: (i, 0, 0, 0)),
            pl.BlockSpec((9, AUX_PAD, G_CH_2X), lambda i: (0, 0, 0)),
            pl.BlockSpec((1, G_CH_2X), lambda i: (0, 0)),
            pl.BlockSpec((9, G_CH_2X, G_CH_2X), lambda i: (0, 0, 0)),
            pl.BlockSpec((1, G_CH_2X), lambda i: (0, 0)),
            pl.BlockSpec((9, G_CH_2X, c3out), lambda i: (0, 0, 0)),
            pl.BlockSpec((1, c3out), lambda i: (0, 0)),
            pl.BlockSpec((w, w2), lambda i: (0, 0)),
        ],
        out_specs=(pl.BlockSpec((None, h, w, n_off), lambda i: (i, 0, 0, 0)),
                   pl.BlockSpec((None, h, w, n_mask), lambda i: (i, 0, 0, 0))),
        scratch_shapes=[pltpu.VMEM((h2 + 2, w2 + 2, G_CH_2X), jnp.float32),
                        pltpu.VMEM((h2 + 2, w2 + 2, G_CH_2X), jnp.float32),
                        pltpu.VMEM((h2, w2, c3out), jnp.float32)],
        compiler_params=pltpu.CompilerParams(dimension_semantics=("parallel",)),
    )(s2d, flow_nhwc, w1, b1, w2_, b2, w3_, b3, u)
    return off, mask


# ----------------------------------------------------------------------------
# Pallas kernel 2: fused (sigmoid-mask gate + grouped 1x1 fusion conv)
#   y    : (M, 96)  bf16   warped features, channel 3q+ch
#   mask : (M, 32)  bf16   gate of pair q (expanded in-kernel via a 0/1 matmul)
# ----------------------------------------------------------------------------
def _fusion_kernel(y_ref, m_ref, e_ref, w_ref, b_ref, o_ref):
    m96 = jnp.dot(m_ref[...], e_ref[...], preferred_element_type=jnp.float32)
    ym = (y_ref[...].astype(jnp.float32) * m96).astype(jnp.bfloat16)
    acc = jnp.dot(ym, w_ref[...], preferred_element_type=jnp.float32) + b_ref[...]
    o_ref[...] = acc.astype(o_ref.dtype)


def fused_group_conv(y96, mask32, w_full, bias, *, tm=2048):
    m, k = y96.shape
    n = w_full.shape[-1]
    ng = mask32.shape[-1]
    tm = min(tm, _round_up(m, 8))

    # mask-expansion matrix: group q -> lanes (k//ng)*q .. (k//ng)*q + k//ng - 1
    q = jnp.arange(ng)
    e = jnp.zeros((ng, k), jnp.float32)
    for j in range(k // ng):
        e = e.at[q, (k // ng) * q + j].set(1.0)

    return pl.pallas_call(
        _fusion_kernel,
        out_shape=jax.ShapeDtypeStruct((m, n), jnp.float32),
        grid=(pl.cdiv(m, tm),),
        in_specs=[
            pl.BlockSpec((tm, k), lambda i: (i, 0)),
            pl.BlockSpec((tm, ng), lambda i: (i, 0)),
            pl.BlockSpec((ng, k), lambda i: (0, 0)),
            pl.BlockSpec((k, n), lambda i: (0, 0)),
            pl.BlockSpec((1, n), lambda i: (0, 0)),
        ],
        out_specs=pl.BlockSpec((tm, n), lambda i: (i, 0)),
        compiler_params=pltpu.CompilerParams(dimension_semantics=("parallel",)),
    )(y96.astype(jnp.bfloat16), mask32.astype(jnp.bfloat16),
      e.astype(jnp.bfloat16), w_full.astype(jnp.bfloat16),
      bias.reshape(1, n).astype(jnp.float32))


# ----------------------------------------------------------------------------
# flow_warp (grid_sample semantics) — plain JAX gathers
# TODO(synk): per-pixel data-dependent bilinear gather has no clean Pallas TPU
#             lowering here; kept as XLA gathers (next candidate for a kernel).
# ----------------------------------------------------------------------------
def _bilinear_warp_single(src, off2):
    """src: (C, H, W); off2: (H, W, 2) pixel offsets (x, y). Border clamp."""
    c, h, w = src.shape
    xs = jnp.arange(w, dtype=off2.dtype)
    ys = jnp.arange(h, dtype=off2.dtype)
    sx = jnp.clip(xs[None, :] + off2[..., 0], 0.0, w - 1.0)
    sy = jnp.clip(ys[:, None] + off2[..., 1], 0.0, h - 1.0)
    x0 = jnp.floor(sx)
    y0 = jnp.floor(sy)
    x0i = x0.astype(jnp.int32)
    y0i = y0.astype(jnp.int32)
    x1i = jnp.minimum(x0i + 1, w - 1)
    y1i = jnp.minimum(y0i + 1, h - 1)
    wx = (sx - x0)[..., None]
    wy = (sy - y0)[..., None]
    sf = src.reshape(c, h * w)

    def g(yy, xx):
        return sf[:, (yy * w + xx).reshape(-1)].T.reshape(h, w, c)

    v00 = g(y0i, x0i)
    v01 = g(y0i, x1i)
    v10 = g(y1i, x0i)
    v11 = g(y1i, x1i)
    top = v00 * (1.0 - wx) + v01 * wx
    bot = v10 * (1.0 - wx) + v11 * wx
    return top * (1.0 - wy) + bot * wy


def _grouped_1x1_matrix(w_groups):
    """(gn, in_per_g, out_per_g) -> block-diagonal (gn*in_per_g, gn*out_per_g)."""
    gn, ipg, opg = w_groups.shape
    w_full = jnp.zeros((gn * ipg, gn * opg), w_groups.dtype)
    for g in range(gn):
        w_full = w_full.at[g * ipg:(g + 1) * ipg, g * opg:(g + 1) * opg].set(w_groups[g])
    return w_full


# ----------------------------------------------------------------------------
# OffsetDiversity forward (NCHW in / NCHW out, same semantics as the nn.Module)
# TODO(synk): NCHW<->NHWC boundary transposes are left to XLA.
# ----------------------------------------------------------------------------
def offset_diversity_forward(x, aux_feature, flow, params, *,
                             group_num=GROUP_NUM, offset_num=OFFSET_NUM,
                             max_residue_magnitude=MAX_RESIDUE_MAGNITUDE):
    b, c, h, w = x.shape
    gno = group_num * offset_num          # 32
    cg = c // group_num                   # 3

    # ---- Pallas kernel 1: conv_offset + upsample + tanh/flow/sigmoid tail ----
    off, mask = conv_offset_upsample(aux_feature, flow, params,
                                     max_mag=max_residue_magnitude)
    # off : (B, H, W, 2*gno) f32  — channel 2q = x-offset, 2q+1 = y-offset
    # mask: (B, H, W, gno)   bf16 — sigmoid gate of pair q

    # ---- flow_warp with the exact torch .repeat()/.view() pairing -----------
    x_groups = x.reshape(b * group_num, cg, h, w)
    k_idx = jnp.arange(b * gno) % (b * group_num)    # == torch .repeat(on,1,1,1)
    src = x_groups[k_idx].reshape(b, gno, cg, h, w)
    off_pairs = off.reshape(b, h, w, gno, 2)
    warp = jax.vmap(jax.vmap(_bilinear_warp_single, in_axes=(0, 2), out_axes=2),
                    in_axes=(0, 0), out_axes=0)
    warped = warp(src, off_pairs)                    # (B, H, W, gno, cg)
    y96 = warped.reshape(b, h, w, gno * cg)          # channel 3q+ch (== view(B, C*on, H, W))

    # ---- Pallas kernel 2: fused mask gate + grouped 1x1 fusion conv ---------
    out2d = fused_group_conv(y96.reshape(b * h * w, gno * cg),
                             mask.reshape(b * h * w, gno),
                             params["fusion"]["w_full"], params["fusion"]["b"])
    out = out2d.reshape(b, h, w, c)
    return jnp.transpose(out, (0, 3, 1, 2))


# ----------------------------------------------------------------------------
# Deterministic synthetic parameter init (shapes dictated by the module)
# ----------------------------------------------------------------------------
def _conv_params(key, cin, cout):
    kw, kb = jax.random.split(key)
    scale = 1.0 / jnp.sqrt(9.0 * cin)
    wgt = scale * jax.random.normal(kw, (3, 3, cin, cout), jnp.float32)   # HWIO
    bias = 0.01 * jax.random.normal(kb, (cout,), jnp.float32)
    return {"w": wgt, "b": bias}


def init_params(key):
    k1, k2, k3, k4, k5 = jax.random.split(key, 5)
    gn, on, c = GROUP_NUM, OFFSET_NUM, G_CH_1X
    ipg = (c * on) // gn                   # 6 input channels per group
    opg = c // gn                          # 3 output channels per group
    w_groups = (1.0 / jnp.sqrt(float(ipg))) * jax.random.normal(
        k4, (gn, ipg, opg), jnp.float32)
    b_fusion = 0.01 * jax.random.normal(k5, (gn * opg,), jnp.float32)
    return {
        "c1": _conv_params(k1, AUX_FEATURE_NUM, G_CH_2X),     # 53 -> 64, stride 2
        "c2": _conv_params(k2, G_CH_2X, G_CH_2X),             # 64 -> 64
        "c3": _conv_params(k3, G_CH_2X, 3 * gn * on),         # 64 -> 96
        "fusion": {"w_full": _grouped_1x1_matrix(w_groups),   # (96, 48) block-diag
                   "b": b_fusion},
    }


if __name__ == "__main__":
    key = jax.random.PRNGKey(0)
    kp, kx, ka, kf = jax.random.split(key, 4)

    B, H, W = 2, 16, 16
    x = jax.random.normal(kx, (B, G_CH_1X, H, W), jnp.float32)
    aux_feature = jax.random.normal(ka, (B, AUX_FEATURE_NUM, H, W), jnp.float32)
    flow = 2.0 * jax.random.normal(kf, (B, 2, H, W), jnp.float32)

    params = init_params(kp)

    fn = jax.jit(offset_diversity_forward)
    out = fn(x, aux_feature, flow, params)
    jax.block_until_ready(out)

    assert out.shape == (B, G_CH_1X, H, W)
    assert bool(jnp.all(jnp.isfinite(out)))
    print("KERNEL_OK")
</pallas_src>

<mosaic_0001>
module attributes {stable_mosaic.version = 11 : i64} {
  func.func @_offset_pipeline_kernel(%arg0: i32, %arg1: memref<1x9x9x256xbf16, #tpu.memory_space<vmem>>, %arg2: memref<1x16x16x2xf32, #tpu.memory_space<vmem>>, %arg3: memref<9x64x64xf32, #tpu.memory_space<vmem>>, %arg4: memref<1x64xf32, #tpu.memory_space<vmem>>, %arg5: memref<9x64x64xf32, #tpu.memory_space<vmem>>, %arg6: memref<1x64xf32, #tpu.memory_space<vmem>>, %arg7: memref<9x64x96xf32, #tpu.memory_space<vmem>>, %arg8: memref<1x96xf32, #tpu.memory_space<vmem>>, %arg9: memref<16x8xf32, #tpu.memory_space<vmem>>, %arg10: memref<1x16x16x64xf32, #tpu.memory_space<vmem>>, %arg11: memref<1x16x16x32xbf16, #tpu.memory_space<vmem>>, %arg12: memref<10x10x64xf32, #tpu.memory_space<vmem>>, %arg13: memref<10x10x64xf32, #tpu.memory_space<vmem>>, %arg14: memref<8x8x96xf32, #tpu.memory_space<vmem>>) attributes {dimension_semantics = [#tpu.dimension_semantics<parallel>], iteration_bounds = array<i64: 2>, scalar_prefetch = 0 : i64, scratch_operands = 3 : i64, tpu.core_type = #tpu.core_type<tc>, window_params = [{transform_indices = @transform_0, window_bounds = array<i64: 1, 9, 9, 256>}, {transform_indices = @transform_1, window_bounds = array<i64: 1, 16, 16, 2>}, {pipeline_mode = #tpu.pipeline_mode<synchronous>, transform_indices = @transform_2, window_bounds = array<i64: 9, 64, 64>}, {pipeline_mode = #tpu.pipeline_mode<synchronous>, transform_indices = @transform_3, window_bounds = array<i64: 1, 64>}, {pipeline_mode = #tpu.pipeline_mode<synchronous>, transform_indices = @transform_4, window_bounds = array<i64: 9, 64, 64>}, {pipeline_mode = #tpu.pipeline_mode<synchronous>, transform_indices = @transform_5, window_bounds = array<i64: 1, 64>}, {pipeline_mode = #tpu.pipeline_mode<synchronous>, transform_indices = @transform_6, window_bounds = array<i64: 9, 64, 96>}, {pipeline_mode = #tpu.pipeline_mode<synchronous>, transform_indices = @transform_7, window_bounds = array<i64: 1, 96>}, {pipeline_mode = #tpu.pipeline_mode<synchronous>, transform_indices = @transform_8, window_bounds = array<i64: 16, 8>}, {transform_indices = @transform_9, window_bounds = array<i64: 1, 16, 16, 64>}, {transform_indices = @transform_10, window_bounds = array<i64: 1, 16, 16, 32>}]} {
    %cst = arith.constant 0.000000e+00 : f32
    %0 = vector.broadcast %cst : f32 to vector<10x64xf32>
    %cst_0 = arith.constant 0.000000e+00 : f32
    %1 = vector.broadcast %cst_0 : f32 to vector<1x64xf32>
    %c0 = arith.constant 0 : index
    %c0_1 = arith.constant 0 : index
    %c0_2 = arith.constant 0 : index
    %2 = vector.load %arg12[%c0, %c0_1, %c0_2] : memref<10x10x64xf32, #tpu.memory_space<vmem>>, vector<1x10x64xf32>
    %3 = vector.shape_cast %2 : vector<1x10x64xf32> to vector<10x64xf32>
    %4 = vector.shape_cast %0 : vector<10x64xf32> to vector<1x10x64xf32>
    tpu.vector_store %arg12[%c0, %c0_1, %c0_2], %4 {strides = array<i32>} : memref<10x10x64xf32, #tpu.memory_space<vmem>>, vector<1x10x64xf32>,
    %c9 = arith.constant 9 : index
    %c0_3 = arith.constant 0 : index
    %c0_4 = arith.constant 0 : index
    %5 = vector.load %arg12[%c9, %c0_3, %c0_4] : memref<10x10x64xf32, #tpu.memory_space<vmem>>, vector<1x10x64xf32>
    %6 = vector.shape_cast %5 : vector<1x10x64xf32> to vector<10x64xf32>
    %7 = vector.shape_cast %0 : vector<10x64xf32> to vector<1x10x64xf32>
    tpu.vector_store %arg12[%c9, %c0_3, %c0_4], %7 {strides = array<i32>} : memref<10x10x64xf32, #tpu.memory_space<vmem>>, vector<1x10x64xf32>,
    %c0_5 = arith.constant 0 : index
    %c0_6 = arith.constant 0 : index
    %c0_7 = arith.constant 0 : index
    %8 = vector.load %arg13[%c0_5, %c0_6, %c0_7] : memref<10x10x64xf32, #tpu.memory_space<vmem>>, vector<1x10x64xf32>
    %9 = vector.shape_cast %8 : vector<1x10x64xf32> to vector<10x64xf32>
    %10 = vector.shape_cast %0 : vector<10x64xf32> to vector<1x10x64xf32>
    tpu.vector_store %arg13[%c0_5, %c0_6, %c0_7], %10 {strides = array<i32>} : memref<10x10x64xf32, #tpu.memory_space<vmem>>, vector<1x10x64xf32>,
    %c9_8 = arith.constant 9 : index
    %c0_9 = arith.constant 0 : index
    %c0_10 = arith.constant 0 : index
    %11 = vector.load %arg13[%c9_8, %c0_9, %c0_10] : memref<10x10x64xf32, #tpu.memory_space<vmem>>, vector<1x10x64xf32>
    %12 = vector.shape_cast %11 : vector<1x10x64xf32> to vector<10x64xf32>
    %13 = vector.shape_cast %0 : vector<10x64xf32> to vector<1x10x64xf32>
    tpu.vector_store %arg13[%c9_8, %c0_9, %c0_10], %13 {strides = array<i32>} : memref<10x10x64xf32, #tpu.memory_space<vmem>>, vector<1x10x64xf32>,
    %c0_i32 = arith.constant 0 : i32
    %c8_i32 = arith.constant 8 : i32
    %14 = arith.addi %c0_i32, %c8_i32 : i32
    %c1_i32 = arith.constant 1 : i32
    scf.for %arg15 = %c0_i32 to %14 step %c1_i32  : i32 {
      %cst_26 = arith.constant 0.000000e+00 : f32
      %19 = vector.broadcast %cst_26 : f32 to vector<8x64xf32>
      %c0_27 = arith.constant 0 : index
      %c0_28 = arith.constant 0 : index
      %20 = vector.load %arg4[%c0_27, %c0_28] : memref<1x64xf32, #tpu.memory_space<vmem>>, vector<1x64xf32>
      %21 = vector.broadcast %20 : vector<1x64xf32> to vector<8x64xf32>
      %22 = arith.addf %19, %21 : vector<8x64xf32>
      %c-1_i32 = arith.constant -1 : i32
      %23 = arith.addi %arg15, %c-1_i32 : i32
      %c1_i32_29 = arith.constant 1 : i32
      %24 = arith.addi %23, %c1_i32_29 : i32
      %c0_30 = arith.constant 0 : index
      %25 = arith.index_cast %24 : i32 to index
      %c0_31 = arith.constant 0 : index
      %c0_32 = arith.constant 0 : index
      %26 = vector.load %arg1[%c0_30, %25, %c0_31, %c0_32] : memref<1x9x9x256xbf16, #tpu.memory_space<vmem>>, vector<1x1x9x256xbf16>
      %27 = vector.shape_cast %26 : vector<1x1x9x256xbf16> to vector<9x256xbf16>
      %28 = arith.extf %27 : vector<9x256xbf16> to vector<9x256xf32>
      %29 = vector.extract_strided_slice %28 {offsets = [0, 192], sizes = [8, 64], strides = [1, 1]} : vector<9x256xf32> to vector<8x64xf32>
      %c0_33 = arith.constant 0 : index
      %c0_34 = arith.constant 0 : index
      %c0_35 = arith.constant 0 : index
      %30 = vector.load %arg3[%c0_33, %c0_34, %c0_35] : memref<9x64x64xf32, #tpu.memory_space<vmem>>, vector<1x64x64xf32>
      %31 = vector.shape_cast %30 : vector<1x64x64xf32> to vector<64x64xf32>
      %cst_36 = arith.constant dense<0.000000e+00> : vector<8x64xf32>
      %32 = tpu.matmul %29, %31, %cst_36 {dimension_numbers = #tpu.dot_dimension_numbers<[1], [0], [0], [1], [0, 0, 1, 1], [], []>} : vector<8x64xf32>, vector<64x64xf32>, vector<8x64xf32> -> vector<8x64xf32>
      %33 = arith.addf %22, %32 : vector<8x64xf32>
      %34 = vector.extract_strided_slice %28 {offsets = [1, 128], sizes = [8, 64], strides = [1, 1]} : vector<9x256xf32> to vector<8x64xf32>
      %c1 = arith.constant 1 : index
      %c0_37 = arith.constant 0 : index
      %c0_38 = arith.constant 0 : index
      %35 = vector.load %arg3[%c1, %c0_37, %c0_38] : memref<9x64x64xf32, #tpu.memory_space<vmem>>, vector<1x64x64xf32>
      %36 = vector.shape_cast %35 : vector<1x64x64xf32> to vector<64x64xf32>
      %cst_39 = arith.constant dense<0.000000e+00> : vector<8x64xf32>
      %37 = tpu.matmul %34, %36, %cst_39 {dimension_numbers = #tpu.dot_dimension_numbers<[1], [0], [0], [1], [0, 0, 1, 1], [], []>} : vector<8x64xf32>, vector<64x64xf32>, vector<8x64xf32> -> vector<8x64xf32>
      %38 = arith.addf %33, %37 : vector<8x64xf32>
      %39 = vector.extract_strided_slice %28 {offsets = [1, 192], sizes = [8, 64], strides = [1, 1]} : vector<9x256xf32> to vector<8x64xf32>
      %c2 = arith.constant 2 : index
      %c0_40 = arith.constant 0 : index
      %c0_41 = arith.constant 0 : index
      %40 = vector.load %arg3[%c2, %c0_40, %c0_41] : memref<9x64x64xf32, #tpu.memory_space<vmem>>, vector<1x64x64xf32>
      %41 = vector.shape_cast %40 : vector<1x64x64xf32> to vector<64x64xf32>
      %cst_42 = arith.constant dense<0.000000e+00> : vector<8x64xf32>
      %42 = tpu.matmul %39, %41, %cst_42 {dimension_numbers = #tpu.dot_dimension_numbers<[1], [0], [0], [1], [0, 0, 1, 1], [], []>} : vector<8x64xf32>, vector<64x64xf32>, vector<8x64xf32> -> vector<8x64xf32>
      %43 = arith.addf %38, %42 : vector<8x64xf32>
      %c0_i32_43 = arith.constant 0 : i32
      %44 = arith.addi %arg15, %c0_i32_43 : i32
      %c1_i32_44 = arith.constant 1 : i32
      %45 = arith.addi %44, %c1_i32_44 : i32
      %c0_45 = arith.constant 0 : index
      %46 = arith.index_cast %45 : i32 to index
      %c0_46 = arith.constant 0 : index
      %c0_47 = arith.constant 0 : index
      %47 = vector.load %arg1[%c0_45, %46, %c0_46, %c0_47] : memref<1x9x9x256xbf16, #tpu.memory_space<vmem>>, vector<1x1x9x256xbf16>
      %48 = vector.shape_cast %47 : vector<1x1x9x256xbf16> to vector<9x256xbf16>
      %49 = arith.extf %48 : vector<9x256xbf16> to vector<9x256xf32>
      %50 = vector.extract_strided_slice %49 {offsets = [0, 64], sizes = [8, 64], strides = [1, 1]} : vector<9x256xf32> to vector<8x64xf32>
      %c3 = arith.constant 3 : index
      %c0_48 = arith.constant 0 : index
      %c0_49 = arith.constant 0 : index
      %51 = vector.load %arg3[%c3, %c0_48, %c0_49] : memref<9x64x64xf32, #tpu.memory_space<vmem>>, vector<1x64x64xf32>
      %52 = vector.shape_cast %51 : vector<1x64x64xf32> to vector<64x64xf32>
      %cst_50 = arith.constant dense<0.000000e+00> : vector<8x64xf32>
      %53 = tpu.matmul %50, %52, %cst_50 {dimension_numbers = #tpu.dot_dimension_numbers<[1], [0], [0], [1], [0, 0, 1, 1], [], []>} : vector<8x64xf32>, vector<64x64xf32>, vector<8x64xf32> -> vector<8x64xf32>
      %54 = arith.addf %43, %53 : vector<8x64xf32>
      %55 = vector.extract_strided_slice %49 {offsets = [1, 0], sizes = [8, 64], strides = [1, 1]} : vector<9x256xf32> to vector<8x64xf32>
      %c4 = arith.constant 4 : index
      %c0_51 = arith.constant 0 : index
      %c0_52 = arith.constant 0 : index
      %56 = vector.load %arg3[%c4, %c0_51, %c0_52] : memref<9x64x64xf32, #tpu.memory_space<vmem>>, vector<1x64x64xf32>
      %57 = vector.shape_cast %56 : vector<1x64x64xf32> to vector<64x64xf32>
      %cst_53 = arith.constant dense<0.000000e+00> : vector<8x64xf32>
      %58 = tpu.matmul %55, %57, %cst_53 {dimension_numbers = #tpu.dot_dimension_numbers<[1], [0], [0], [1], [0, 0, 1, 1], [], []>} : vector<8x64xf32>, vector<64x64xf32>, vector<8x64xf32> -> vector<8x64xf32>
      %59 = arith.addf %54, %58 : vector<8x64xf32>
      %60 = vector.extract_strided_slice %49 {offsets = [1, 64], sizes = [8, 64], strides = [1, 1]} : vector<9x256xf32> to vector<8x64xf32>
      %c5 = arith.constant 5 : index
      %c0_54 = arith.constant 0 : index
      %c0_55 = arith.constant 0 : index
      %61 = vector.load %arg3[%c5, %c0_54, %c0_55] : memref<9x64x64xf32, #tpu.memory_space<vmem>>, vector<1x64x64xf32>
      %62 = vector.shape_cast %61 : vector<1x64x64xf32> to vector<64x64xf32>
      %cst_56 = arith.constant dense<0.000000e+00> : vector<8x64xf32>
      %63 = tpu.matmul %60, %62, %cst_56 {dimension_numbers = #tpu.dot_dimension_numbers<[1], [0], [0], [1], [0, 0, 1, 1], [], []>} : vector<8x64xf32>, vector<64x64xf32>, vector<8x64xf32> -> vector<8x64xf32>
      %64 = arith.addf %59, %63 : vector<8x64xf32>
      %c0_i32_57 = arith.constant 0 : i32
      %65 = arith.addi %arg15, %c0_i32_57 : i32
      %c1_i32_58 = arith.constant 1 : i32
      %66 = arith.addi %65, %c1_i32_58 : i32
      %c0_59 = arith.constant 0 : index
      %67 = arith.index_cast %66 : i32 to index
      %c0_60 = arith.constant 0 : index
      %c0_61 = arith.constant 0 : index
      %68 = vector.load %arg1[%c0_59, %67, %c0_60, %c0_61] : memref<1x9x9x256xbf16, #tpu.memory_space<vmem>>, vector<1x1x9x256xbf16>
      %69 = vector.shape_cast %68 : vector<1x1x9x256xbf16> to vector<9x256xbf16>
      %70 = arith.extf %69 : vector<9x256xbf16> to vector<9x256xf32>
      %71 = vector.extract_strided_slice %70 {offsets = [0, 192], sizes = [8, 64], strides = [1, 1]} : vector<9x256xf32> to vector<8x64xf32>
      %c6 = arith.constant 6 : index
      %c0_62 = arith.constant 0 : index
      %c0_63 = arith.constant 0 : index
      %72 = vector.load %arg3[%c6, %c0_62, %c0_63] : memref<9x64x64xf32, #tpu.memory_space<vmem>>, vector<1x64x64xf32>
      %73 = vector.shape_cast %72 : vector<1x64x64xf32> to vector<64x64xf32>
      %cst_64 = arith.constant dense<0.000000e+00> : vector<8x64xf32>
      %74 = tpu.matmul %71, %73, %cst_64 {dimension_numbers = #tpu.dot_dimension_numbers<[1], [0], [0], [1], [0, 0, 1, 1], [], []>} : vector<8x64xf32>, vector<64x64xf32>, vector<8x64xf32> -> vector<8x64xf32>
      %75 = arith.addf %64, %74 : vector<8x64xf32>
      %76 = vector.extract_strided_slice %70 {offsets = [1, 128], sizes = [8, 64], strides = [1, 1]} : vector<9x256xf32> to vector<8x64xf32>
      %c7 = arith.constant 7 : index
      %c0_65 = arith.constant 0 : index
      %c0_66 = arith.constant 0 : index
      %77 = vector.load %arg3[%c7, %c0_65, %c0_66] : memref<9x64x64xf32, #tpu.memory_space<vmem>>, vector<1x64x64xf32>
      %78 = vector.shape_cast %77 : vector<1x64x64xf32> to vector<64x64xf32>
      %cst_67 = arith.constant dense<0.000000e+00> : vector<8x64xf32>
      %79 = tpu.matmul %76, %78, %cst_67 {dimension_numbers = #tpu.dot_dimension_numbers<[1], [0], [0], [1], [0, 0, 1, 1], [], []>} : vector<8x64xf32>, vector<64x64xf32>, vector<8x64xf32> -> vector<8x64xf32>
      %80 = arith.addf %75, %79 : vector<8x64xf32>
      %81 = vector.extract_strided_slice %70 {offsets = [1, 192], sizes = [8, 64], strides = [1, 1]} : vector<9x256xf32> to vector<8x64xf32>
      %c8 = arith.constant 8 : index
      %c0_68 = arith.constant 0 : index
      %c0_69 = arith.constant 0 : index
      %82 = vector.load %arg3[%c8, %c0_68, %c0_69] : memref<9x64x64xf32, #tpu.memory_space<vmem>>, vector<1x64x64xf32>
      %83 = vector.shape_cast %82 : vector<1x64x64xf32> to vector<64x64xf32>
      %cst_70 = arith.constant dense<0.000000e+00> : vector<8x64xf32>
      %84 = tpu.matmul %81, %83, %cst_70 {dimension_numbers = #tpu.dot_dimension_numbers<[1], [0], [0], [1], [0, 0, 1, 1], [], []>} : vector<8x64xf32>, vector<64x64xf32>, vector<8x64xf32> -> vector<8x64xf32>
      %85 = arith.addf %80, %84 : vector<8x64xf32>
      %cst_71 = arith.constant 0.000000e+00 : f32
      %86 = vector.broadcast %cst_71 : f32 to vector<8x64xf32>
      %87 = arith.cmpf oge, %85, %86 : vector<8x64xf32>
      %cst_72 = arith.constant 1.000000e-01 : f32
      %88 = vector.broadcast %cst_72 : f32 to vector<8x64xf32>
      %89 = arith.mulf %88, %85 : vector<8x64xf32>
      %90 = arith.select %87, %85, %89 : vector<8x64xi1>, vector<8x64xf32>
      %91 = tpu.concatenate %1, %90, %1 in 0 : vector<1x64xf32>, vector<8x64xf32>, vector<1x64xf32> -> vector<10x64xf32>
      %c1_i32_73 = arith.constant 1 : i32
      %92 = arith.addi %arg15, %c1_i32_73 : i32
      %93 = arith.index_cast %92 : i32 to index
      %c0_74 = arith.constant 0 : index
      %c0_75 = arith.constant 0 : index
      %94 = vector.load %arg12[%93, %c0_74, %c0_75] : memref<10x10x64xf32, #tpu.memory_space<vmem>>, vector<1x10x64xf32>
      %95 = vector.shape_cast %94 : vector<1x10x64xf32> to vector<10x64xf32>
      %96 = vector.shape_cast %91 : vector<10x64xf32> to vector<1x10x64xf32>
      tpu.vector_store %arg12[%93, %c0_74, %c0_75], %96 {strides = array<i32>} : memref<10x10x64xf32, #tpu.memory_space<vmem>>, vector<1x10x64xf32>,
    }
    %c8_i32_11 = arith.constant 8 : i32
    %c0_i32_12 = arith.constant 0 : i32
    %c8_i32_13 = arith.constant 8 : i32
    %15 = arith.addi %c0_i32_12, %c8_i32_13 : i32
    %c1_i32_14 = arith.constant 1 : i32
    scf.for %arg15 = %c0_i32_12 to %15 step %c1_i32_14  : i32 {
      %cst_26 = arith.constant 0.000000e+00 : f32
      %19 = vector.broadcast %cst_26 : f32 to vector<8x64xf32>
      %c0_27 = arith.constant 0 : index
      %c0_28 = arith.constant 0 : index
      %20 = vector.load %arg6[%c0_27, %c0_28] : memref<1x64xf32, #tpu.memory_space<vmem>>, vector<1x64xf32>
      %21 = vector.broadcast %20 : vector<1x64xf32> to vector<8x64xf32>
      %22 = arith.addf %19, %21 : vector<8x64xf32>
      %c0_i32_29 = arith.constant 0 : i32
      %23 = arith.addi %arg15, %c0_i32_29 : i32
      %24 = arith.index_cast %23 : i32 to index
      %c0_30 = arith.constant 0 : index
      %c0_31 = arith.constant 0 : index
      %25 = vector.load %arg12[%24, %c0_30, %c0_31] : memref<10x10x64xf32, #tpu.memory_space<vmem>>, vector<1x10x64xf32>
      %26 = vector.shape_cast %25 : vector<1x10x64xf32> to vector<10x64xf32>
      %27 = vector.extract_strided_slice %26 {offsets = [0, 0], sizes = [8, 64], strides = [1, 1]} : vector<10x64xf32> to vector<8x64xf32>
      %c0_32 = arith.constant 0 : index
      %c0_33 = arith.constant 0 : index
      %c0_34 = arith.constant 0 : index
      %28 = vector.load %arg5[%c0_32, %c0_33, %c0_34] : memref<9x64x64xf32, #tpu.memory_space<vmem>>, vector<1x64x64xf32>
      %29 = vector.shape_cast %28 : vector<1x64x64xf32> to vector<64x64xf32>
      %cst_35 = arith.constant dense<0.000000e+00> : vector<8x64xf32>
      %30 = tpu.matmul %27, %29, %cst_35 {dimension_numbers = #tpu.dot_dimension_numbers<[1], [0], [0], [1], [0, 0, 1, 1], [], []>} : vector<8x64xf32>, vector<64x64xf32>, vector<8x64xf32> -> vector<8x64xf32>
      %31 = arith.addf %22, %30 : vector<8x64xf32>
      %32 = vector.extract_strided_slice %26 {offsets = [1, 0], sizes = [8, 64], strides = [1, 1]} : vector<10x64xf32> to vector<8x64xf32>
      %c1 = arith.constant 1 : index
      %c0_36 = arith.constant 0 : index
      %c0_37 = arith.constant 0 : index
      %33 = vector.load %arg5[%c1, %c0_36, %c0_37] : memref<9x64x64xf32, #tpu.memory_space<vmem>>, vector<1x64x64xf32>
      %34 = vector.shape_cast %33 : vector<1x64x64xf32> to vector<64x64xf32>
      %cst_38 = arith.constant dense<0.000000e+00> : vector<8x64xf32>
      %35 = tpu.matmul %32, %34, %cst_38 {dimension_numbers = #tpu.dot_dimension_numbers<[1], [0], [0], [1], [0, 0, 1, 1], [], []>} : vector<8x64xf32>, vector<64x64xf32>, vector<8x64xf32> -> vector<8x64xf32>
      %36 = arith.addf %31, %35 : vector<8x64xf32>
      %37 = vector.extract_strided_slice %26 {offsets = [2, 0], sizes = [8, 64], strides = [1, 1]} : vector<10x64xf32> to vector<8x64xf32>
      %c2 = arith.constant 2 : index
      %c0_39 = arith.constant 0 : index
      %c0_40 = arith.constant 0 : index
      %38 = vector.load %arg5[%c2, %c0_39, %c0_40] : memref<9x64x64xf32, #tpu.memory_space<vmem>>, vector<1x64x64xf32>
      %39 = vector.shape_cast %38 : vector<1x64x64xf32> to vector<64x64xf32>
      %cst_41 = arith.constant dense<0.000000e+00> : vector<8x64xf32>
      %40 = tpu.matmul %37, %39, %cst_41 {dimension_numbers = #tpu.dot_dimension_numbers<[1], [0], [0], [1], [0, 0, 1, 1], [], []>} : vector<8x64xf32>, vector<64x64xf32>, vector<8x64xf32> -> vector<8x64xf32>
      %41 = arith.addf %36, %40 : vector<8x64xf32>
      %c1_i32_42 = arith.constant 1 : i32
      %42 = arith.addi %arg15, %c1_i32_42 : i32
      %43 = arith.index_cast %42 : i32 to index
      %c0_43 = arith.constant 0 : index
      %c0_44 = arith.constant 0 : index
      %44 = vector.load %arg12[%43, %c0_43, %c0_44] : memref<10x10x64xf32, #tpu.memory_space<vmem>>, vector<1x10x64xf32>
      %45 = vector.shape_cast %44 : vector<1x10x64xf32> to vector<10x64xf32>
      %46 = vector.extract_strided_slice %45 {offsets = [0, 0], sizes = [8, 64], strides = [1, 1]} : vector<10x64xf32> to vector<8x64xf32>
      %c3 = arith.constant 3 : index
      %c0_45 = arith.constant 0 : index
      %c0_46 = arith.constant 0 : index
      %47 = vector.load %arg5[%c3, %c0_45, %c0_46] : memref<9x64x64xf32, #tpu.memory_space<vmem>>, vector<1x64x64xf32>
      %48 = vector.shape_cast %47 : vector<1x64x64xf32> to vector<64x64xf32>
      %cst_47 = arith.constant dense<0.000000e+00> : vector<8x64xf32>
      %49 = tpu.matmul %46, %48, %cst_47 {dimension_numbers = #tpu.dot_dimension_numbers<[1], [0], [0], [1], [0, 0, 1, 1], [], []>} : vector<8x64xf32>, vector<64x64xf32>, vector<8x64xf32> -> vector<8x64xf32>
      %50 = arith.addf %41, %49 : vector<8x64xf32>
      %51 = vector.extract_strided_slice %45 {offsets = [1, 0], sizes = [8, 64], strides = [1, 1]} : vector<10x64xf32> to vector<8x64xf32>
      %c4 = arith.constant 4 : index
      %c0_48 = arith.constant 0 : index
      %c0_49 = arith.constant 0 : index
      %52 = vector.load %arg5[%c4, %c0_48, %c0_49] : memref<9x64x64xf32, #tpu.memory_space<vmem>>, vector<1x64x64xf32>
      %53 = vector.shape_cast %52 : vector<1x64x64xf32> to vector<64x64xf32>
      %cst_50 = arith.constant dense<0.000000e+00> : vector<8x64xf32>
      %54 = tpu.matmul %51, %53, %cst_50 {dimension_numbers = #tpu.dot_dimension_numbers<[1], [0], [0], [1], [0, 0, 1, 1], [], []>} : vector<8x64xf32>, vector<64x64xf32>, vector<8x64xf32> -> vector<8x64xf32>
      %55 = arith.addf %50, %54 : vector<8x64xf32>
      %56 = vector.extract_strided_slice %45 {offsets = [2, 0], sizes = [8, 64], strides = [1, 1]} : vector<10x64xf32> to vector<8x64xf32>
      %c5 = arith.constant 5 : index
      %c0_51 = arith.constant 0 : index
      %c0_52 = arith.constant 0 : index
      %57 = vector.load %arg5[%c5, %c0_51, %c0_52] : memref<9x64x64xf32, #tpu.memory_space<vmem>>, vector<1x64x64xf32>
      %58 = vector.shape_cast %57 : vector<1x64x64xf32> to vector<64x64xf32>
      %cst_53 = arith.constant dense<0.000000e+00> : vector<8x64xf32>
      %59 = tpu.matmul %56, %58, %cst_53 {dimension_numbers = #tpu.dot_dimension_numbers<[1], [0], [0], [1], [0, 0, 1, 1], [], []>} : vector<8x64xf32>, vector<64x64xf32>, vector<8x64xf32> -> vector<8x64xf32>
      %60 = arith.addf %55, %59 : vector<8x64xf32>
      %c2_i32 = arith.constant 2 : i32
      %61 = arith.addi %arg15, %c2_i32 : i32
      %62 = arith.index_cast %61 : i32 to index
      %c0_54 = arith.constant 0 : index
      %c0_55 = arith.constant 0 : index
      %63 = vector.load %arg12[%62, %c0_54, %c0_55] : memref<10x10x64xf32, #tpu.memory_space<vmem>>, vector<1x10x64xf32>
      %64 = vector.shape_cast %63 : vector<1x10x64xf32> to vector<10x64xf32>
      %65 = vector.extract_strided_slice %64 {offsets = [0, 0], sizes = [8, 64], strides = [1, 1]} : vector<10x64xf32> to vector<8x64xf32>
      %c6 = arith.constant 6 : index
      %c0_56 = arith.constant 0 : index
      %c0_57 = arith.constant 0 : index
      %66 = vector.load %arg5[%c6, %c0_56, %c0_57] : memref<9x64x64xf32, #tpu.memory_space<vmem>>, vector<1x64x64xf32>
      %67 = vector.shape_cast %66 : vector<1x64x64xf32> to vector<64x64xf32>
      %cst_58 = arith.constant dense<0.000000e+00> : vector<8x64xf32>
      %68 = tpu.matmul %65, %67, %cst_58 {dimension_numbers = #tpu.dot_dimension_numbers<[1], [0], [0], [1], [0, 0, 1, 1], [], []>} : vector<8x64xf32>, vector<64x64xf32>, vector<8x64xf32> -> vector<8x64xf32>
      %69 = arith.addf %60, %68 : vector<8x64xf32>
      %70 = vector.extract_strided_slice %64 {offsets = [1, 0], sizes = [8, 64], strides = [1, 1]} : vector<10x64xf32> to vector<8x64xf32>
      %c7 = arith.constant 7 : index
      %c0_59 = arith.constant 0 : index
      %c0_60 = arith.constant 0 : index
      %71 = vector.load %arg5[%c7, %c0_59, %c0_60] : memref<9x64x64xf32, #tpu.memory_space<vmem>>, vector<1x64x64xf32>
      %72 = vector.shape_cast %71 : vector<1x64x64xf32> to vector<64x64xf32>
      %cst_61 = arith.constant dense<0.000000e+00> : vector<8x64xf32>
      %73 = tpu.matmul %70, %72, %cst_61 {dimension_numbers = #tpu.dot_dimension_numbers<[1], [0], [0], [1], [0, 0, 1, 1], [], []>} : vector<8x64xf32>, vector<64x64xf32>, vector<8x64xf32> -> vector<8x64xf32>
      %74 = arith.addf %69, %73 : vector<8x64xf32>
      %75 = vector.extract_strided_slice %64 {offsets = [2, 0], sizes = [8, 64], strides = [1, 1]} : vector<10x64xf32> to vector<8x64xf32>
      %c8 = arith.constant 8 : index
      %c0_62 = arith.constant 0 : index
      %c0_63 = arith.constant 0 : index
      %76 = vector.load %arg5[%c8, %c0_62, %c0_63] : memref<9x64x64xf32, #tpu.memory_space<vmem>>, vector<1x64x64xf32>
      %77 = vector.shape_cast %76 : vector<1x64x64xf32> to vector<64x64xf32>
      %cst_64 = arith.constant dense<0.000000e+00> : vector<8x64xf32>
      %78 = tpu.matmul %75, %77, %cst_64 {dimension_numbers = #tpu.dot_dimension_numbers<[1], [0], [0], [1], [0, 0, 1, 1], [], []>} : vector<8x64xf32>, vector<64x64xf32>, vector<8x64xf32> -> vector<8x64xf32>
      %79 = arith.addf %74, %78 : vector<8x64xf32>
      %cst_65 = arith.constant 0.000000e+00 : f32
      %80 = vector.broadcast %cst_65 : f32 to vector<8x64xf32>
      %81 = arith.cmpf oge, %79, %80 : vector<8x64xf32>
      %cst_66 = arith.constant 1.000000e-01 : f32
      %82 = vector.broadcast %cst_66 : f32 to vector<8x64xf32>
      %83 = arith.mulf %82, %79 : vector<8x64xf32>
      %84 = arith.select %81, %79, %83 : vector<8x64xi1>, vector<8x64xf32>
      %85 = tpu.concatenate %1, %84, %1 in 0 : vector<1x64xf32>, vector<8x64xf32>, vector<1x64xf32> -> vector<10x64xf32>
      %c1_i32_67 = arith.constant 1 : i32
      %86 = arith.addi %arg15, %c1_i32_67 : i32
      %87 = arith.index_cast %86 : i32 to index
      %c0_68 = arith.constant 0 : index
      %c0_69 = arith.constant 0 : index
      %88 = vector.load %arg13[%87, %c0_68, %c0_69] : memref<10x10x64xf32, #tpu.memory_space<vmem>>, vector<1x10x64xf32>
      %89 = vector.shape_cast %88 : vector<1x10x64xf32> to vector<10x64xf32>
      %90 = vector.shape_cast %85 : vector<10x64xf32> to vector<1x10x64xf32>
      tpu.vector_store %arg13[%87, %c0_68, %c0_69], %90 {strides = array<i32>} : memref<10x10x64xf32, #tpu.memory_space<vmem>>, vector<1x10x64xf32>,
    }
    %c8_i32_15 = arith.constant 8 : i32
    %c0_i32_16 = arith.constant 0 : i32
    %c8_i32_17 = arith.constant 8 : i32
    %16 = arith.addi %c0_i32_16, %c8_i32_17 : i32
    %c1_i32_18 = arith.constant 1 : i32
    scf.for %arg15 = %c0_i32_16 to %16 step %c1_i32_18  : i32 {
      %cst_26 = arith.constant 0.000000e+00 : f32
      %19 = vector.broadcast %cst_26 : f32 to vector<8x96xf32>
      %c0_27 = arith.constant 0 : index
      %c0_28 = arith.constant 0 : index
      %20 = vector.load %arg8[%c0_27, %c0_28] : memref<1x96xf32, #tpu.memory_space<vmem>>, vector<1x96xf32>
      %21 = vector.broadcast %20 : vector<1x96xf32> to vector<8x96xf32>
      %22 = arith.addf %19, %21 : vector<8x96xf32>
      %c0_i32_29 = arith.constant 0 : i32
      %23 = arith.addi %arg15, %c0_i32_29 : i32
      %24 = arith.index_cast %23 : i32 to index
      %c0_30 = arith.constant 0 : index
      %c0_31 = arith.constant 0 : index
      %25 = vector.load %arg13[%24, %c0_30, %c0_31] : memref<10x10x64xf32, #tpu.memory_space<vmem>>, vector<1x10x64xf32>
      %26 = vector.shape_cast %25 : vector<1x10x64xf32> to vector<10x64xf32>
      %27 = vector.extract_strided_slice %26 {offsets = [0, 0], sizes = [8, 64], strides = [1, 1]} : vector<10x64xf32> to vector<8x64xf32>
      %c0_32 = arith.constant 0 : index
      %c0_33 = arith.constant 0 : index
      %c0_34 = arith.constant 0 : index
      %28 = vector.load %arg7[%c0_32, %c0_33, %c0_34] : memref<9x64x96xf32, #tpu.memory_space<vmem>>, vector<1x64x96xf32>
      %29 = vector.shape_cast %28 : vector<1x64x96xf32> to vector<64x96xf32>
      %cst_35 = arith.constant dense<0.000000e+00> : vector<8x96xf32>
      %30 = tpu.matmul %27, %29, %cst_35 {dimension_numbers = #tpu.dot_dimension_numbers<[1], [0], [0], [1], [0, 0, 1, 1], [], []>} : vector<8x64xf32>, vector<64x96xf32>, vector<8x96xf32> -> vector<8x96xf32>
      %31 = arith.addf %22, %30 : vector<8x96xf32>
      %32 = vector.extract_strided_slice %26 {offsets = [1, 0], sizes = [8, 64], strides = [1, 1]} : vector<10x64xf32> to vector<8x64xf32>
      %c1 = arith.constant 1 : index
      %c0_36 = arith.constant 0 : index
      %c0_37 = arith.constant 0 : index
      %33 = vector.load %arg7[%c1, %c0_36, %c0_37] : memref<9x64x96xf32, #tpu.memory_space<vmem>>, vector<1x64x96xf32>
      %34 = vector.shape_cast %33 : vector<1x64x96xf32> to vector<64x96xf32>
      %cst_38 = arith.constant dense<0.000000e+00> : vector<8x96xf32>
      %35 = tpu.matmul %32, %34, %cst_38 {dimension_numbers = #tpu.dot_dimension_numbers<[1], [0], [0], [1], [0, 0, 1, 1], [], []>} : vector<8x64xf32>, vector<64x96xf32>, vector<8x96xf32> -> vector<8x96xf32>
      %36 = arith.addf %31, %35 : vector<8x96xf32>
      %37 = vector.extract_strided_slice %26 {offsets = [2, 0], sizes = [8, 64], strides = [1, 1]} : vector<10x64xf32> to vector<8x64xf32>
      %c2 = arith.constant 2 : index
      %c0_39 = arith.constant 0 : index
      %c0_40 = arith.constant 0 : index
      %38 = vector.load %arg7[%c2, %c0_39, %c0_40] : memref<9x64x96xf32, #tpu.memory_space<vmem>>, vector<1x64x96xf32>
      %39 = vector.shape_cast %38 : vector<1x64x96xf32> to vector<64x96xf32>
      %cst_41 = arith.constant dense<0.000000e+00> : vector<8x96xf32>
      %40 = tpu.matmul %37, %39, %cst_41 {dimension_numbers = #tpu.dot_dimension_numbers<[1], [0], [0], [1], [0, 0, 1, 1], [], []>} : vector<8x64xf32>, vector<64x96xf32>, vector<8x96xf32> -> vector<8x96xf32>
      %41 = arith.addf %36, %40 : vector<8x96xf32>
      %c1_i32_42 = arith.constant 1 : i32
      %42 = arith.addi %arg15, %c1_i32_42 : i32
      %43 = arith.index_cast %42 : i32 to index
      %c0_43 = arith.constant 0 : index
      %c0_44 = arith.constant 0 : index
      %44 = vector.load %arg13[%43, %c0_43, %c0_44] : memref<10x10x64xf32, #tpu.memory_space<vmem>>, vector<1x10x64xf32>
      %45 = vector.shape_cast %44 : vector<1x10x64xf32> to vector<10x64xf32>
      %46 = vector.extract_strided_slice %45 {offsets = [0, 0], sizes = [8, 64], strides = [1, 1]} : vector<10x64xf32> to vector<8x64xf32>
      %c3 = arith.constant 3 : index
      %c0_45 = arith.constant 0 : index
      %c0_46 = arith.constant 0 : index
      %47 = vector.load %arg7[%c3, %c0_45, %c0_46] : memref<9x64x96xf32, #tpu.memory_space<vmem>>, vector<1x64x96xf32>
      %48 = vector.shape_cast %47 : vector<1x64x96xf32> to vector<64x96xf32>
      %cst_47 = arith.constant dense<0.000000e+00> : vector<8x96xf32>
      %49 = tpu.matmul %46, %48, %cst_47 {dimension_numbers = #tpu.dot_dimension_numbers<[1], [0], [0], [1], [0, 0, 1, 1], [], []>} : vector<8x64xf32>, vector<64x96xf32>, vector<8x96xf32> -> vector<8x96xf32>
      %50 = arith.addf %41, %49 : vector<8x96xf32>
      %51 = vector.extract_strided_slice %45 {offsets = [1, 0], sizes = [8, 64], strides = [1, 1]} : vector<10x64xf32> to vector<8x64xf32>
      %c4 = arith.constant 4 : index
      %c0_48 = arith.constant 0 : index
      %c0_49 = arith.constant 0 : index
      %52 = vector.load %arg7[%c4, %c0_48, %c0_49] : memref<9x64x96xf32, #tpu.memory_space<vmem>>, vector<1x64x96xf32>
      %53 = vector.shape_cast %52 : vector<1x64x96xf32> to vector<64x96xf32>
      %cst_50 = arith.constant dense<0.000000e+00> : vector<8x96xf32>
      %54 = tpu.matmul %51, %53, %cst_50 {dimension_numbers = #tpu.dot_dimension_numbers<[1], [0], [0], [1], [0, 0, 1, 1], [], []>} : vector<8x64xf32>, vector<64x96xf32>, vector<8x96xf32> -> vector<8x96xf32>
      %55 = arith.addf %50, %54 : vector<8x96xf32>
      %56 = vector.extract_strided_slice %45 {offsets = [2, 0], sizes = [8, 64], strides = [1, 1]} : vector<10x64xf32> to vector<8x64xf32>
      %c5 = arith.constant 5 : index
      %c0_51 = arith.constant 0 : index
      %c0_52 = arith.constant 0 : index
      %57 = vector.load %arg7[%c5, %c0_51, %c0_52] : memref<9x64x96xf32, #tpu.memory_space<vmem>>, vector<1x64x96xf32>
      %58 = vector.shape_cast %57 : vector<1x64x96xf32> to vector<64x96xf32>
      %cst_53 = arith.constant dense<0.000000e+00> : vector<8x96xf32>
      %59 = tpu.matmul %56, %58, %cst_53 {dimension_numbers = #tpu.dot_dimension_numbers<[1], [0], [0], [1], [0, 0, 1, 1], [], []>} : vector<8x64xf32>, vector<64x96xf32>, vector<8x96xf32> -> vector<8x96xf32>
      %60 = arith.addf %55, %59 : vector<8x96xf32>
      %c2_i32 = arith.constant 2 : i32
      %61 = arith.addi %arg15, %c2_i32 : i32
      %62 = arith.index_cast %61 : i32 to index
      %c0_54 = arith.constant 0 : index
      %c0_55 = arith.constant 0 : index
      %63 = vector.load %arg13[%62, %c0_54, %c0_55] : memref<10x10x64xf32, #tpu.memory_space<vmem>>, vector<1x10x64xf32>
      %64 = vector.shape_cast %63 : vector<1x10x64xf32> to vector<10x64xf32>
      %65 = vector.extract_strided_slice %64 {offsets = [0, 0], sizes = [8, 64], strides = [1, 1]} : vector<10x64xf32> to vector<8x64xf32>
      %c6 = arith.constant 6 : index
      %c0_56 = arith.constant 0 : index
      %c0_57 = arith.constant 0 : index
      %66 = vector.load %arg7[%c6, %c0_56, %c0_57] : memref<9x64x96xf32, #tpu.memory_space<vmem>>, vector<1x64x96xf32>
      %67 = vector.shape_cast %66 : vector<1x64x96xf32> to vector<64x96xf32>
      %cst_58 = arith.constant dense<0.000000e+00> : vector<8x96xf32>
      %68 = tpu.matmul %65, %67, %cst_58 {dimension_numbers = #tpu.dot_dimension_numbers<[1], [0], [0], [1], [0, 0, 1, 1], [], []>} : vector<8x64xf32>, vector<64x96xf32>, vector<8x96xf32> -> vector<8x96xf32>
      %69 = arith.addf %60, %68 : vector<8x96xf32>
      %70 = vector.extract_strided_slice %64 {offsets = [1, 0], sizes = [8, 64], strides = [1, 1]} : vector<10x64xf32> to vector<8x64xf32>
      %c7 = arith.constant 7 : index
      %c0_59 = arith.constant 0 : index
      %c0_60 = arith.constant 0 : index
      %71 = vector.load %arg7[%c7, %c0_59, %c0_60] : memref<9x64x96xf32, #tpu.memory_space<vmem>>, vector<1x64x96xf32>
      %72 = vector.shape_cast %71 : vector<1x64x96xf32> to vector<64x96xf32>
      %cst_61 = arith.constant dense<0.000000e+00> : vector<8x96xf32>
      %73 = tpu.matmul %70, %72, %cst_61 {dimension_numbers = #tpu.dot_dimension_numbers<[1], [0], [0], [1], [0, 0, 1, 1], [], []>} : vector<8x64xf32>, vector<64x96xf32>, vector<8x96xf32> -> vector<8x96xf32>
      %74 = arith.addf %69, %73 : vector<8x96xf32>
      %75 = vector.extract_strided_slice %64 {offsets = [2, 0], sizes = [8, 64], strides = [1, 1]} : vector<10x64xf32> to vector<8x64xf32>
      %c8 = arith.constant 8 : index
      %c0_62 = arith.constant 0 : index
      %c0_63 = arith.constant 0 : index
      %76 = vector.load %arg7[%c8, %c0_62, %c0_63] : memref<9x64x96xf32, #tpu.memory_space<vmem>>, vector<1x64x96xf32>
      %77 = vector.shape_cast %76 : vector<1x64x96xf32> to vector<64x96xf32>
      %cst_64 = arith.constant dense<0.000000e+00> : vector<8x96xf32>
      %78 = tpu.matmul %75, %77, %cst_64 {dimension_numbers = #tpu.dot_dimension_numbers<[1], [0], [0], [1], [0, 0, 1, 1], [], []>} : vector<8x64xf32>, vector<64x96xf32>, vector<8x96xf32> -> vector<8x96xf32>
      %79 = arith.addf %74, %78 : vector<8x96xf32>
      %80 = arith.index_cast %arg15 : i32 to index
      %c0_65 = arith.constant 0 : index
      %c0_66 = arith.constant 0 : index
      %81 = vector.load %arg14[%80, %c0_65, %c0_66] : memref<8x8x96xf32, #tpu.memory_space<vmem>>, vector<1x8x96xf32>
      %82 = vector.shape_cast %81 : vector<1x8x96xf32> to vector<8x96xf32>
      %83 = vector.shape_cast %79 : vector<8x96xf32> to vector<1x8x96xf32>
      tpu.vector_store %arg14[%80, %c0_65, %c0_66], %83 {strides = array<i32>} : memref<8x8x96xf32, #tpu.memory_space<vmem>>, vector<1x8x96xf32>,
    }
    %c8_i32_19 = arith.constant 8 : i32
    %c0_20 = arith.constant 0 : index
    %c0_21 = arith.constant 0 : index
    %17 = vector.load %arg9[%c0_20, %c0_21] : memref<16x8xf32, #tpu.memory_space<vmem>>, vector<16x8xf32>
    %c0_i32_22 = arith.constant 0 : i32
    %c8_i32_23 = arith.constant 8 : i32
    %18 = arith.addi %c0_i32_22, %c8_i32_23 : i32
    %c1_i32_24 = arith.constant 1 : i32
    scf.for %arg15 = %c0_i32_22 to %18 step %c1_i32_24  : i32 {
      %19 = arith.index_cast %arg15 : i32 to index
      %c0_26 = arith.constant 0 : index
      %c0_27 = arith.constant 0 : index
      %20 = vector.load %arg14[%19, %c0_26, %c0_27] : memref<8x8x96xf32, #tpu.memory_space<vmem>>, vector<1x8x96xf32>
      %21 = vector.shape_cast %20 : vector<1x8x96xf32> to vector<8x96xf32>
      %c1_i32_28 = arith.constant 1 : i32
      %22 = arith.subi %arg15, %c1_i32_28 : i32
      %c0_i32_29 = arith.constant 0 : i32
      %23 = arith.maxsi %22, %c0_i32_29 : i32
      %24 = arith.index_cast %23 : i32 to index
      %c0_30 = arith.constant 0 : index
      %c0_31 = arith.constant 0 : index
      %25 = vector.load %arg14[%24, %c0_30, %c0_31] : memref<8x8x96xf32, #tpu.memory_space<vmem>>, vector<1x8x96xf32>
      %26 = vector.shape_cast %25 : vector<1x8x96xf32> to vector<8x96xf32>
      %c1_i32_32 = arith.constant 1 : i32
      %27 = arith.addi %arg15, %c1_i32_32 : i32
      %c7_i32 = arith.constant 7 : i32
      %28 = arith.minsi %27, %c7_i32 : i32
      %29 = arith.index_cast %28 : i32 to index
      %c0_33 = arith.constant 0 : index
      %c0_34 = arith.constant 0 : index
      %30 = vector.load %arg14[%29, %c0_33, %c0_34] : memref<8x8x96xf32, #tpu.memory_space<vmem>>, vector<1x8x96xf32>
      %31 = vector.shape_cast %30 : vector<1x8x96xf32> to vector<8x96xf32>
      %cst_35 = arith.constant 7.500000e-01 : f32
      %32 = vector.broadcast %cst_35 : f32 to vector<8x96xf32>
      %33 = arith.mulf %32, %21 : vector<8x96xf32>
      %cst_36 = arith.constant 2.500000e-01 : f32
      %34 = vector.broadcast %cst_36 : f32 to vector<8x96xf32>
      %35 = arith.mulf %34, %26 : vector<8x96xf32>
      %36 = arith.addf %33, %35 : vector<8x96xf32>
      %cst_37 = arith.constant 7.500000e-01 : f32
      %37 = vector.broadcast %cst_37 : f32 to vector<8x96xf32>
      %38 = arith.mulf %37, %21 : vector<8x96xf32>
      %cst_38 = arith.constant 2.500000e-01 : f32
      %39 = vector.broadcast %cst_38 : f32 to vector<8x96xf32>
      %40 = arith.mulf %39, %31 : vector<8x96xf32>
      %41 = arith.addf %38, %40 : vector<8x96xf32>
      %c2_i32 = arith.constant 2 : i32
      %42 = arith.muli %c2_i32, %arg15 : i32
      %c0_i32_39 = arith.constant 0 : i32
      %43 = arith.addi %42, %c0_i32_39 : i32
      %cst_40 = arith.constant dense<0.000000e+00> : vector<16x96xf32>
      %44 = tpu.matmul %17, %36, %cst_40 {dimension_numbers = #tpu.dot_dimension_numbers<[1], [0], [0], [1], [0, 0, 1, 1], [], []>} : vector<16x8xf32>, vector<8x96xf32>, vector<16x96xf32> -> vector<16x96xf32>
      %c0_41 = arith.constant 0 : index
      %45 = arith.index_cast %43 : i32 to index
      %c0_42 = arith.constant 0 : index
      %c0_43 = arith.constant 0 : index
      %46 = vector.load %arg2[%c0_41, %45, %c0_42, %c0_43] : memref<1x16x16x2xf32, #tpu.memory_space<vmem>>, vector<1x1x16x2xf32>
      %47 = vector.shape_cast %46 : vector<1x1x16x2xf32> to vector<16x2xf32>
      %48 = tpu.iota {dimensions = array<i32: 1>} : vector<16x64xi32>
      %c2_i32_44 = arith.constant 2 : i32
      %c0_i32_45 = arith.constant 0 : i32
      %49 = arith.cmpi eq, %c2_i32_44, %c0_i32_45 : i32
      %c1_i32_46 = arith.constant 1 : i32
      %50 = arith.select %49, %c1_i32_46, %c2_i32_44 : i32
      %51 = vector.broadcast %50 : i32 to vector<16x64xi32>
      %52 = arith.remsi %48, %51 : vector<16x64xi32>
      %c0_i32_47 = arith.constant 0 : i32
      %53 = vector.broadcast %c0_i32_47 : i32 to vector<16x64xi32>
      %54 = arith.cmpi ne, %52, %53 : vector<16x64xi32>
      %c0_i32_48 = arith.constant 0 : i32
      %55 = vector.broadcast %c0_i32_48 : i32 to vector<16x64xi32>
      %56 = arith.cmpi slt, %52, %55 : vector<16x64xi32>
      %c0_i32_49 = arith.constant 0 : i32
      %57 = arith.cmpi slt, %50, %c0_i32_49 : i32
      %58 = vector.broadcast %57 : i1 to vector<16x64xi1>
      %59 = vector.broadcast %58 : vector<16x64xi1> to vector<16x64xi1>
      %60 = arith.xori %56, %59 : vector<16x64xi1>
      %61 = arith.andi %60, %54 : vector<16x64xi1>
      %62 = vector.broadcast %50 : i32 to vector<16x64xi32>
      %63 = arith.addi %52, %62 : vector<16x64xi32>
      %64 = arith.select %61, %63, %52 : vector<16x64xi1>, vector<16x64xi32>
      %c0_i32_50 = arith.constant 0 : i32
      %65 = vector.broadcast %c0_i32_50 : i32 to vector<16x64xi32>
      %66 = arith.cmpi eq, %64, %65 : vector<16x64xi32>
      %67 = vector.extract_strided_slice %47 {offsets = [0, 0], sizes = [16, 1], strides = [1, 1]} : vector<16x2xf32> to vector<16x1xf32>
      %68 = vector.extract_strided_slice %47 {offsets = [0, 1], sizes = [16, 1], strides = [1, 1]} : vector<16x2xf32> to vector<16x1xf32>
      %69 = vector.shape_cast %67 : vector<16x1xf32> to vector<16x1xf32>
      %70 = vector.broadcast %69 : vector<16x1xf32> to vector<16x64xf32>
      %71 = vector.shape_cast %68 : vector<16x1xf32> to vector<16x1xf32>
      %72 = vector.broadcast %71 : vector<16x1xf32> to vector<16x64xf32>
      %73 = arith.select %66, %70, %72 : vector<16x64xi1>, vector<16x64xf32>
      %74 = vector.extract_strided_slice %44 {offsets = [0, 0], sizes = [16, 64], strides = [1, 1]} : vector<16x96xf32> to vector<16x64xf32>
      %75 = math.tanh %74 : vector<16x64xf32>
      %cst_51 = arith.constant 4.000000e+01 : f32
      %76 = vector.broadcast %cst_51 : f32 to vector<16x64xf32>
      %77 = arith.mulf %76, %75 : vector<16x64xf32>
      %78 = arith.addf %77, %73 : vector<16x64xf32>
      %79 = vector.extract_strided_slice %44 {offsets = [0, 64], sizes = [16, 32], strides = [1, 1]} : vector<16x96xf32> to vector<16x32xf32>
      %cst_52 = arith.constant 0.000000e+00 : f32
      %80 = vector.broadcast %cst_52 : f32 to vector<16x32xf32>
      %81 = arith.subf %80, %79 : vector<16x32xf32>
      %82 = math.exp %81 : vector<16x32xf32>
      %cst_53 = arith.constant 1.000000e+00 : f32
      %83 = vector.broadcast %cst_53 : f32 to vector<16x32xf32>
      %84 = arith.addf %83, %82 : vector<16x32xf32>
      %85 = tpu.reciprocal %84 {approx = true} : vector<16x32xf32> -> vector<16x32xf32>
      %c0_54 = arith.constant 0 : index
      %86 = arith.index_cast %43 : i32 to index
      %c0_55 = arith.constant 0 : index
      %c0_56 = arith.constant 0 : index
      %87 = vector.load %arg10[%c0_54, %86, %c0_55, %c0_56] : memref<1x16x16x64xf32, #tpu.memory_space<vmem>>, vector<1x1x16x64xf32>
      %88 = vector.shape_cast %87 : vector<1x1x16x64xf32> to vector<16x64xf32>
      %89 = vector.shape_cast %78 : vector<16x64xf32> to vector<1x1x16x64xf32>
      tpu.vector_store %arg10[%c0_54, %86, %c0_55, %c0_56], %89 {strides = array<i32>} : memref<1x16x16x64xf32, #tpu.memory_space<vmem>>, vector<1x1x16x64xf32>,
      %90 = arith.truncf %85 : vector<16x32xf32> to vector<16x32xbf16>
      %c0_57 = arith.constant 0 : index
      %91 = arith.index_cast %43 : i32 to index
      %c0_58 = arith.constant 0 : index
      %c0_59 = arith.constant 0 : index
      %92 = vector.load %arg11[%c0_57, %91, %c0_58, %c0_59] : memref<1x16x16x32xbf16, #tpu.memory_space<vmem>>, vector<1x1x16x32xbf16>
      %93 = vector.shape_cast %92 : vector<1x1x16x32xbf16> to vector<16x32xbf16>
      %94 = vector.shape_cast %90 : vector<16x32xbf16> to vector<1x1x16x32xbf16>
      tpu.vector_store %arg11[%c0_57, %91, %c0_58, %c0_59], %94 {strides = array<i32>} : memref<1x16x16x32xbf16, #tpu.memory_space<vmem>>, vector<1x1x16x32xbf16>,
      %c2_i32_60 = arith.constant 2 : i32
      %95 = arith.muli %c2_i32_60, %arg15 : i32
      %c1_i32_61 = arith.constant 1 : i32
      %96 = arith.addi %95, %c1_i32_61 : i32
      %cst_62 = arith.constant dense<0.000000e+00> : vector<16x96xf32>
      %97 = tpu.matmul %17, %41, %cst_62 {dimension_numbers = #tpu.dot_dimension_numbers<[1], [0], [0], [1], [0, 0, 1, 1], [], []>} : vector<16x8xf32>, vector<8x96xf32>, vector<16x96xf32> -> vector<16x96xf32>
      %c0_63 = arith.constant 0 : index
      %98 = arith.index_cast %96 : i32 to index
      %c0_64 = arith.constant 0 : index
      %c0_65 = arith.constant 0 : index
      %99 = vector.load %arg2[%c0_63, %98, %c0_64, %c0_65] : memref<1x16x16x2xf32, #tpu.memory_space<vmem>>, vector<1x1x16x2xf32>
      %100 = vector.shape_cast %99 : vector<1x1x16x2xf32> to vector<16x2xf32>
      %101 = tpu.iota {dimensions = array<i32: 1>} : vector<16x64xi32>
      %c2_i32_66 = arith.constant 2 : i32
      %c0_i32_67 = arith.constant 0 : i32
      %102 = arith.cmpi eq, %c2_i32_66, %c0_i32_67 : i32
      %c1_i32_68 = arith.constant 1 : i32
      %103 = arith.select %102, %c1_i32_68, %c2_i32_66 : i32
      %104 = vector.broadcast %103 : i32 to vector<16x64xi32>
      %105 = arith.remsi %101, %104 : vector<16x64xi32>
      %c0_i32_69 = arith.constant 0 : i32
      %106 = vector.broadcast %c0_i32_69 : i32 to vector<16x64xi32>
      %107 = arith.cmpi ne, %105, %106 : vector<16x64xi32>
      %c0_i32_70 = arith.constant 0 : i32
      %108 = vector.broadcast %c0_i32_70 : i32 to vector<16x64xi32>
      %109 = arith.cmpi slt, %105, %108 : vector<16x64xi32>
      %c0_i32_71 = arith.constant 0 : i32
      %110 = arith.cmpi slt, %103, %c0_i32_71 : i32
      %111 = vector.broadcast %110 : i1 to vector<16x64xi1>
      %112 = vector.broadcast %111 : vector<16x64xi1> to vector<16x64xi1>
      %113 = arith.xori %109, %112 : vector<16x64xi1>
      %114 = arith.andi %113, %107 : vector<16x64xi1>
      %115 = vector.broadcast %103 : i32 to vector<16x64xi32>
      %116 = arith.addi %105, %115 : vector<16x64xi32>
      %117 = arith.select %114, %116, %105 : vector<16x64xi1>, vector<16x64xi32>
      %c0_i32_72 = arith.constant 0 : i32
      %118 = vector.broadcast %c0_i32_72 : i32 to vector<16x64xi32>
      %119 = arith.cmpi eq, %117, %118 : vector<16x64xi32>
      %120 = vector.extract_strided_slice %100 {offsets = [0, 0], sizes = [16, 1], strides = [1, 1]} : vector<16x2xf32> to vector<16x1xf32>
      %121 = vector.extract_strided_slice %100 {offsets = [0, 1], sizes = [16, 1], strides = [1, 1]} : vector<16x2xf32> to vector<16x1xf32>
      %122 = vector.shape_cast %120 : vector<16x1xf32> to vector<16x1xf32>
      %123 = vector.broadcast %122 : vector<16x1xf32> to vector<16x64xf32>
      %124 = vector.shape_cast %121 : vector<16x1xf32> to vector<16x1xf32>
      %125 = vector.broadcast %124 : vector<16x1xf32> to vector<16x64xf32>
      %126 = arith.select %119, %123, %125 : vector<16x64xi1>, vector<16x64xf32>
      %127 = vector.extract_strided_slice %97 {offsets = [0, 0], sizes = [16, 64], strides = [1, 1]} : vector<16x96xf32> to vector<16x64xf32>
      %128 = math.tanh %127 : vector<16x64xf32>
      %cst_73 = arith.constant 4.000000e+01 : f32
      %129 = vector.broadcast %cst_73 : f32 to vector<16x64xf32>
      %130 = arith.mulf %129, %128 : vector<16x64xf32>
      %131 = arith.addf %130, %126 : vector<16x64xf32>
      %132 = vector.extract_strided_slice %97 {offsets = [0, 64], sizes = [16, 32], strides = [1, 1]} : vector<16x96xf32> to vector<16x32xf32>
      %cst_74 = arith.constant 0.000000e+00 : f32
      %133 = vector.broadcast %cst_74 : f32 to vector<16x32xf32>
      %134 = arith.subf %133, %132 : vector<16x32xf32>
      %135 = math.exp %134 : vector<16x32xf32>
      %cst_75 = arith.constant 1.000000e+00 : f32
      %136 = vector.broadcast %cst_75 : f32 to vector<16x32xf32>
      %137 = arith.addf %136, %135 : vector<16x32xf32>
      %138 = tpu.reciprocal %137 {approx = true} : vector<16x32xf32> -> vector<16x32xf32>
      %c0_76 = arith.constant 0 : index
      %139 = arith.index_cast %96 : i32 to index
      %c0_77 = arith.constant 0 : index
      %c0_78 = arith.constant 0 : index
      %140 = vector.load %arg10[%c0_76, %139, %c0_77, %c0_78] : memref<1x16x16x64xf32, #tpu.memory_space<vmem>>, vector<1x1x16x64xf32>
      %141 = vector.shape_cast %140 : vector<1x1x16x64xf32> to vector<16x64xf32>
      %142 = vector.shape_cast %131 : vector<16x64xf32> to vector<1x1x16x64xf32>
      tpu.vector_store %arg10[%c0_76, %139, %c0_77, %c0_78], %142 {strides = array<i32>} : memref<1x16x16x64xf32, #tpu.memory_space<vmem>>, vector<1x1x16x64xf32>,
      %143 = arith.truncf %138 : vector<16x32xf32> to vector<16x32xbf16>
      %c0_79 = arith.constant 0 : index
      %144 = arith.index_cast %96 : i32 to index
      %c0_80 = arith.constant 0 : index
      %c0_81 = arith.constant 0 : index
      %145 = vector.load %arg11[%c0_79, %144, %c0_80, %c0_81] : memref<1x16x16x32xbf16, #tpu.memory_space<vmem>>, vector<1x1x16x32xbf16>
      %146 = vector.shape_cast %145 : vector<1x1x16x32xbf16> to vector<16x32xbf16>
      %147 = vector.shape_cast %143 : vector<16x32xbf16> to vector<1x1x16x32xbf16>
      tpu.vector_store %arg11[%c0_79, %144, %c0_80, %c0_81], %147 {strides = array<i32>} : memref<1x16x16x32xbf16, #tpu.memory_space<vmem>>, vector<1x1x16x32xbf16>,
    }
    %c8_i32_25 = arith.constant 8 : i32
    return
  }
  func.func @transform_0(%arg0: i32) -> (i32, i32, i32, i32) {
    %c0_i32 = arith.constant 0 : i32
    %c0_i32_0 = arith.constant 0 : i32
    %c0_i32_1 = arith.constant 0 : i32
    %c0_i32_2 = arith.constant 0 : i32
    return %arg0, %c0_i32, %c0_i32_0, %c0_i32_1 : i32, i32, i32, i32
  }
  func.func @transform_1(%arg0: i32) -> (i32, i32, i32, i32) {
    %c0_i32 = arith.constant 0 : i32
    %c0_i32_0 = arith.constant 0 : i32
    %c0_i32_1 = arith.constant 0 : i32
    %c0_i32_2 = arith.constant 0 : i32
    return %arg0, %c0_i32, %c0_i32_0, %c0_i32_1 : i32, i32, i32, i32
  }
  func.func @transform_2(%arg0: i32) -> (i32, i32, i32) {
    %c0_i32 = arith.constant 0 : i32
    %c0_i32_0 = arith.constant 0 : i32
    %c0_i32_1 = arith.constant 0 : i32
    %c0_i32_2 = arith.constant 0 : i32
    return %c0_i32, %c0_i32_0, %c0_i32_1 : i32, i32, i32
  }
  func.func @transform_3(%arg0: i32) -> (i32, i32) {
    %c0_i32 = arith.constant 0 : i32
    %c0_i32_0 = arith.constant 0 : i32
    %c0_i32_1 = arith.constant 0 : i32
    return %c0_i32, %c0_i32_0 : i32, i32
  }
  func.func @transform_4(%arg0: i32) -> (i32, i32, i32) {
    %c0_i32 = arith.constant 0 : i32
    %c0_i32_0 = arith.constant 0 : i32
    %c0_i32_1 = arith.constant 0 : i32
    %c0_i32_2 = arith.constant 0 : i32
    return %c0_i32, %c0_i32_0, %c0_i32_1 : i32, i32, i32
  }
  func.func @transform_5(%arg0: i32) -> (i32, i32) {
    %c0_i32 = arith.constant 0 : i32
    %c0_i32_0 = arith.constant 0 : i32
    %c0_i32_1 = arith.constant 0 : i32
    return %c0_i32, %c0_i32_0 : i32, i32
  }
  func.func @transform_6(%arg0: i32) -> (i32, i32, i32) {
    %c0_i32 = arith.constant 0 : i32
    %c0_i32_0 = arith.constant 0 : i32
    %c0_i32_1 = arith.constant 0 : i32
    %c0_i32_2 = arith.constant 0 : i32
    return %c0_i32, %c0_i32_0, %c0_i32_1 : i32, i32, i32
  }
  func.func @transform_7(%arg0: i32) -> (i32, i32) {
    %c0_i32 = arith.constant 0 : i32
    %c0_i32_0 = arith.constant 0 : i32
    %c0_i32_1 = arith.constant 0 : i32
    return %c0_i32, %c0_i32_0 : i32, i32
  }
  func.func @transform_8(%arg0: i32) -> (i32, i32) {
    %c0_i32 = arith.constant 0 : i32
    %c0_i32_0 = arith.constant 0 : i32
    %c0_i32_1 = arith.constant 0 : i32
    return %c0_i32, %c0_i32_0 : i32, i32
  }
  func.func @transform_9(%arg0: i32) -> (i32, i32, i32, i32) {
    %c0_i32 = arith.constant 0 : i32
    %c0_i32_0 = arith.constant 0 : i32
    %c0_i32_1 = arith.constant 0 : i32
    %c0_i32_2 = arith.constant 0 : i32
    return %arg0, %c0_i32, %c0_i32_0, %c0_i32_1 : i32, i32, i32, i32
  }
  func.func @transform_10(%arg0: i32) -> (i32, i32, i32, i32) {
    %c0_i32 = arith.constant 0 : i32
    %c0_i32_0 = arith.constant 0 : i32
    %c0_i32_1 = arith.constant 0 : i32
    %c0_i32_2 = arith.constant 0 : i32
    return %arg0, %c0_i32, %c0_i32_0, %c0_i32_1 : i32, i32, i32, i32
  }
}

module attributes {stable_mosaic.version = 11 : i64} {
  func.func @_fusion_kernel(%arg0: i32, %arg1: memref<512x96xbf16, #tpu.memory_space<vmem>>, %arg2: memref<512x32xbf16, #tpu.memory_space<vmem>>, %arg3: memref<32x96xbf16, #tpu.memory_space<vmem>>, %arg4: memref<96x48xbf16, #tpu.memory_space<vmem>>, %arg5: memref<1x48xf32, #tpu.memory_space<vmem>>, %arg6: memref<512x48xf32, #tpu.memory_space<vmem>>) attributes {dimension_semantics = [#tpu.dimension_semantics<parallel>], iteration_bounds = array<i64: 1>, scalar_prefetch = 0 : i64, scratch_operands = 0 : i64, tpu.core_type = #tpu.core_type<tc>, window_params = [{transform_indices = @transform_0, window_bounds = array<i64: 512, 96>}, {transform_indices = @transform_1, window_bounds = array<i64: 512, 32>}, {pipeline_mode = #tpu.pipeline_mode<synchronous>, transform_indices = @transform_2, window_bounds = array<i64: 32, 96>}, {pipeline_mode = #tpu.pipeline_mode<synchronous>, transform_indices = @transform_3, window_bounds = array<i64: 96, 48>}, {pipeline_mode = #tpu.pipeline_mode<synchronous>, transform_indices = @transform_4, window_bounds = array<i64: 1, 48>}, {transform_indices = @transform_5, window_bounds = array<i64: 512, 48>}]} {
    %c0 = arith.constant 0 : index
    %c0_0 = arith.constant 0 : index
    %0 = vector.load %arg2[%c0, %c0_0] : memref<512x32xbf16, #tpu.memory_space<vmem>>, vector<512x32xbf16>
    %c0_1 = arith.constant 0 : index
    %c0_2 = arith.constant 0 : index
    %1 = vector.load %arg3[%c0_1, %c0_2] : memref<32x96xbf16, #tpu.memory_space<vmem>>, vector<32x96xbf16>
    %cst = arith.constant dense<0.000000e+00> : vector<512x96xf32>
    %2 = tpu.matmul %0, %1, %cst {dimension_numbers = #tpu.dot_dimension_numbers<[1], [0], [0], [1], [0, 0, 1, 1], [], []>} : vector<512x32xbf16>, vector<32x96xbf16>, vector<512x96xf32> -> vector<512x96xf32>
    %c0_3 = arith.constant 0 : index
    %c0_4 = arith.constant 0 : index
    %3 = vector.load %arg1[%c0_3, %c0_4] : memref<512x96xbf16, #tpu.memory_space<vmem>>, vector<512x96xbf16>
    %4 = arith.extf %3 : vector<512x96xbf16> to vector<512x96xf32>
    %5 = arith.mulf %4, %2 : vector<512x96xf32>
    %6 = arith.truncf %5 : vector<512x96xf32> to vector<512x96xbf16>
    %c0_5 = arith.constant 0 : index
    %c0_6 = arith.constant 0 : index
    %7 = vector.load %arg4[%c0_5, %c0_6] : memref<96x48xbf16, #tpu.memory_space<vmem>>, vector<96x48xbf16>
    %cst_7 = arith.constant dense<0.000000e+00> : vector<512x48xf32>
    %8 = tpu.matmul %6, %7, %cst_7 {dimension_numbers = #tpu.dot_dimension_numbers<[1], [0], [0], [1], [0, 0, 1, 1], [], []>} : vector<512x96xbf16>, vector<96x48xbf16>, vector<512x48xf32> -> vector<512x48xf32>
    %c0_8 = arith.constant 0 : index
    %c0_9 = arith.constant 0 : index
    %9 = vector.load %arg5[%c0_8, %c0_9] : memref<1x48xf32, #tpu.memory_space<vmem>>, vector<1x48xf32>
    %10 = vector.broadcast %9 : vector<1x48xf32> to vector<512x48xf32>
    %11 = arith.addf %8, %10 : vector<512x48xf32>
    %c0_10 = arith.constant 0 : index
    %c0_11 = arith.constant 0 : index
    %12 = vector.load %arg6[%c0_10, %c0_11] : memref<512x48xf32, #tpu.memory_space<vmem>>, vector<512x48xf32>
    tpu.vector_store %arg6[%c0_10, %c0_11], %11 {strides = array<i32>} : memref<512x48xf32, #tpu.memory_space<vmem>>, vector<512x48xf32>,
    return
  }
  func.func @transform_0(%arg0: i32) -> (i32, i32) {
    %c0_i32 = arith.constant 0 : i32
    %c0_i32_0 = arith.constant 0 : i32
    return %arg0, %c0_i32 : i32, i32
  }
  func.func @transform_1(%arg0: i32) -> (i32, i32) {
    %c0_i32 = arith.constant 0 : i32
    %c0_i32_0 = arith.constant 0 : i32
    return %arg0, %c0_i32 : i32, i32
  }
  func.func @transform_2(%arg0: i32) -> (i32, i32) {
    %c0_i32 = arith.constant 0 : i32
    %c0_i32_0 = arith.constant 0 : i32
    %c0_i32_1 = arith.constant 0 : i32
    return %c0_i32, %c0_i32_0 : i32, i32
  }
  func.func @transform_3(%arg0: i32) -> (i32, i32) {
    %c0_i32 = arith.constant 0 : i32
    %c0_i32_0 = arith.constant 0 : i32
    %c0_i32_1 = arith.constant 0 : i32
    return %c0_i32, %c0_i32_0 : i32, i32
  }
  func.func @transform_4(%arg0: i32) -> (i32, i32) {
    %c0_i32 = arith.constant 0 : i32
    %c0_i32_0 = arith.constant 0 : i32
    %c0_i32_1 = arith.constant 0 : i32
    return %c0_i32, %c0_i32_0 : i32, i32
  }
  func.func @transform_5(%arg0: i32) -> (i32, i32) {
    %c0_i32 = arith.constant 0 : i32
    %c0_i32_0 = arith.constant 0 : i32
    return %arg0, %c0_i32 : i32, i32
  }
}

</mosaic_0001>

<llo_original>
// kernel: offset_diversity_forward.2
$region0: #{offset_diversity_forward.2}
  #allocation0 [shape = 'u32[]', space=smem, size = 0x4, offset = 0x4, fixed_abs, tag = 'smem constant byte address 0x4 - core index']
  #allocation1 [shape = 'u32[72,128]{1,0:T(1,128)}', space=vmem, size = 0x9000, scoped, tag = 'internal scratch']
  #allocation2 [shape = 'f32[10,10,64]{2,1,0:T(8,128)}', space=vmem, size = 0x14000, scoped, tag = 'scratch operand']
  #allocation3 [shape = 'f32[10,10,64]{2,1,0:T(8,128)}', space=vmem, size = 0x14000, scoped, tag = 'scratch operand']
  #allocation4 [shape = 'f32[8,8,96]{2,1,0:T(8,128)}', space=vmem, size = 0x8000, scoped, tag = 'scratch operand']
  %s0 = inlined_call_operand.vmem [shape: bf16[2,9,9,256], index: 0, kind: input, shape index: {}]
  %s1 = inlined_call_operand.vmem [shape: f32[2,16,16,2], index: 1, kind: input, shape index: {}]
  %s2 = inlined_call_operand.vmem [shape: f32[9,64,64], index: 2, kind: input, shape index: {}]
  %s3 = inlined_call_operand.hbm [shape: f32[1,64], index: 3, kind: input, shape index: {}]
  %s4 = inlined_call_operand.hbm [shape: f32[9,64,64], index: 4, kind: input, shape index: {}]
  %s5 = inlined_call_operand.hbm [shape: f32[1,64], index: 5, kind: input, shape index: {}]
  %s6 = inlined_call_operand.hbm [shape: f32[9,64,96], index: 6, kind: input, shape index: {}]
  %s7 = inlined_call_operand.hbm [shape: f32[1,96], index: 7, kind: input, shape index: {}]
  %s8 = inlined_call_operand.vmem [shape: f32[16,8], index: 8, kind: input, shape index: {}]
  %s9 = inlined_call_operand.vmem [shape: f32[2,16,16,64], index: 9, kind: output, shape index: {0}]
  %s10 = inlined_call_operand.vmem [shape: bf16[2,16,16,32], index: 10, kind: output, shape index: {1}]
  %11 = xla_tuple %s9, %s10
  %s12 = sld [smem:[#allocation0]]
  $region125: #{offset_diversity_forward.2} parent=0
    _
  %s14 = ssub.s32 1, %s12
  %s15 = scalar_select 0, %s14, %s12
  $region1: #{offset_diversity_forward.2} parent=0
    #allocation5 [shape = 'u8[512]{0}', space=vmem, size = 0x400, scoped, tag = 'input window, operand 3, single buffered']
    #allocation6 [shape = 's32[2]{0}', space=sflag, size = 0x8, scoped, tag = 'scoped memory for offset_diversity_forward.2']
    #allocation7 [shape = 'u8[294912]{0}', space=vmem, size = 0x48000, scoped, tag = 'input window, operand 4, single buffered']
    #allocation8 [shape = 's32[1]{0}', space=sflag, size = 0x4, scoped, tag = 'scoped memory for offset_diversity_forward.2']
    #allocation9 [shape = 'u8[512]{0}', space=vmem, size = 0x400, scoped, tag = 'input window, operand 5, single buffered']
    #allocation10 [shape = 'u8[294912]{0}', space=vmem, size = 0x48000, scoped, tag = 'input window, operand 6, single buffered']
    #allocation11 [shape = 's32[1]{0}', space=sflag, size = 0x4, scoped, tag = 'scoped memory for offset_diversity_forward.2']
    #allocation12 [shape = 'u8[512]{0}', space=vmem, size = 0x400, scoped, tag = 'input window, operand 7, single buffered']
    %16 = vsyncpa [#allocation6], 0
    %17 = vsyncpa [#allocation8], 0
    %18 = vsyncpa [#allocation11], 0
    loop: start=0, step=1, limit=4
    $region2: #{offset_diversity_forward.2} parent=1 // loop_pre_header
      _
    $region3: #{offset_diversity_forward.2} parent=1 // loop_header
      %s20 = sphi 0, %s24
      %p21 = scmp.ge.s32.totalorder %s20, 4
      %s30 = sphi 0, %s32
      %s33 = sphi 0, %s30
      %s34 = sphi 0, %s33
      %s50 = sphi 0, %s34
      %s56 = sphi 0, %s58
      %s59 = sphi 0, %s56
      %s60 = sphi 0, %s59
      %s76 = sphi 0, %s60
      %s80 = sphi 0, %s80
      %s82 = sphi 0, %s80
      %s83 = sphi 0, %s82
      %s97 = sphi 0, %s83
      %s101 = sphi 0, %s101
      %s103 = sphi 0, %s101
      %s104 = sphi 0, %s103
      %s118 = sphi 0, %s104
      %s122 = sphi 0, %s122
      %s124 = sphi 0, %s122
      %s125 = sphi 0, %s124
      %s139 = sphi 0, %s125
      %s143 = sphi 0, %s143
      %s145 = sphi 0, %s143
      %s146 = sphi 0, %s145
      %s160 = sphi 0, %s146
      %s164 = sphi 0, %s164
      %s166 = sphi 0, %s164
      %s167 = sphi 0, %s166
      %s181 = sphi 0, %s167
      %s185 = sphi 0, %s185
      %s187 = sphi 0, %s185
      %s188 = sphi 0, %s187
      %s202 = sphi 0, %s188
      %s206 = sphi 0, %s206
      %s208 = sphi 0, %s206
      %s209 = sphi 0, %s208
      %s223 = sphi 0, %s209
      %s229 = sphi 0, %s231
      %s232 = sphi 0, %s229
      %s233 = sphi 0, %s232
      %s249 = sphi 0, %s233
      %s255 = sphi 0, %s257
      %s258 = sphi 0, %s255
      %s259 = sphi 0, %s258
      %s275 = sphi 0, %s259
    $region4: #{offset_diversity_forward.2} parent=1 // loop_header_branch
      %23 = sbr.rel (%p21) target = $region8
    $region5: #{offset_diversity_forward.2} parent=1 // loop_body
      %s25 = ssub.s32 %s20, 1
      %s26 = ssub.s32 %s20, 2
      %s27 = sadd.s32 %s20, 1
      %s28 = ssub.s32 %s20, %s27
      %p29 = scmp.eq.s32.totalorder %s28, 0
      %s31 = sadd.s32 %s30, 1
      %s32 = scalar_select %p29, %s30, %s31
      %p35 = pneg %p29
      %p36 = scmp.eq.s32.totalorder %s20, 1
      %p37 = por %p35, %p36
      %p38 = scmp.ne.s32.totalorder %s30, %s33
      %p39 = scmp.eq.s32.totalorder %s20, 0
      %p40 = por %p38, %p39
      %p41 = scmp.ne.s32.totalorder %s30, %s33
      %p42 = scmp.eq.s32.totalorder %s25, 1
      %p43 = por %p41, %p42
      %p44 = scmp.ne.s32.totalorder %s33, %s34
      %p45 = scmp.eq.s32.totalorder %s25, 0
      %p46 = por %p44, %p45
      %p47 = scmp.ne.s32.totalorder %s33, %s34
      %p48 = scmp.eq.s32.totalorder %s26, 1
      %p49 = por %p47, %p48
      %p51 = scmp.ne.s32.totalorder %s34, %s50
      %p52 = scmp.eq.s32.totalorder %s26, 0
      %p53 = por %p51, %p52
      %s54 = ssub.s32 %s20, %s27
      %p55 = scmp.eq.s32.totalorder %s54, 0
      %s57 = sadd.s32 %s56, 1
      %s58 = scalar_select %p55, %s56, %s57
      %p61 = pneg %p55
      %p62 = scmp.eq.s32.totalorder %s20, 1
      %p63 = por %p61, %p62
      %p64 = scmp.ne.s32.totalorder %s56, %s59
      %p65 = scmp.eq.s32.totalorder %s20, 0
      %p66 = por %p64, %p65
      %p67 = scmp.ne.s32.totalorder %s56, %s59
      %p68 = scmp.eq.s32.totalorder %s25, 1
      %p69 = por %p67, %p68
      %p70 = scmp.ne.s32.totalorder %s59, %s60
      %p71 = scmp.eq.s32.totalorder %s25, 0
      %p72 = por %p70, %p71
      %p73 = scmp.ne.s32.totalorder %s59, %s60
      %p74 = scmp.eq.s32.totalorder %s26, 1
      %p75 = por %p73, %p74
      %p77 = scmp.ne.s32.totalorder %s60, %s76
      %p78 = scmp.eq.s32.totalorder %s26, 0
      %p79 = por %p77, %p78
      %s81 = sadd.s32 %s80, 1
      %p84 = scmp.eq.s32.totalorder %s20, 1
      %p85 = scmp.ne.s32.totalorder %s80, %s82
      %p86 = scmp.eq.s32.totalorder %s20, 0
      %p87 = por %p85, %p86
      %p88 = scmp.ne.s32.totalorder %s80, %s82
      %p89 = scmp.eq.s32.totalorder %s25, 1
      %p90 = por %p88, %p89
      %p91 = scmp.ne.s32.totalorder %s82, %s83
      %p92 = scmp.eq.s32.totalorder %s25, 0
      %p93 = por %p91, %p92
      %p94 = scmp.ne.s32.totalorder %s82, %s83
      %p95 = scmp.eq.s32.totalorder %s26, 1
      %p96 = por %p94, %p95
      %p98 = scmp.ne.s32.totalorder %s83, %s97
      %p99 = scmp.eq.s32.totalorder %s26, 0
      %p100 = por %p98, %p99
      %s102 = sadd.s32 %s101, 1
      %p105 = scmp.eq.s32.totalorder %s20, 1
      %p106 = scmp.ne.s32.totalorder %s101, %s103
      %p107 = scmp.eq.s32.totalorder %s20, 0
      %p108 = por %p106, %p107
      %p109 = scmp.ne.s32.totalorder %s101, %s103
      %p110 = scmp.eq.s32.totalorder %s25, 1
      %p111 = por %p109, %p110
      %p112 = scmp.ne.s32.totalorder %s103, %s104
      %p113 = scmp.eq.s32.totalorder %s25, 0
      %p114 = por %p112, %p113
      %p115 = scmp.ne.s32.totalorder %s103, %s104
      %p116 = scmp.eq.s32.totalorder %s26, 1
      %p117 = por %p115, %p116
      %p119 = scmp.ne.s32.totalorder %s104, %s118
      %p120 = scmp.eq.s32.totalorder %s26, 0
      %p121 = por %p119, %p120
      %s123 = sadd.s32 %s122, 1
      %p126 = scmp.eq.s32.totalorder %s20, 1
      %p127 = scmp.ne.s32.totalorder %s122, %s124
      %p128 = scmp.eq.s32.totalorder %s20, 0
      %p129 = por %p127, %p128
      %p130 = scmp.ne.s32.totalorder %s122, %s124
      %p131 = scmp.eq.s32.totalorder %s25, 1
      %p132 = por %p130, %p131
      %p133 = scmp.ne.s32.totalorder %s124, %s125
      %p134 = scmp.eq.s32.totalorder %s25, 0
      %p135 = por %p133, %p134
      %p136 = scmp.ne.s32.totalorder %s124, %s125
      %p137 = scmp.eq.s32.totalorder %s26, 1
      %p138 = por %p136, %p137
      %p140 = scmp.ne.s32.totalorder %s125, %s139
      %p141 = scmp.eq.s32.totalorder %s26, 0
      %p142 = por %p140, %p141
      %s144 = sadd.s32 %s143, 1
      %p147 = scmp.eq.s32.totalorder %s20, 1
      %p148 = scmp.ne.s32.totalorder %s143, %s145
      %p149 = scmp.eq.s32.totalorder %s20, 0
      %p150 = por %p148, %p149
      %p151 = scmp.ne.s32.totalorder %s143, %s145
      %p152 = scmp.eq.s32.totalorder %s25, 1
      %p153 = por %p151, %p152
      %p154 = scmp.ne.s32.totalorder %s145, %s146
      %p155 = scmp.eq.s32.totalorder %s25, 0
      %p156 = por %p154, %p155
      %p157 = scmp.ne.s32.totalorder %s145, %s146
      %p158 = scmp.eq.s32.totalorder %s26, 1
      %p159 = por %p157, %p158
      %p161 = scmp.ne.s32.totalorder %s146, %s160
      %p162 = scmp.eq.s32.totalorder %s26, 0
      %p163 = por %p161, %p162
      %s165 = sadd.s32 %s164, 1
      %p168 = scmp.eq.s32.totalorder %s20, 1
      %p169 = scmp.ne.s32.totalorder %s164, %s166
      %p170 = scmp.eq.s32.totalorder %s20, 0
      %p171 = por %p169, %p170
      %p172 = scmp.ne.s32.totalorder %s164, %s166
      %p173 = scmp.eq.s32.totalorder %s25, 1
      %p174 = por %p172, %p173
      %p175 = scmp.ne.s32.totalorder %s166, %s167
      %p176 = scmp.eq.s32.totalorder %s25, 0
      %p177 = por %p175, %p176
      %p178 = scmp.ne.s32.totalorder %s166, %s167
      %p179 = scmp.eq.s32.totalorder %s26, 1
      %p180 = por %p178, %p179
      %p182 = scmp.ne.s32.totalorder %s167, %s181
      %p183 = scmp.eq.s32.totalorder %s26, 0
      %p184 = por %p182, %p183
      %s186 = sadd.s32 %s185, 1
      %p189 = scmp.eq.s32.totalorder %s20, 1
      %p190 = scmp.ne.s32.totalorder %s185, %s187
      %p191 = scmp.eq.s32.totalorder %s20, 0
      %p192 = por %p190, %p191
      %p193 = scmp.ne.s32.totalorder %s185, %s187
      %p194 = scmp.eq.s32.totalorder %s25, 1
      %p195 = por %p193, %p194
      %p196 = scmp.ne.s32.totalorder %s187, %s188
      %p197 = scmp.eq.s32.totalorder %s25, 0
      %p198 = por %p196, %p197
      %p199 = scmp.ne.s32.totalorder %s187, %s188
      %p200 = scmp.eq.s32.totalorder %s26, 1
      %p201 = por %p199, %p200
      %p203 = scmp.ne.s32.totalorder %s188, %s202
      %p204 = scmp.eq.s32.totalorder %s26, 0
      %p205 = por %p203, %p204
      %s207 = sadd.s32 %s206, 1
      %p210 = scmp.eq.s32.totalorder %s20, 1
      %p211 = scmp.ne.s32.totalorder %s206, %s208
      %p212 = scmp.eq.s32.totalorder %s20, 0
      %p213 = por %p211, %p212
      %p214 = scmp.ne.s32.totalorder %s206, %s208
      %p215 = scmp.eq.s32.totalorder %s25, 1
      %p216 = por %p214, %p215
      %p217 = scmp.ne.s32.totalorder %s208, %s209
      %p218 = scmp.eq.s32.totalorder %s25, 0
      %p219 = por %p217, %p218
      %p220 = scmp.ne.s32.totalorder %s208, %s209
      %p221 = scmp.eq.s32.totalorder %s26, 1
      %p222 = por %p220, %p221
      %p224 = scmp.ne.s32.totalorder %s209, %s223
      %p225 = scmp.eq.s32.totalorder %s26, 0
      %p226 = por %p224, %p225
      %s227 = ssub.s32 %s20, %s27
      %p228 = scmp.eq.s32.totalorder %s227, 0
      %s230 = sadd.s32 %s229, 1
      %s231 = scalar_select %p228, %s229, %s230
      %p234 = pneg %p228
      %p235 = scmp.eq.s32.totalorder %s20, 1
      %p236 = por %p234, %p235
      %p237 = scmp.ne.s32.totalorder %s229, %s232
      %p238 = scmp.eq.s32.totalorder %s20, 0
      %p239 = por %p237, %p238
      %p240 = scmp.ne.s32.totalorder %s229, %s232
      %p241 = scmp.eq.s32.totalorder %s25, 1
      %p242 = por %p240, %p241
      %p243 = scmp.ne.s32.totalorder %s232, %s233
      %p244 = scmp.eq.s32.totalorder %s25, 0
      %p245 = por %p243, %p244
      %p246 = scmp.ne.s32.totalorder %s232, %s233
      %p247 = scmp.eq.s32.totalorder %s26, 1
      %p248 = por %p246, %p247
      %p250 = scmp.ne.s32.totalorder %s233, %s249
      %p251 = scmp.eq.s32.totalorder %s26, 0
      %p252 = por %p250, %p251
      %s253 = ssub.s32 %s20, %s27
      %p254 = scmp.eq.s32.totalorder %s253, 0
      %s256 = sadd.s32 %s255, 1
      %s257 = scalar_select %p254, %s255, %s256
      %p260 = pneg %p254
      %p261 = scmp.eq.s32.totalorder %s20, 1
      %p262 = por %p260, %p261
      %p263 = scmp.ne.s32.totalorder %s255, %s258
      %p264 = scmp.eq.s32.totalorder %s20, 0
      %p265 = por %p263, %p264
      %p266 = scmp.ne.s32.totalorder %s255, %s258
      %p267 = scmp.eq.s32.totalorder %s25, 1
      %p268 = por %p266, %p267
      %p269 = scmp.ne.s32.totalorder %s258, %s259
      %p270 = scmp.eq.s32.totalorder %s25, 0
      %p271 = por %p269, %p270
      %p272 = scmp.ne.s32.totalorder %s258, %s259
      %p273 = scmp.eq.s32.totalorder %s26, 1
      %p274 = por %p272, %p273
      %p276 = scmp.ne.s32.totalorder %s259, %s275
      %p277 = scmp.eq.s32.totalorder %s26, 0
      %p278 = por %p276, %p277
      %p279 = scmp.le.s32.totalorder 1, %s20
      %p280 = scmp.lt.s32.totalorder %s20, 3
      %p281 = pnand %p279, %p280
      %p282 = pneg %p281
      // Predicated region
      $region9: #{offset_diversity_forward.2} parent=5 // pred_check
        _
      $region10: #{offset_diversity_forward.2} parent=5 // pred_check_branch
        %284 = sbr.rel (%p281) target = $region12
      $region11: #{offset_diversity_forward.2} parent=5 // pred_region
        %s285 = ssub.s32 %s20, 1
        // Predicated region
        $region13: #{offset_diversity_forward.2} parent=11 // pred_check
          %p286 = pneg %p93
        $region14: #{offset_diversity_forward.2} parent=11 // pred_check_branch
          %288 = sbr.rel (%p286) target = $region16
        $region15: #{offset_diversity_forward.2} parent=11 // pred_region
          _
        $region16: #{offset_diversity_forward.2} parent=11 // pred_fallthru
          _
        // Predicated region
        $region17: #{offset_diversity_forward.2} parent=11 // pred_check
          %p289 = pneg %p114
        $region18: #{offset_diversity_forward.2} parent=11 // pred_check_branch
          %291 = sbr.rel (%p289) target = $region20
        $region19: #{offset_diversity_forward.2} parent=11 // pred_region
          %293 = vsyncadd [#allocation6], 0
          %s295 = sshll.u32 %s3, 4
          %s296 = int_to_ptr.hbm [resolvable:$true] %s295
          %s297 = sshll.u32 [#allocation5], 4
          %s298 = int_to_ptr.vmem [resolvable:$true] %s297
          %300 = dma.hbm_to_vmem [thread:$0]  %s296, 16, %s298, [#allocation6]
        $region20: #{offset_diversity_forward.2} parent=11 // pred_fallthru
          _
        // Predicated region
        $region21: #{offset_diversity_forward.2} parent=11 // pred_check
          %p301 = pneg %p135
        $region22: #{offset_diversity_forward.2} parent=11 // pred_check_branch
          %303 = sbr.rel (%p301) target = $region24
        $region23: #{offset_diversity_forward.2} parent=11 // pred_region
          %305 = vsyncadd [#allocation8], 0
          %s306 = sshll.u32 %s4, 4
          %s307 = int_to_ptr.hbm [resolvable:$true] %s306
          %s308 = sshll.u32 [#allocation7], 4
          %s309 = int_to_ptr.vmem [resolvable:$true] %s308
          %314 = dma.hbm_to_vmem [thread:$0]  %s307, 9216, %s309, [#allocation8], 128, 128, 8
        $region24: #{offset_diversity_forward.2} parent=11 // pred_fallthru
          _
        // Predicated region
        $region25: #{offset_diversity_forward.2} parent=11 // pred_check
          %p315 = pneg %p156
        $region26: #{offset_diversity_forward.2} parent=11 // pred_check_branch
          %317 = sbr.rel (%p315) target = $region28
        $region27: #{offset_diversity_forward.2} parent=11 // pred_region
          %319 = vsyncadd [#allocation8], 0
          %s321 = sshll.u32 %s5, 4
          %s322 = int_to_ptr.hbm [resolvable:$true] %s321
          %s323 = sshll.u32 [#allocation9], 4
          %s324 = int_to_ptr.vmem [resolvable:$true] %s323
          %326 = dma.hbm_to_vmem [thread:$0]  %s322, 16, %s324, [#allocation8]
        $region28: #{offset_diversity_forward.2} parent=11 // pred_fallthru
          _
        // Predicated region
        $region29: #{offset_diversity_forward.2} parent=11 // pred_check
          %p327 = pneg %p177
        $region30: #{offset_diversity_forward.2} parent=11 // pred_check_branch
          %329 = sbr.rel (%p327) target = $region32
        $region31: #{offset_diversity_forward.2} parent=11 // pred_region
          %331 = vsyncadd [#allocation11], 0
          %s332 = sshll.u32 %s6, 4
          %s333 = int_to_ptr.hbm [resolvable:$true] %s332
          %s334 = sshll.u32 [#allocation10], 4
          %s335 = int_to_ptr.vmem [resolvable:$true] %s334
          %340 = dma.hbm_to_vmem [thread:$0]  %s333, 9216, %s335, [#allocation11], 128, 128, 8
        $region32: #{offset_diversity_forward.2} parent=11 // pred_fallthru
          _
        // Predicated region
        $region33: #{offset_diversity_forward.2} parent=11 // pred_check
          %p341 = pneg %p198
        $region34: #{offset_diversity_forward.2} parent=11 // pred_check_branch
          %343 = sbr.rel (%p341) target = $region36
        $region35: #{offset_diversity_forward.2} parent=11 // pred_region
          %345 = vsyncadd [#allocation11], 0
          %s347 = sshll.u32 %s7, 4
          %s348 = int_to_ptr.hbm [resolvable:$true] %s347
          %s349 = sshll.u32 [#allocation12], 4
          %s350 = int_to_ptr.vmem [resolvable:$true] %s349
          %352 = dma.hbm_to_vmem [thread:$0]  %s348, 16, %s350, [#allocation11]
        $region36: #{offset_diversity_forward.2} parent=11 // pred_fallthru
          _
        // Predicated region
        $region37: #{offset_diversity_forward.2} parent=11 // pred_check
          %p353 = pneg %p219
        $region38: #{offset_diversity_forward.2} parent=11 // pred_check_branch
          %355 = sbr.rel (%p353) target = $region40
        $region39: #{offset_diversity_forward.2} parent=11 // pred_region
          _
        $region40: #{offset_diversity_forward.2} parent=11 // pred_fallthru
          _
      $region12: #{offset_diversity_forward.2} parent=5 // pred_fallthru
        _
      %p356 = scmp.lt.s32.totalorder %s20, 2
      // Predicated region
      $region41: #{offset_diversity_forward.2} parent=5 // pred_check
        %p357 = pneg %p356
      $region42: #{offset_diversity_forward.2} parent=5 // pred_check_branch
        %359 = sbr.rel (%p357) target = $region44
      $region43: #{offset_diversity_forward.2} parent=5 // pred_region
        // Predicated region
        $region45: #{offset_diversity_forward.2} parent=43 // pred_check
          %p360 = pneg %p40
        $region46: #{offset_diversity_forward.2} parent=43 // pred_check_branch
          %362 = sbr.rel (%p360) target = $region48
        $region47: #{offset_diversity_forward.2} parent=43 // pred_region
          %p363 = scmp.lt.s32.totalorder %s20, 1
          %s364 = scalar_select %p363, %s20, 1
          %s365 = smul.addr %s364, 36
          %s366 = smul.addr %s365, 4
          %s367 = scalar_lea.vmem %s0, %s366
        $region48: #{offset_diversity_forward.2} parent=43 // pred_fallthru
          _
        // Predicated region
        $region49: #{offset_diversity_forward.2} parent=43 // pred_check
          %p368 = pneg %p66
        $region50: #{offset_diversity_forward.2} parent=43 // pred_check_branch
          %370 = sbr.rel (%p368) target = $region52
        $region51: #{offset_diversity_forward.2} parent=43 // pred_region
          %p371 = scmp.lt.s32.totalorder %s20, 1
          %s372 = scalar_select %p371, %s20, 1
          %s373 = smul.addr %s372, 32
          %s374 = smul.addr %s373, 8
          %s375 = scalar_lea.vmem %s1, %s374
        $region52: #{offset_diversity_forward.2} parent=43 // pred_fallthru
          _
      $region44: #{offset_diversity_forward.2} parent=5 // pred_fallthru
        _
      %p376 = scmp.le.s32.totalorder 1, %s20
      %p377 = scmp.lt.s32.totalorder %s20, 3
      %p378 = pnand %p376, %p377
      %p379 = pneg %p378
      // Predicated region
      $region53: #{offset_diversity_forward.2} parent=5 // pred_check
        _
      $region54: #{offset_diversity_forward.2} parent=5 // pred_check_branch
        %381 = sbr.rel (%p378) target = $region56
      $region55: #{offset_diversity_forward.2} parent=5 // pred_region
        %s382 = ssub.s32 %s20, 1
        // Predicated region
        $region57: #{offset_diversity_forward.2} parent=55 // pred_check
          %p383 = pneg %p114
        $region58: #{offset_diversity_forward.2} parent=55 // pred_check_branch
          %385 = sbr.rel (%p383) target = $region60
        $region59: #{offset_diversity_forward.2} parent=55 // pred_region
          %387 = dma.done [#allocation6], 16
        $region60: #{offset_diversity_forward.2} parent=55 // pred_fallthru
          _
        // Predicated region
        $region61: #{offset_diversity_forward.2} parent=55 // pred_check
          %p388 = pneg %p135
        $region62: #{offset_diversity_forward.2} parent=55 // pred_check_branch
          %390 = sbr.rel (%p388) target = $region64
        $region63: #{offset_diversity_forward.2} parent=55 // pred_region
          %392 = dma.done [#allocation8], 9216
        $region64: #{offset_diversity_forward.2} parent=55 // pred_fallthru
          _
        // Predicated region
        $region65: #{offset_diversity_forward.2} parent=55 // pred_check
          %p393 = pneg %p156
        $region66: #{offset_diversity_forward.2} parent=55 // pred_check_branch
          %395 = sbr.rel (%p393) target = $region68
        $region67: #{offset_diversity_forward.2} parent=55 // pred_region
          %397 = dma.done [#allocation8], 16
        $region68: #{offset_diversity_forward.2} parent=55 // pred_fallthru
          _
        // Predicated region
        $region69: #{offset_diversity_forward.2} parent=55 // pred_check
          %p398 = pneg %p177
        $region70: #{offset_diversity_forward.2} parent=55 // pred_check_branch
          %400 = sbr.rel (%p398) target = $region72
        $region71: #{offset_diversity_forward.2} parent=55 // pred_region
          %402 = dma.done [#allocation11], 9216
        $region72: #{offset_diversity_forward.2} parent=55 // pred_fallthru
          _
        // Predicated region
        $region73: #{offset_diversity_forward.2} parent=55 // pred_check
          %p403 = pneg %p198
        $region74: #{offset_diversity_forward.2} parent=55 // pred_check_branch
          %405 = sbr.rel (%p403) target = $region76
        $region75: #{offset_diversity_forward.2} parent=55 // pred_region
          %407 = dma.done [#allocation11], 16
        $region76: #{offset_diversity_forward.2} parent=55 // pred_fallthru
          _
        %p408 = scmp.lt.s32.totalorder %s25, 1
        %s409 = scalar_select %p408, %s25, 1
        %s410 = smul.addr %s409, 36
        %s411 = smul.addr %s410, 4
        %s412 = scalar_lea.vmem %s0, %s411
        %p413 = pneg %p46
        %p414 = pneg %p43
        %p415 = scmp.lt.s32.totalorder %s25, 1
        %s416 = scalar_select %p415, %s25, 1
        %s417 = smul.addr %s416, 32
        %s418 = smul.addr %s417, 8
        %s419 = scalar_lea.vmem %s1, %s418
        %p420 = pneg %p72
        %p421 = pneg %p69
        %p422 = pneg %p93
        %p423 = pneg %p90
        %p424 = pneg %p114
        %p425 = pneg %p111
        %p426 = pneg %p135
        %p427 = pneg %p132
        %p428 = pneg %p156
        %p429 = pneg %p153
        %p430 = pneg %p177
        %p431 = pneg %p174
        %p432 = pneg %p198
        %p433 = pneg %p195
        %p434 = pneg %p219
        %p435 = pneg %p216
        %p436 = pneg %p245
        %p437 = pneg %p242
        %p438 = scmp.lt.s32.totalorder %s25, 1
        %s439 = scalar_select %p438, %s25, 1
        %s440 = smul.addr %s439, 32
        %s441 = smul.addr %s440, 8
        %s442 = scalar_lea.vmem %s9, %s441
        %p443 = pneg %p271
        %p444 = pneg %p268
        %p445 = scmp.lt.s32.totalorder %s25, 1
        %s446 = scalar_select %p445, %s25, 1
        %s447 = smul.addr %s446, 32
        %s448 = smul.addr %s447, 4
        %s449 = scalar_lea.vmem %s10, %s448
        %p450 = scmp.lt.s32.totalorder %s25, 1
        %s451 = scalar_select %p450, %s25, 1
        %s452 = smul.addr %s451, 36
        %s453 = smul.addr %s452, 4
        %s454 = scalar_lea.vmem %s0, %s453
        %p455 = scmp.lt.s32.totalorder %s25, 1
        %s456 = scalar_select %p455, %s25, 1
        %s457 = smul.addr %s456, 32
        %s458 = smul.addr %s457, 8
        %s459 = scalar_lea.vmem %s1, %s458
        %p460 = scmp.lt.s32.totalorder %s25, 1
        %s461 = scalar_select %p460, %s25, 1
        %s462 = smul.addr %s461, 32
        %s463 = smul.addr %s462, 8
        %s464 = scalar_lea.vmem %s9, %s463
        %p465 = scmp.lt.s32.totalorder %s25, 1
        %s466 = scalar_select %p465, %s25, 1
        %s467 = smul.addr %s466, 32
        %s468 = smul.addr %s467, 4
        %s469 = scalar_lea.vmem %s10, %s468
        %vm470 = vcmask 523264
        %471 = vst.msk [vmem:[#allocation2] sm:$0xff] %vm470, 0.0
        %vm472 = vcmask 517120
        %473 = vst.msk [vmem:[#allocation2 + $0x8] sm:$0x3] %vm472, 0.0
        %s474 = scalar_lea.vmem [#allocation2], 144
        %475 = vst.msk [vmem:[%s474] sm:$0xff] %vm470, 0.0
        %476 = vst.msk [vmem:[%s474 + $0x8] sm:$0x3] %vm472, 0.0
        %477 = vst.msk [vmem:[#allocation3] sm:$0xff] %vm470, 0.0
        %478 = vst.msk [vmem:[#allocation3 + $0x8] sm:$0x3] %vm472, 0.0
        %s479 = scalar_lea.vmem [#allocation3], 144
        %480 = vst.msk [vmem:[%s479] sm:$0xff] %vm470, 0.0
        %481 = vst.msk [vmem:[%s479 + $0x8] sm:$0x3] %vm472, 0.0
        loop: start=0, step=1, limit=8
        $region77: #{offset_diversity_forward.2} parent=55 // loop_pre_header
          _
        $region78: #{offset_diversity_forward.2} parent=55 // loop_header
          %s483 = sphi 0, %s487
          %p484 = scmp.ge.s32.totalorder %s483, 8
        $region79: #{offset_diversity_forward.2} parent=55 // loop_header_branch
          %486 = sbr.rel (%p484) target = $region83
        $region80: #{offset_diversity_forward.2} parent=55 // loop_body
          %v488 = vld [vmem:[#allocation5] sm:$0x1]
          %v490 = vperm.slane %v488, 0
          %v492 = vadd.f32 %v490, 0.0
          %s493 = smul.u32 %s483, 4
          %s494 = smul.addr %s493, 4
          %s495 = scalar_lea.vmem %s454, %s494
          %v496 = vld [vmem:[%s495] sm:$0xff]
          %v497 = vld [vmem:[%s495 + $0x8] sm:$0x11]
          %v498 = vunpack.c.h.bf16 %v496
          %v499 = vunpack.c.h.bf16 %v497
          %v500 = vld [vmem:[%s2] sm:$0xff]
          %v501 = vld [vmem:[%s2 + $0x8] sm:$0xff]
          %v502 = vld [vmem:[%s2 + $0x10] sm:$0xff]
          %v503 = vld [vmem:[%s2 + $0x18] sm:$0xff]
          %v504 = vld [vmem:[%s2 + $0x20] sm:$0xff]
          %v505 = vld [vmem:[%s2 + $0x28] sm:$0xff]
          %v506 = vld [vmem:[%s2 + $0x30] sm:$0xff]
          %v507 = vld [vmem:[%s2 + $0x38] sm:$0xff]
          %509 = vrot.lane.b32.xlu0 %v498, 64
          %v510 = vpop.permute.xlu0 %509
          %v511 = vsel %vm470, %v510, 0
          %513 = vmatpush.msra.mxu0 0.0
          %514 = vmatpush.msra.mxu0 0.0
          %515 = vmatpush.msra.mxu0 0.0
          %516 = vmatpush.msra.mxu0 0.0
          %517 = vmatpush.msra.mxu0 0.0
          %518 = vmatpush.msra.mxu0 0.0
          %519 = vmatpush.msra.mxu0 0.0
          %520 = vmatpush.msra.mxu0 0.0
          %521 = vmatpush.msra.mxu0 %v507
          %522 = vmatpush.msra.mxu0 %v506
          %523 = vmatpush.msra.mxu0 %v505
          %524 = vmatpush.msra.mxu0 %v504
          %525 = vmatpush.msra.mxu0 %v503
          %526 = vmatpush.msra.mxu0 %v502
          %527 = vmatpush.msra.mxu0 %v501
          %528 = vmatpush.msra.mxu0 %v500
          %529 = vmatmul.f32.gmra.mxu0 %v511
          %v530 = vpop.f32.mrf.mxu0
          %v531 = vadd.f32 0.0, %v530
          %532 = vdwg.mxu0
          %v533 = vadd.f32 %v492, %v531
          %s534 = scalar_lea.vmem %s2, 64
          %v535 = vld [vmem:[%s534] sm:$0xff]
          %v536 = vld [vmem:[%s534 + $0x8] sm:$0xff]
          %v537 = vld [vmem:[%s534 + $0x10] sm:$0xff]
          %v538 = vld [vmem:[%s534 + $0x18] sm:$0xff]
          %v539 = vld [vmem:[%s534 + $0x20] sm:$0xff]
          %v540 = vld [vmem:[%s534 + $0x28] sm:$0xff]
          %v541 = vld [vmem:[%s534 + $0x30] sm:$0xff]
          %v542 = vld [vmem:[%s534 + $0x38] sm:$0xff]
          %vm544 = vcmask 1046528
          %v545 = vrot.slane %v498, 1
          %v546 = vrot.slane %v499, 1
          %v547 = vsel %vm544, %v545, %v546
          %v548 = vsel %vm470, %v547, 0
          %550 = vmatpush.msra.mxu0 0.0
          %551 = vmatpush.msra.mxu0 0.0
          %552 = vmatpush.msra.mxu0 0.0
          %553 = vmatpush.msra.mxu0 0.0
          %554 = vmatpush.msra.mxu0 0.0
          %555 = vmatpush.msra.mxu0 0.0
          %556 = vmatpush.msra.mxu0 0.0
          %557 = vmatpush.msra.mxu0 0.0
          %558 = vmatpush.msra.mxu0 %v542
          %559 = vmatpush.msra.mxu0 %v541
          %560 = vmatpush.msra.mxu0 %v540
          %561 = vmatpush.msra.mxu0 %v539
          %562 = vmatpush.msra.mxu0 %v538
          %563 = vmatpush.msra.mxu0 %v537
          %564 = vmatpush.msra.mxu0 %v536
          %565 = vmatpush.msra.mxu0 %v535
          %566 = vmatmul.f32.gmra.mxu0 %v548
          %v567 = vpop.f32.mrf.mxu0
          %v568 = vadd.f32 0.0, %v567
          %569 = vdwg.mxu0
          %v570 = vadd.f32 %v533, %v568
          %s571 = scalar_lea.vmem %s2, 128
          %v572 = vld [vmem:[%s571] sm:$0xff]
          %v573 = vld [vmem:[%s571 + $0x8] sm:$0xff]
          %v574 = vld [vmem:[%s571 + $0x10] sm:$0xff]
          %v575 = vld [vmem:[%s571 + $0x18] sm:$0xff]
          %v576 = vld [vmem:[%s571 + $0x20] sm:$0xff]
          %v577 = vld [vmem:[%s571 + $0x28] sm:$0xff]
          %v578 = vld [vmem:[%s571 + $0x30] sm:$0xff]
          %v579 = vld [vmem:[%s571 + $0x38] sm:$0xff]
          %580 = vrot.lane.b32.xlu0 %v547, 64
          %v581 = vpop.permute.xlu0 %580
          %v582 = vsel %vm470, %v581, 0
          %584 = vmatpush.msra.mxu0 0.0
          %585 = vmatpush.msra.mxu0 0.0
          %586 = vmatpush.msra.mxu0 0.0
          %587 = vmatpush.msra.mxu0 0.0
          %588 = vmatpush.msra.mxu0 0.0
          %589 = vmatpush.msra.mxu0 0.0
          %590 = vmatpush.msra.mxu0 0.0
          %591 = vmatpush.msra.mxu0 0.0
          %592 = vmatpush.msra.mxu0 %v579
          %593 = vmatpush.msra.mxu0 %v578
          %594 = vmatpush.msra.mxu0 %v577
          %595 = vmatpush.msra.mxu0 %v576
          %596 = vmatpush.msra.mxu0 %v575
          %597 = vmatpush.msra.mxu0 %v574
          %598 = vmatpush.msra.mxu0 %v573
          %599 = vmatpush.msra.mxu0 %v572
          %600 = vmatmul.f32.gmra.mxu0 %v582
          %v601 = vpop.f32.mrf.mxu0
          %v602 = vadd.f32 0.0, %v601
          %603 = vdwg.mxu0
          %v604 = vadd.f32 %v570, %v602
          %s605 = sadd.s32 %s483, 1
          %s606 = smul.u32 %s605, 4
          %s607 = smul.addr %s606, 4
          %s608 = scalar_lea.vmem %s454, %s607
          %v609 = vld [vmem:[%s608] sm:$0xff]
          %v610 = vld [vmem:[%s608 + $0x8] sm:$0x11]
          %v611 = vunpack.c.l.bf16 %v609
          %v612 = vunpack.c.h.bf16 %v609
          %v613 = vunpack.c.l.bf16 %v610
          %v614 = vunpack.c.h.bf16 %v610
          %s615 = scalar_lea.vmem %s2, 192
          %v616 = vld [vmem:[%s615] sm:$0xff]
          %v617 = vld [vmem:[%s615 + $0x8] sm:$0xff]
          %v618 = vld [vmem:[%s615 + $0x10] sm:$0xff]
          %v619 = vld [vmem:[%s615 + $0x18] sm:$0xff]
          %v620 = vld [vmem:[%s615 + $0x20] sm:$0xff]
          %v621 = vld [vmem:[%s615 + $0x28] sm:$0xff]
          %v622 = vld [vmem:[%s615 + $0x30] sm:$0xff]
          %v623 = vld [vmem:[%s615 + $0x38] sm:$0xff]
          %625 = vrot.lane.b32.xlu0 %v611, 64
          %v626 = vpop.permute.xlu0 %625
          %v627 = vsel %vm470, %v626, 0
          %629 = vmatpush.msra.mxu0 0.0
          %630 = vmatpush.msra.mxu0 0.0
          %631 = vmatpush.msra.mxu0 0.0
          %632 = vmatpush.msra.mxu0 0.0
          %633 = vmatpush.msra.mxu0 0.0
          %634 = vmatpush.msra.mxu0 0.0
          %635 = vmatpush.msra.mxu0 0.0
          %636 = vmatpush.msra.mxu0 0.0
          %637 = vmatpush.msra.mxu0 %v623
          %638 = vmatpush.msra.mxu0 %v622
          %639 = vmatpush.msra.mxu0 %v621
          %640 = vmatpush.msra.mxu0 %v620
          %641 = vmatpush.msra.mxu0 %v619
          %642 = vmatpush.msra.mxu0 %v618
          %643 = vmatpush.msra.mxu0 %v617
          %644 = vmatpush.msra.mxu0 %v616
          %645 = vmatmul.f32.gmra.mxu0 %v627
          %v646 = vpop.f32.mrf.mxu0
          %v647 = vadd.f32 0.0, %v646
          %648 = vdwg.mxu0
          %v649 = vadd.f32 %v604, %v647
          %s650 = scalar_lea.vmem %s2, 256
          %v651 = vld [vmem:[%s650] sm:$0xff]
          %v652 = vld [vmem:[%s650 + $0x8] sm:$0xff]
          %v653 = vld [vmem:[%s650 + $0x10] sm:$0xff]
          %v654 = vld [vmem:[%s650 + $0x18] sm:$0xff]
          %v655 = vld [vmem:[%s650 + $0x20] sm:$0xff]
          %v656 = vld [vmem:[%s650 + $0x28] sm:$0xff]
          %v657 = vld [vmem:[%s650 + $0x30] sm:$0xff]
          %v658 = vld [vmem:[%s650 + $0x38] sm:$0xff]
          %v660 = vrot.slane %v611, 1
          %v661 = vrot.slane %v613, 1
          %v662 = vsel %vm544, %v660, %v661
          %v663 = vsel %vm470, %v662, 0
          %665 = vmatpush.msra.mxu0 0.0
          %666 = vmatpush.msra.mxu0 0.0
          %667 = vmatpush.msra.mxu0 0.0
          %668 = vmatpush.msra.mxu0 0.0
          %669 = vmatpush.msra.mxu0 0.0
          %670 = vmatpush.msra.mxu0 0.0
          %671 = vmatpush.msra.mxu0 0.0
          %672 = vmatpush.msra.mxu0 0.0
          %673 = vmatpush.msra.mxu0 %v658
          %674 = vmatpush.msra.mxu0 %v657
          %675 = vmatpush.msra.mxu0 %v656
          %676 = vmatpush.msra.mxu0 %v655
          %677 = vmatpush.msra.mxu0 %v654
          %678 = vmatpush.msra.mxu0 %v653
          %679 = vmatpush.msra.mxu0 %v652
          %680 = vmatpush.msra.mxu0 %v651
          %681 = vmatmul.f32.gmra.mxu0 %v663
          %v682 = vpop.f32.mrf.mxu0
          %v683 = vadd.f32 0.0, %v682
          %684 = vdwg.mxu0
          %v685 = vadd.f32 %v649, %v683
          %s686 = scalar_lea.vmem %s2, 320
          %v687 = vld [vmem:[%s686] sm:$0xff]
          %v688 = vld [vmem:[%s686 + $0x8] sm:$0xff]
          %v689 = vld [vmem:[%s686 + $0x10] sm:$0xff]
          %v690 = vld [vmem:[%s686 + $0x18] sm:$0xff]
          %v691 = vld [vmem:[%s686 + $0x20] sm:$0xff]
          %v692 = vld [vmem:[%s686 + $0x28] sm:$0xff]
          %v693 = vld [vmem:[%s686 + $0x30] sm:$0xff]
          %v694 = vld [vmem:[%s686 + $0x38] sm:$0xff]
          %695 = vrot.lane.b32.xlu0 %v662, 64
          %v696 = vpop.permute.xlu0 %695
          %v697 = vsel %vm470, %v696, 0
          %699 = vmatpush.msra.mxu0 0.0
          %700 = vmatpush.msra.mxu0 0.0
          %701 = vmatpush.msra.mxu0 0.0
          %702 = vmatpush.msra.mxu0 0.0
          %703 = vmatpush.msra.mxu0 0.0
          %704 = vmatpush.msra.mxu0 0.0
          %705 = vmatpush.msra.mxu0 0.0
          %706 = vmatpush.msra.mxu0 0.0
          %707 = vmatpush.msra.mxu0 %v694
          %708 = vmatpush.msra.mxu0 %v693
          %709 = vmatpush.msra.mxu0 %v692
          %710 = vmatpush.msra.mxu0 %v691
          %711 = vmatpush.msra.mxu0 %v690
          %712 = vmatpush.msra.mxu0 %v689
          %713 = vmatpush.msra.mxu0 %v688
          %714 = vmatpush.msra.mxu0 %v687
          %715 = vmatmul.f32.gmra.mxu0 %v697
          %v716 = vpop.f32.mrf.mxu0
          %v717 = vadd.f32 0.0, %v716
          %718 = vdwg.mxu0
          %v719 = vadd.f32 %v685, %v717
          %s720 = scalar_lea.vmem %s2, 384
          %v721 = vld [vmem:[%s720] sm:$0xff]
          %v722 = vld [vmem:[%s720 + $0x8] sm:$0xff]
          %v723 = vld [vmem:[%s720 + $0x10] sm:$0xff]
          %v724 = vld [vmem:[%s720 + $0x18] sm:$0xff]
          %v725 = vld [vmem:[%s720 + $0x20] sm:$0xff]
          %v726 = vld [vmem:[%s720 + $0x28] sm:$0xff]
          %v727 = vld [vmem:[%s720 + $0x30] sm:$0xff]
          %v728 = vld [vmem:[%s720 + $0x38] sm:$0xff]
          %730 = vrot.lane.b32.xlu0 %v612, 64
          %v731 = vpop.permute.xlu0 %730
          %v732 = vsel %vm470, %v731, 0
          %734 = vmatpush.msra.mxu0 0.0
          %735 = vmatpush.msra.mxu0 0.0
          %736 = vmatpush.msra.mxu0 0.0
          %737 = vmatpush.msra.mxu0 0.0
          %738 = vmatpush.msra.mxu0 0.0
          %739 = vmatpush.msra.mxu0 0.0
          %740 = vmatpush.msra.mxu0 0.0
          %741 = vmatpush.msra.mxu0 0.0
          %742 = vmatpush.msra.mxu0 %v728
          %743 = vmatpush.msra.mxu0 %v727
          %744 = vmatpush.msra.mxu0 %v726
          %745 = vmatpush.msra.mxu0 %v725
          %746 = vmatpush.msra.mxu0 %v724
          %747 = vmatpush.msra.mxu0 %v723
          %748 = vmatpush.msra.mxu0 %v722
          %749 = vmatpush.msra.mxu0 %v721
          %750 = vmatmul.f32.gmra.mxu0 %v732
          %v751 = vpop.f32.mrf.mxu0
          %v752 = vadd.f32 0.0, %v751
          %753 = vdwg.mxu0
          %v754 = vadd.f32 %v719, %v752
          %s755 = scalar_lea.vmem %s2, 448
          %v756 = vld [vmem:[%s755] sm:$0xff]
          %v757 = vld [vmem:[%s755 + $0x8] sm:$0xff]
          %v758 = vld [vmem:[%s755 + $0x10] sm:$0xff]
          %v759 = vld [vmem:[%s755 + $0x18] sm:$0xff]
          %v760 = vld [vmem:[%s755 + $0x20] sm:$0xff]
          %v761 = vld [vmem:[%s755 + $0x28] sm:$0xff]
          %v762 = vld [vmem:[%s755 + $0x30] sm:$0xff]
          %v763 = vld [vmem:[%s755 + $0x38] sm:$0xff]
          %v765 = vrot.slane %v612, 1
          %v766 = vrot.slane %v614, 1
          %v767 = vsel %vm544, %v765, %v766
          %v768 = vsel %vm470, %v767, 0
          %770 = vmatpush.msra.mxu0 0.0
          %771 = vmatpush.msra.mxu0 0.0
          %772 = vmatpush.msra.mxu0 0.0
          %773 = vmatpush.msra.mxu0 0.0
          %774 = vmatpush.msra.mxu0 0.0
          %775 = vmatpush.msra.mxu0 0.0
          %776 = vmatpush.msra.mxu0 0.0
          %777 = vmatpush.msra.mxu0 0.0
          %778 = vmatpush.msra.mxu0 %v763
          %779 = vmatpush.msra.mxu0 %v762
          %780 = vmatpush.msra.mxu0 %v761
          %781 = vmatpush.msra.mxu0 %v760
          %782 = vmatpush.msra.mxu0 %v759
          %783 = vmatpush.msra.mxu0 %v758
          %784 = vmatpush.msra.mxu0 %v757
          %785 = vmatpush.msra.mxu0 %v756
          %786 = vmatmul.f32.gmra.mxu0 %v768
          %v787 = vpop.f32.mrf.mxu0
          %v788 = vadd.f32 0.0, %v787
          %789 = vdwg.mxu0
          %v790 = vadd.f32 %v754, %v788
          %s791 = scalar_lea.vmem %s2, 512
          %v792 = vld [vmem:[%s791] sm:$0xff]
          %v793 = vld [vmem:[%s791 + $0x8] sm:$0xff]
          %v794 = vld [vmem:[%s791 + $0x10] sm:$0xff]
          %v795 = vld [vmem:[%s791 + $0x18] sm:$0xff]
          %v796 = vld [vmem:[%s791 + $0x20] sm:$0xff]
          %v797 = vld [vmem:[%s791 + $0x28] sm:$0xff]
          %v798 = vld [vmem:[%s791 + $0x30] sm:$0xff]
          %v799 = vld [vmem:[%s791 + $0x38] sm:$0xff]
          %800 = vrot.lane.b32.xlu0 %v767, 64
          %v801 = vpop.permute.xlu0 %800
          %v802 = vsel %vm470, %v801, 0
          %804 = vmatpush.msra.mxu0 0.0
          %805 = vmatpush.msra.mxu0 0.0
          %806 = vmatpush.msra.mxu0 0.0
          %807 = vmatpush.msra.mxu0 0.0
          %808 = vmatpush.msra.mxu0 0.0
          %809 = vmatpush.msra.mxu0 0.0
          %810 = vmatpush.msra.mxu0 0.0
          %811 = vmatpush.msra.mxu0 0.0
          %812 = vmatpush.msra.mxu0 %v799
          %813 = vmatpush.msra.mxu0 %v798
          %814 = vmatpush.msra.mxu0 %v797
          %815 = vmatpush.msra.mxu0 %v796
          %816 = vmatpush.msra.mxu0 %v795
          %817 = vmatpush.msra.mxu0 %v794
          %818 = vmatpush.msra.mxu0 %v793
          %819 = vmatpush.msra.mxu0 %v792
          %820 = vmatmul.f32.gmra.mxu0 %v802
          %v821 = vpop.f32.mrf.mxu0
          %v822 = vadd.f32 0.0, %v821
          %823 = vdwg.mxu0
          %v824 = vadd.f32 %v790, %v822
          %vm825 = vcmp.ge.f32.partialorder %v824, 0.0
          %v826 = vmul.f32 %v824, 0.1
          %v827 = vsel %vm825, %v824, %v826
          %v829 = vrot.slane %v827, 7
          %vm831 = vcmask 1040384
          %v832 = vsel %vm831, 0.0, %v829
          %v833 = vsel %vm831, %v829, 0.0
          %s834 = smul.u32 %s605, 16
          %s835 = scalar_lea.vmem [#allocation2], %s834
          %836 = vst.msk [vmem:[%s835] sm:$0xff] %vm470, %v832
          %837 = vst.msk [vmem:[%s835 + $0x8] sm:$0x3] %vm472, %v833
        $region81: #{offset_diversity_forward.2} parent=55 // loop_footer
          %s487 = sadd.s32 1, %s483
        $region82: #{offset_diversity_forward.2} parent=55 // loop_footer_branch
          %482 = sbr.rel target = $region78
        $region83: #{offset_diversity_forward.2} parent=55 // loop_exit
          _
        loop: start=0, step=1, limit=8
        $region84: #{offset_diversity_forward.2} parent=55 // loop_pre_header
          _
        $region85: #{offset_diversity_forward.2} parent=55 // loop_header
          %s839 = sphi 0, %s843
          %p840 = scmp.ge.s32.totalorder %s839, 8
        $region86: #{offset_diversity_forward.2} parent=55 // loop_header_branch
          %842 = sbr.rel (%p840) target = $region90
        $region87: #{offset_diversity_forward.2} parent=55 // loop_body
          %v844 = vld [vmem:[#allocation9] sm:$0x1]
          %v846 = vperm.slane %v844, 0
          %v848 = vadd.f32 %v846, 0.0
          %s849 = smul.u32 %s839, 16
          %s850 = scalar_lea.vmem [#allocation2], %s849
          %v851 = vld [vmem:[%s850] sm:$0xff]
          %v852 = vld [vmem:[%s850 + $0x8] sm:$0x3]
          %v853 = vld [vmem:[#allocation7] sm:$0xff]
          %v854 = vld [vmem:[#allocation7 + $0x8] sm:$0xff]
          %v855 = vld [vmem:[#allocation7 + $0x10] sm:$0xff]
          %v856 = vld [vmem:[#allocation7 + $0x18] sm:$0xff]
          %v857 = vld [vmem:[#allocation7 + $0x20] sm:$0xff]
          %v858 = vld [vmem:[#allocation7 + $0x28] sm:$0xff]
          %v859 = vld [vmem:[#allocation7 + $0x30] sm:$0xff]
          %v860 = vld [vmem:[#allocation7 + $0x38] sm:$0xff]
          %v862 = vsel %vm470, %v851, 0
          %864 = vmatpush.msra.mxu0 0.0
          %865 = vmatpush.msra.mxu0 0.0
          %866 = vmatpush.msra.mxu0 0.0
          %867 = vmatpush.msra.mxu0 0.0
          %868 = vmatpush.msra.mxu0 0.0
          %869 = vmatpush.msra.mxu0 0.0
          %870 = vmatpush.msra.mxu0 0.0
          %871 = vmatpush.msra.mxu0 0.0
          %872 = vmatpush.msra.mxu0 %v860
          %873 = vmatpush.msra.mxu0 %v859
          %874 = vmatpush.msra.mxu0 %v858
          %875 = vmatpush.msra.mxu0 %v857
          %876 = vmatpush.msra.mxu0 %v856
          %877 = vmatpush.msra.mxu0 %v855
          %878 = vmatpush.msra.mxu0 %v854
          %879 = vmatpush.msra.mxu0 %v853
          %880 = vmatmul.f32.gmra.mxu0 %v862
          %v881 = vpop.f32.mrf.mxu0
          %v882 = vadd.f32 0.0, %v881
          %883 = vdwg.mxu0
          %v884 = vadd.f32 %v848, %v882
          %s885 = scalar_lea.vmem [#allocation7], 64
          %v886 = vld [vmem:[%s885] sm:$0xff]
          %v887 = vld [vmem:[%s885 + $0x8] sm:$0xff]
          %v888 = vld [vmem:[%s885 + $0x10] sm:$0xff]
          %v889 = vld [vmem:[%s885 + $0x18] sm:$0xff]
          %v890 = vld [vmem:[%s885 + $0x20] sm:$0xff]
          %v891 = vld [vmem:[%s885 + $0x28] sm:$0xff]
          %v892 = vld [vmem:[%s885 + $0x30] sm:$0xff]
          %v893 = vld [vmem:[%s885 + $0x38] sm:$0xff]
          %vm895 = vcmask 1046528
          %v896 = vrot.slane %v851, 1
          %v897 = vrot.slane %v852, 1
          %v898 = vsel %vm895, %v896, %v897
          %v899 = vsel %vm470, %v898, 0
          %901 = vmatpush.msra.mxu0 0.0
          %902 = vmatpush.msra.mxu0 0.0
          %903 = vmatpush.msra.mxu0 0.0
          %904 = vmatpush.msra.mxu0 0.0
          %905 = vmatpush.msra.mxu0 0.0
          %906 = vmatpush.msra.mxu0 0.0
          %907 = vmatpush.msra.mxu0 0.0
          %908 = vmatpush.msra.mxu0 0.0
          %909 = vmatpush.msra.mxu0 %v893
          %910 = vmatpush.msra.mxu0 %v892
          %911 = vmatpush.msra.mxu0 %v891
          %912 = vmatpush.msra.mxu0 %v890
          %913 = vmatpush.msra.mxu0 %v889
          %914 = vmatpush.msra.mxu0 %v888
          %915 = vmatpush.msra.mxu0 %v887
          %916 = vmatpush.msra.mxu0 %v886
          %917 = vmatmul.f32.gmra.mxu0 %v899
          %v918 = vpop.f32.mrf.mxu0
          %v919 = vadd.f32 0.0, %v918
          %920 = vdwg.mxu0
          %v921 = vadd.f32 %v884, %v919
          %s922 = scalar_lea.vmem [#allocation7], 128
          %v923 = vld [vmem:[%s922] sm:$0xff]
          %v924 = vld [vmem:[%s922 + $0x8] sm:$0xff]
          %v925 = vld [vmem:[%s922 + $0x10] sm:$0xff]
          %v926 = vld [vmem:[%s922 + $0x18] sm:$0xff]
          %v927 = vld [vmem:[%s922 + $0x20] sm:$0xff]
          %v928 = vld [vmem:[%s922 + $0x28] sm:$0xff]
          %v929 = vld [vmem:[%s922 + $0x30] sm:$0xff]
          %v930 = vld [vmem:[%s922 + $0x38] sm:$0xff]
          %vm931 = vcmask 1045504
          %v932 = vrot.slane %v851, 2
          %v933 = vrot.slane %v852, 2
          %v934 = vsel %vm931, %v932, %v933
          %v935 = vsel %vm470, %v934, 0
          %937 = vmatpush.msra.mxu0 0.0
          %938 = vmatpush.msra.mxu0 0.0
          %939 = vmatpush.msra.mxu0 0.0
          %940 = vmatpush.msra.mxu0 0.0
          %941 = vmatpush.msra.mxu0 0.0
          %942 = vmatpush.msra.mxu0 0.0
          %943 = vmatpush.msra.mxu0 0.0
          %944 = vmatpush.msra.mxu0 0.0
          %945 = vmatpush.msra.mxu0 %v930
          %946 = vmatpush.msra.mxu0 %v929
          %947 = vmatpush.msra.mxu0 %v928
          %948 = vmatpush.msra.mxu0 %v927
          %949 = vmatpush.msra.mxu0 %v926
          %950 = vmatpush.msra.mxu0 %v925
          %951 = vmatpush.msra.mxu0 %v924
          %952 = vmatpush.msra.mxu0 %v923
          %953 = vmatmul.f32.gmra.mxu0 %v935
          %v954 = vpop.f32.mrf.mxu0
          %v955 = vadd.f32 0.0, %v954
          %956 = vdwg.mxu0
          %v957 = vadd.f32 %v921, %v955
          %s958 = sadd.s32 %s839, 1
          %s959 = smul.u32 %s958, 16
          %s960 = scalar_lea.vmem [#allocation2], %s959
          %v961 = vld [vmem:[%s960] sm:$0xff]
          %v962 = vld [vmem:[%s960 + $0x8] sm:$0x3]
          %s963 = scalar_lea.vmem [#allocation7], 192
          %v964 = vld [vmem:[%s963] sm:$0xff]
          %v965 = vld [vmem:[%s963 + $0x8] sm:$0xff]
          %v966 = vld [vmem:[%s963 + $0x10] sm:$0xff]
          %v967 = vld [vmem:[%s963 + $0x18] sm:$0xff]
          %v968 = vld [vmem:[%s963 + $0x20] sm:$0xff]
          %v969 = vld [vmem:[%s963 + $0x28] sm:$0xff]
          %v970 = vld [vmem:[%s963 + $0x30] sm:$0xff]
          %v971 = vld [vmem:[%s963 + $0x38] sm:$0xff]
          %v973 = vsel %vm470, %v961, 0
          %975 = vmatpush.msra.mxu0 0.0
          %976 = vmatpush.msra.mxu0 0.0
          %977 = vmatpush.msra.mxu0 0.0
          %978 = vmatpush.msra.mxu0 0.0
          %979 = vmatpush.msra.mxu0 0.0
          %980 = vmatpush.msra.mxu0 0.0
          %981 = vmatpush.msra.mxu0 0.0
          %982 = vmatpush.msra.mxu0 0.0
          %983 = vmatpush.msra.mxu0 %v971
          %984 = vmatpush.msra.mxu0 %v970
          %985 = vmatpush.msra.mxu0 %v969
          %986 = vmatpush.msra.mxu0 %v968
          %987 = vmatpush.msra.mxu0 %v967
          %988 = vmatpush.msra.mxu0 %v966
          %989 = vmatpush.msra.mxu0 %v965
          %990 = vmatpush.msra.mxu0 %v964
          %991 = vmatmul.f32.gmra.mxu0 %v973
          %v992 = vpop.f32.mrf.mxu0
          %v993 = vadd.f32 0.0, %v992
          %994 = vdwg.mxu0
          %v995 = vadd.f32 %v957, %v993
          %s996 = scalar_lea.vmem [#allocation7], 256
          %v997 = vld [vmem:[%s996] sm:$0xff]
          %v998 = vld [vmem:[%s996 + $0x8] sm:$0xff]
          %v999 = vld [vmem:[%s996 + $0x10] sm:$0xff]
          %v1000 = vld [vmem:[%s996 + $0x18] sm:$0xff]
          %v1001 = vld [vmem:[%s996 + $0x20] sm:$0xff]
          %v1002 = vld [vmem:[%s996 + $0x28] sm:$0xff]
          %v1003 = vld [vmem:[%s996 + $0x30] sm:$0xff]
          %v1004 = vld [vmem:[%s996 + $0x38] sm:$0xff]
          %v1006 = vrot.slane %v961, 1
          %v1007 = vrot.slane %v962, 1
          %v1008 = vsel %vm895, %v1006, %v1007
          %v1009 = vsel %vm470, %v1008, 0
          %1011 = vmatpush.msra.mxu0 0.0
          %1012 = vmatpush.msra.mxu0 0.0
          %1013 = vmatpush.msra.mxu0 0.0
          %1014 = vmatpush.msra.mxu0 0.0
          %1015 = vmatpush.msra.mxu0 0.0
          %1016 = vmatpush.msra.mxu0 0.0
          %1017 = vmatpush.msra.mxu0 0.0
          %1018 = vmatpush.msra.mxu0 0.0
          %1019 = vmatpush.msra.mxu0 %v1004
          %1020 = vmatpush.msra.mxu0 %v1003
          %1021 = vmatpush.msra.mxu0 %v1002
          %1022 = vmatpush.msra.mxu0 %v1001
          %1023 = vmatpush.msra.mxu0 %v1000
          %1024 = vmatpush.msra.mxu0 %v999
          %1025 = vmatpush.msra.mxu0 %v998
          %1026 = vmatpush.msra.mxu0 %v997
          %1027 = vmatmul.f32.gmra.mxu0 %v1009
          %v1028 = vpop.f32.mrf.mxu0
          %v1029 = vadd.f32 0.0, %v1028
          %1030 = vdwg.mxu0
          %v1031 = vadd.f32 %v995, %v1029
          %s1032 = scalar_lea.vmem [#allocation7], 320
          %v1033 = vld [vmem:[%s1032] sm:$0xff]
          %v1034 = vld [vmem:[%s1032 + $0x8] sm:$0xff]
          %v1035 = vld [vmem:[%s1032 + $0x10] sm:$0xff]
          %v1036 = vld [vmem:[%s1032 + $0x18] sm:$0xff]
          %v1037 = vld [vmem:[%s1032 + $0x20] sm:$0xff]
          %v1038 = vld [vmem:[%s1032 + $0x28] sm:$0xff]
          %v1039 = vld [vmem:[%s1032 + $0x30] sm:$0xff]
          %v1040 = vld [vmem:[%s1032 + $0x38] sm:$0xff]
          %v1041 = vrot.slane %v961, 2
          %v1042 = vrot.slane %v962, 2
          %v1043 = vsel %vm931, %v1041, %v1042
          %v1044 = vsel %vm470, %v1043, 0
          %1046 = vmatpush.msra.mxu0 0.0
          %1047 = vmatpush.msra.mxu0 0.0
          %1048 = vmatpush.msra.mxu0 0.0
          %1049 = vmatpush.msra.mxu0 0.0
          %1050 = vmatpush.msra.mxu0 0.0
          %1051 = vmatpush.msra.mxu0 0.0
          %1052 = vmatpush.msra.mxu0 0.0
          %1053 = vmatpush.msra.mxu0 0.0
          %1054 = vmatpush.msra.mxu0 %v1040
          %1055 = vmatpush.msra.mxu0 %v1039
          %1056 = vmatpush.msra.mxu0 %v1038
          %1057 = vmatpush.msra.mxu0 %v1037
          %1058 = vmatpush.msra.mxu0 %v1036
          %1059 = vmatpush.msra.mxu0 %v1035
          %1060 = vmatpush.msra.mxu0 %v1034
          %1061 = vmatpush.msra.mxu0 %v1033
          %1062 = vmatmul.f32.gmra.mxu0 %v1044
          %v1063 = vpop.f32.mrf.mxu0
          %v1064 = vadd.f32 0.0, %v1063
          %1065 = vdwg.mxu0
          %v1066 = vadd.f32 %v1031, %v1064
          %s1067 = sadd.s32 %s839, 2
          %s1068 = smul.u32 %s1067, 16
          %s1069 = scalar_lea.vmem [#allocation2], %s1068
          %v1070 = vld [vmem:[%s1069] sm:$0xff]
          %v1071 = vld [vmem:[%s1069 + $0x8] sm:$0x3]
          %s1072 = scalar_lea.vmem [#allocation7], 384
          %v1073 = vld [vmem:[%s1072] sm:$0xff]
          %v1074 = vld [vmem:[%s1072 + $0x8] sm:$0xff]
          %v1075 = vld [vmem:[%s1072 + $0x10] sm:$0xff]
          %v1076 = vld [vmem:[%s1072 + $0x18] sm:$0xff]
          %v1077 = vld [vmem:[%s1072 + $0x20] sm:$0xff]
          %v1078 = vld [vmem:[%s1072 + $0x28] sm:$0xff]
          %v1079 = vld [vmem:[%s1072 + $0x30] sm:$0xff]
          %v1080 = vld [vmem:[%s1072 + $0x38] sm:$0xff]
          %v1082 = vsel %vm470, %v1070, 0
          %1084 = vmatpush.msra.mxu0 0.0
          %1085 = vmatpush.msra.mxu0 0.0
          %1086 = vmatpush.msra.mxu0 0.0
          %1087 = vmatpush.msra.mxu0 0.0
          %1088 = vmatpush.msra.mxu0 0.0
          %1089 = vmatpush.msra.mxu0 0.0
          %1090 = vmatpush.msra.mxu0 0.0
          %1091 = vmatpush.msra.mxu0 0.0
          %1092 = vmatpush.msra.mxu0 %v1080
          %1093 = vmatpush.msra.mxu0 %v1079
          %1094 = vmatpush.msra.mxu0 %v1078
          %1095 = vmatpush.msra.mxu0 %v1077
          %1096 = vmatpush.msra.mxu0 %v1076
          %1097 = vmatpush.msra.mxu0 %v1075
          %1098 = vmatpush.msra.mxu0 %v1074
          %1099 = vmatpush.msra.mxu0 %v1073
          %1100 = vmatmul.f32.gmra.mxu0 %v1082
          %v1101 = vpop.f32.mrf.mxu0
          %v1102 = vadd.f32 0.0, %v1101
          %1103 = vdwg.mxu0
          %v1104 = vadd.f32 %v1066, %v1102
          %s1105 = scalar_lea.vmem [#allocation7], 448
          %v1106 = vld [vmem:[%s1105] sm:$0xff]
          %v1107 = vld [vmem:[%s1105 + $0x8] sm:$0xff]
          %v1108 = vld [vmem:[%s1105 + $0x10] sm:$0xff]
          %v1109 = vld [vmem:[%s1105 + $0x18] sm:$0xff]
          %v1110 = vld [vmem:[%s1105 + $0x20] sm:$0xff]
          %v1111 = vld [vmem:[%s1105 + $0x28] sm:$0xff]
          %v1112 = vld [vmem:[%s1105 + $0x30] sm:$0xff]
          %v1113 = vld [vmem:[%s1105 + $0x38] sm:$0xff]
          %v1115 = vrot.slane %v1070, 1
          %v1116 = vrot.slane %v1071, 1
          %v1117 = vsel %vm895, %v1115, %v1116
          %v1118 = vsel %vm470, %v1117, 0
          %1120 = vmatpush.msra.mxu0 0.0
          %1121 = vmatpush.msra.mxu0 0.0
          %1122 = vmatpush.msra.mxu0 0.0
          %1123 = vmatpush.msra.mxu0 0.0
          %1124 = vmatpush.msra.mxu0 0.0
          %1125 = vmatpush.msra.mxu0 0.0
          %1126 = vmatpush.msra.mxu0 0.0
          %1127 = vmatpush.msra.mxu0 0.0
          %1128 = vmatpush.msra.mxu0 %v1113
          %1129 = vmatpush.msra.mxu0 %v1112
          %1130 = vmatpush.msra.mxu0 %v1111
          %1131 = vmatpush.msra.mxu0 %v1110
          %1132 = vmatpush.msra.mxu0 %v1109
          %1133 = vmatpush.msra.mxu0 %v1108
          %1134 = vmatpush.msra.mxu0 %v1107
          %1135 = vmatpush.msra.mxu0 %v1106
          %1136 = vmatmul.f32.gmra.mxu0 %v1118
          %v1137 = vpop.f32.mrf.mxu0
          %v1138 = vadd.f32 0.0, %v1137
          %1139 = vdwg.mxu0
          %v1140 = vadd.f32 %v1104, %v1138
          %s1141 = scalar_lea.vmem [#allocation7], 512
          %v1142 = vld [vmem:[%s1141] sm:$0xff]
          %v1143 = vld [vmem:[%s1141 + $0x8] sm:$0xff]
          %v1144 = vld [vmem:[%s1141 + $0x10] sm:$0xff]
          %v1145 = vld [vmem:[%s1141 + $0x18] sm:$0xff]
          %v1146 = vld [vmem:[%s1141 + $0x20] sm:$0xff]
          %v1147 = vld [vmem:[%s1141 + $0x28] sm:$0xff]
          %v1148 = vld [vmem:[%s1141 + $0x30] sm:$0xff]
          %v1149 = vld [vmem:[%s1141 + $0x38] sm:$0xff]
          %v1150 = vrot.slane %v1070, 2
          %v1151 = vrot.slane %v1071, 2
          %v1152 = vsel %vm931, %v1150, %v1151
          %v1153 = vsel %vm470, %v1152, 0
          %1155 = vmatpush.msra.mxu0 0.0
          %1156 = vmatpush.msra.mxu0 0.0
          %1157 = vmatpush.msra.mxu0 0.0
          %1158 = vmatpush.msra.mxu0 0.0
          %1159 = vmatpush.msra.mxu0 0.0
          %1160 = vmatpush.msra.mxu0 0.0
          %1161 = vmatpush.msra.mxu0 0.0
          %1162 = vmatpush.msra.mxu0 0.0
          %1163 = vmatpush.msra.mxu0 %v1149
          %1164 = vmatpush.msra.mxu0 %v1148
          %1165 = vmatpush.msra.mxu0 %v1147
          %1166 = vmatpush.msra.mxu0 %v1146
          %1167 = vmatpush.msra.mxu0 %v1145
          %1168 = vmatpush.msra.mxu0 %v1144
          %1169 = vmatpush.msra.mxu0 %v1143
          %1170 = vmatpush.msra.mxu0 %v1142
          %1171 = vmatmul.f32.gmra.mxu0 %v1153
          %v1172 = vpop.f32.mrf.mxu0
          %v1173 = vadd.f32 0.0, %v1172
          %1174 = vdwg.mxu0
          %v1175 = vadd.f32 %v1140, %v1173
          %vm1176 = vcmp.ge.f32.partialorder %v1175, 0.0
          %v1177 = vmul.f32 %v1175, 0.1
          %v1178 = vsel %vm1176, %v1175, %v1177
          %v1180 = vrot.slane %v1178, 7
          %vm1182 = vcmask 1040384
          %v1183 = vsel %vm1182, 0.0, %v1180
          %v1184 = vsel %vm1182, %v1180, 0.0
          %s1185 = scalar_lea.vmem [#allocation3], %s959
          %1186 = vst.msk [vmem:[%s1185] sm:$0xff] %vm470, %v1183
          %1187 = vst.msk [vmem:[%s1185 + $0x8] sm:$0x3] %vm472, %v1184
        $region88: #{offset_diversity_forward.2} parent=55 // loop_footer
          %s843 = sadd.s32 1, %s839
        $region89: #{offset_diversity_forward.2} parent=55 // loop_footer_branch
          %838 = sbr.rel target = $region85
        $region90: #{offset_diversity_forward.2} parent=55 // loop_exit
          _
        loop: start=0, step=1, limit=8
        $region91: #{offset_diversity_forward.2} parent=55 // loop_pre_header
          _
        $region92: #{offset_diversity_forward.2} parent=55 // loop_header
          %s1189 = sphi 0, %s1193
          %p1190 = scmp.ge.s32.totalorder %s1189, 8
        $region93: #{offset_diversity_forward.2} parent=55 // loop_header_branch
          %1192 = sbr.rel (%p1190) target = $region97
        $region94: #{offset_diversity_forward.2} parent=55 // loop_body
          %v1194 = vld [vmem:[#allocation12] sm:$0x1]
          %v1196 = vperm.slane %v1194, 0
          %v1198 = vadd.f32 %v1196, 0.0
          %s1199 = smul.u32 %s1189, 16
          %s1200 = scalar_lea.vmem [#allocation3], %s1199
          %v1201 = vld [vmem:[%s1200] sm:$0xff]
          %v1202 = vld [vmem:[%s1200 + $0x8] sm:$0x3]
          %v1203 = vld [vmem:[#allocation10] sm:$0xff]
          %v1204 = vld [vmem:[#allocation10 + $0x8] sm:$0xff]
          %v1205 = vld [vmem:[#allocation10 + $0x10] sm:$0xff]
          %v1206 = vld [vmem:[#allocation10 + $0x18] sm:$0xff]
          %v1207 = vld [vmem:[#allocation10 + $0x20] sm:$0xff]
          %v1208 = vld [vmem:[#allocation10 + $0x28] sm:$0xff]
          %v1209 = vld [vmem:[#allocation10 + $0x30] sm:$0xff]
          %v1210 = vld [vmem:[#allocation10 + $0x38] sm:$0xff]
          %v1212 = vsel %vm470, %v1201, 0
          %1214 = vmatpush.msra.mxu0 0.0
          %1215 = vmatpush.msra.mxu0 0.0
          %1216 = vmatpush.msra.mxu0 0.0
          %1217 = vmatpush.msra.mxu0 0.0
          %1218 = vmatpush.msra.mxu0 0.0
          %1219 = vmatpush.msra.mxu0 0.0
          %1220 = vmatpush.msra.mxu0 0.0
          %1221 = vmatpush.msra.mxu0 0.0
          %1222 = vmatpush.msra.mxu0 %v1210
          %1223 = vmatpush.msra.mxu0 %v1209
          %1224 = vmatpush.msra.mxu0 %v1208
          %1225 = vmatpush.msra.mxu0 %v1207
          %1226 = vmatpush.msra.mxu0 %v1206
          %1227 = vmatpush.msra.mxu0 %v1205
          %1228 = vmatpush.msra.mxu0 %v1204
          %1229 = vmatpush.msra.mxu0 %v1203
          %1230 = vmatmul.f32.gmra.mxu0 %v1212
          %v1231 = vpop.f32.mrf.mxu0
          %v1232 = vadd.f32 0.0, %v1231
          %1233 = vdwg.mxu0
          %v1234 = vadd.f32 %v1198, %v1232
          %s1235 = scalar_lea.vmem [#allocation10], 64
          %v1236 = vld [vmem:[%s1235] sm:$0xff]
          %v1237 = vld [vmem:[%s1235 + $0x8] sm:$0xff]
          %v1238 = vld [vmem:[%s1235 + $0x10] sm:$0xff]
          %v1239 = vld [vmem:[%s1235 + $0x18] sm:$0xff]
          %v1240 = vld [vmem:[%s1235 + $0x20] sm:$0xff]
          %v1241 = vld [vmem:[%s1235 + $0x28] sm:$0xff]
          %v1242 = vld [vmem:[%s1235 + $0x30] sm:$0xff]
          %v1243 = vld [vmem:[%s1235 + $0x38] sm:$0xff]
          %vm1245 = vcmask 1046528
          %v1246 = vrot.slane %v1201, 1
          %v1247 = vrot.slane %v1202, 1
          %v1248 = vsel %vm1245, %v1246, %v1247
          %v1249 = vsel %vm470, %v1248, 0
          %1251 = vmatpush.msra.mxu0 0.0
          %1252 = vmatpush.msra.mxu0 0.0
          %1253 = vmatpush.msra.mxu0 0.0
          %1254 = vmatpush.msra.mxu0 0.0
          %1255 = vmatpush.msra.mxu0 0.0
          %1256 = vmatpush.msra.mxu0 0.0
          %1257 = vmatpush.msra.mxu0 0.0
          %1258 = vmatpush.msra.mxu0 0.0
          %1259 = vmatpush.msra.mxu0 %v1243
          %1260 = vmatpush.msra.mxu0 %v1242
          %1261 = vmatpush.msra.mxu0 %v1241
          %1262 = vmatpush.msra.mxu0 %v1240
          %1263 = vmatpush.msra.mxu0 %v1239
          %1264 = vmatpush.msra.mxu0 %v1238
          %1265 = vmatpush.msra.mxu0 %v1237
          %1266 = vmatpush.msra.mxu0 %v1236
          %1267 = vmatmul.f32.gmra.mxu0 %v1249
          %v1268 = vpop.f32.mrf.mxu0
          %v1269 = vadd.f32 0.0, %v1268
          %1270 = vdwg.mxu0
          %v1271 = vadd.f32 %v1234, %v1269
          %s1272 = scalar_lea.vmem [#allocation10], 128
          %v1273 = vld [vmem:[%s1272] sm:$0xff]
          %v1274 = vld [vmem:[%s1272 + $0x8] sm:$0xff]
          %v1275 = vld [vmem:[%s1272 + $0x10] sm:$0xff]
          %v1276 = vld [vmem:[%s1272 + $0x18] sm:$0xff]
          %v1277 = vld [vmem:[%s1272 + $0x20] sm:$0xff]
          %v1278 = vld [vmem:[%s1272 + $0x28] sm:$0xff]
          %v1279 = vld [vmem:[%s1272 + $0x30] sm:$0xff]
          %v1280 = vld [vmem:[%s1272 + $0x38] sm:$0xff]
          %vm1281 = vcmask 1045504
          %v1282 = vrot.slane %v1201, 2
          %v1283 = vrot.slane %v1202, 2
          %v1284 = vsel %vm1281, %v1282, %v1283
          %v1285 = vsel %vm470, %v1284, 0
          %1287 = vmatpush.msra.mxu0 0.0
          %1288 = vmatpush.msra.mxu0 0.0
          %1289 = vmatpush.msra.mxu0 0.0
          %1290 = vmatpush.msra.mxu0 0.0
          %1291 = vmatpush.msra.mxu0 0.0
          %1292 = vmatpush.msra.mxu0 0.0
          %1293 = vmatpush.msra.mxu0 0.0
          %1294 = vmatpush.msra.mxu0 0.0
          %1295 = vmatpush.msra.mxu0 %v1280
          %1296 = vmatpush.msra.mxu0 %v1279
          %1297 = vmatpush.msra.mxu0 %v1278
          %1298 = vmatpush.msra.mxu0 %v1277
          %1299 = vmatpush.msra.mxu0 %v1276
          %1300 = vmatpush.msra.mxu0 %v1275
          %1301 = vmatpush.msra.mxu0 %v1274
          %1302 = vmatpush.msra.mxu0 %v1273
          %1303 = vmatmul.f32.gmra.mxu0 %v1285
          %v1304 = vpop.f32.mrf.mxu0
          %v1305 = vadd.f32 0.0, %v1304
          %1306 = vdwg.mxu0
          %v1307 = vadd.f32 %v1271, %v1305
          %s1308 = sadd.s32 %s1189, 1
          %s1309 = smul.u32 %s1308, 16
          %s1310 = scalar_lea.vmem [#allocation3], %s1309
          %v1311 = vld [vmem:[%s1310] sm:$0xff]
          %v1312 = vld [vmem:[%s1310 + $0x8] sm:$0x3]
          %s1313 = scalar_lea.vmem [#allocation10], 192
          %v1314 = vld [vmem:[%s1313] sm:$0xff]
          %v1315 = vld [vmem:[%s1313 + $0x8] sm:$0xff]
          %v1316 = vld [vmem:[%s1313 + $0x10] sm:$0xff]
          %v1317 = vld [vmem:[%s1313 + $0x18] sm:$0xff]
          %v1318 = vld [vmem:[%s1313 + $0x20] sm:$0xff]
          %v1319 = vld [vmem:[%s1313 + $0x28] sm:$0xff]
          %v1320 = vld [vmem:[%s1313 + $0x30] sm:$0xff]
          %v1321 = vld [vmem:[%s1313 + $0x38] sm:$0xff]
          %v1323 = vsel %vm470, %v1311, 0
          %1325 = vmatpush.msra.mxu0 0.0
          %1326 = vmatpush.msra.mxu0 0.0
          %1327 = vmatpush.msra.mxu0 0.0
          %1328 = vmatpush.msra.mxu0 0.0
          %1329 = vmatpush.msra.mxu0 0.0
          %1330 = vmatpush.msra.mxu0 0.0
          %1331 = vmatpush.msra.mxu0 0.0
          %1332 = vmatpush.msra.mxu0 0.0
          %1333 = vmatpush.msra.mxu0 %v1321
          %1334 = vmatpush.msra.mxu0 %v1320
          %1335 = vmatpush.msra.mxu0 %v1319
          %1336 = vmatpush.msra.mxu0 %v1318
          %1337 = vmatpush.msra.mxu0 %v1317
          %1338 = vmatpush.msra.mxu0 %v1316
          %1339 = vmatpush.msra.mxu0 %v1315
          %1340 = vmatpush.msra.mxu0 %v1314
          %1341 = vmatmul.f32.gmra.mxu0 %v1323
          %v1342 = vpop.f32.mrf.mxu0
          %v1343 = vadd.f32 0.0, %v1342
          %1344 = vdwg.mxu0
          %v1345 = vadd.f32 %v1307, %v1343
          %s1346 = scalar_lea.vmem [#allocation10], 256
          %v1347 = vld [vmem:[%s1346] sm:$0xff]
          %v1348 = vld [vmem:[%s1346 + $0x8] sm:$0xff]
          %v1349 = vld [vmem:[%s1346 + $0x10] sm:$0xff]
          %v1350 = vld [vmem:[%s1346 + $0x18] sm:$0xff]
          %v1351 = vld [vmem:[%s1346 + $0x20] sm:$0xff]
          %v1352 = vld [vmem:[%s1346 + $0x28] sm:$0xff]
          %v1353 = vld [vmem:[%s1346 + $0x30] sm:$0xff]
          %v1354 = vld [vmem:[%s1346 + $0x38] sm:$0xff]
          %v1356 = vrot.slane %v1311, 1
          %v1357 = vrot.slane %v1312, 1
          %v1358 = vsel %vm1245, %v1356, %v1357
          %v1359 = vsel %vm470, %v1358, 0
          %1361 = vmatpush.msra.mxu0 0.0
          %1362 = vmatpush.msra.mxu0 0.0
          %1363 = vmatpush.msra.mxu0 0.0
          %1364 = vmatpush.msra.mxu0 0.0
          %1365 = vmatpush.msra.mxu0 0.0
          %1366 = vmatpush.msra.mxu0 0.0
          %1367 = vmatpush.msra.mxu0 0.0
          %1368 = vmatpush.msra.mxu0 0.0
          %1369 = vmatpush.msra.mxu0 %v1354
          %1370 = vmatpush.msra.mxu0 %v1353
          %1371 = vmatpush.msra.mxu0 %v1352
          %1372 = vmatpush.msra.mxu0 %v1351
          %1373 = vmatpush.msra.mxu0 %v1350
          %1374 = vmatpush.msra.mxu0 %v1349
          %1375 = vmatpush.msra.mxu0 %v1348
          %1376 = vmatpush.msra.mxu0 %v1347
          %1377 = vmatmul.f32.gmra.mxu0 %v1359
          %v1378 = vpop.f32.mrf.mxu0
          %v1379 = vadd.f32 0.0, %v1378
          %1380 = vdwg.mxu0
          %v1381 = vadd.f32 %v1345, %v1379
          %s1382 = scalar_lea.vmem [#allocation10], 320
          %v1383 = vld [vmem:[%s1382] sm:$0xff]
          %v1384 = vld [vmem:[%s1382 + $0x8] sm:$0xff]
          %v1385 = vld [vmem:[%s1382 + $0x10] sm:$0xff]
          %v1386 = vld [vmem:[%s1382 + $0x18] sm:$0xff]
          %v1387 = vld [vmem:[%s1382 + $0x20] sm:$0xff]
          %v1388 = vld [vmem:[%s1382 + $0x28] sm:$0xff]
          %v1389 = vld [vmem:[%s1382 + $0x30] sm:$0xff]
          %v1390 = vld [vmem:[%s1382 + $0x38] sm:$0xff]
          %v1391 = vrot.slane %v1311, 2
          %v1392 = vrot.slane %v1312, 2
          %v1393 = vsel %vm1281, %v1391, %v1392
          %v1394 = vsel %vm470, %v1393, 0
          %1396 = vmatpush.msra.mxu0 0.0
          %1397 = vmatpush.msra.mxu0 0.0
          %1398 = vmatpush.msra.mxu0 0.0
          %1399 = vmatpush.msra.mxu0 0.0
          %1400 = vmatpush.msra.mxu0 0.0
          %1401 = vmatpush.msra.mxu0 0.0
          %1402 = vmatpush.msra.mxu0 0.0
          %1403 = vmatpush.msra.mxu0 0.0
          %1404 = vmatpush.msra.mxu0 %v1390
          %1405 = vmatpush.msra.mxu0 %v1389
          %1406 = vmatpush.msra.mxu0 %v1388
          %1407 = vmatpush.msra.mxu0 %v1387
          %1408 = vmatpush.msra.mxu0 %v1386
          %1409 = vmatpush.msra.mxu0 %v1385
          %1410 = vmatpush.msra.mxu0 %v1384
          %1411 = vmatpush.msra.mxu0 %v1383
          %1412 = vmatmul.f32.gmra.mxu0 %v1394
          %v1413 = vpop.f32.mrf.mxu0
          %v1414 = vadd.f32 0.0, %v1413
          %1415 = vdwg.mxu0
          %v1416 = vadd.f32 %v1381, %v1414
          %s1417 = sadd.s32 %s1189, 2
          %s1418 = smul.u32 %s1417, 16
          %s1419 = scalar_lea.vmem [#allocation3], %s1418
          %v1420 = vld [vmem:[%s1419] sm:$0xff]
          %v1421 = vld [vmem:[%s1419 + $0x8] sm:$0x3]
          %s1422 = scalar_lea.vmem [#allocation10], 384
          %v1423 = vld [vmem:[%s1422] sm:$0xff]
          %v1424 = vld [vmem:[%s1422 + $0x8] sm:$0xff]
          %v1425 = vld [vmem:[%s1422 + $0x10] sm:$0xff]
          %v1426 = vld [vmem:[%s1422 + $0x18] sm:$0xff]
          %v1427 = vld [vmem:[%s1422 + $0x20] sm:$0xff]
          %v1428 = vld [vmem:[%s1422 + $0x28] sm:$0xff]
          %v1429 = vld [vmem:[%s1422 + $0x30] sm:$0xff]
          %v1430 = vld [vmem:[%s1422 + $0x38] sm:$0xff]
          %v1432 = vsel %vm470, %v1420, 0
          %1434 = vmatpush.msra.mxu0 0.0
          %1435 = vmatpush.msra.mxu0 0.0
          %1436 = vmatpush.msra.mxu0 0.0
          %1437 = vmatpush.msra.mxu0 0.0
          %1438 = vmatpush.msra.mxu0 0.0
          %1439 = vmatpush.msra.mxu0 0.0
          %1440 = vmatpush.msra.mxu0 0.0
          %1441 = vmatpush.msra.mxu0 0.0
          %1442 = vmatpush.msra.mxu0 %v1430
          %1443 = vmatpush.msra.mxu0 %v1429
          %1444 = vmatpush.msra.mxu0 %v1428
          %1445 = vmatpush.msra.mxu0 %v1427
          %1446 = vmatpush.msra.mxu0 %v1426
          %1447 = vmatpush.msra.mxu0 %v1425
          %1448 = vmatpush.msra.mxu0 %v1424
          %1449 = vmatpush.msra.mxu0 %v1423
          %1450 = vmatmul.f32.gmra.mxu0 %v1432
          %v1451 = vpop.f32.mrf.mxu0
          %v1452 = vadd.f32 0.0, %v1451
          %1453 = vdwg.mxu0
          %v1454 = vadd.f32 %v1416, %v1452
          %s1455 = scalar_lea.vmem [#allocation10], 448
          %v1456 = vld [vmem:[%s1455] sm:$0xff]
          %v1457 = vld [vmem:[%s1455 + $0x8] sm:$0xff]
          %v1458 = vld [vmem:[%s1455 + $0x10] sm:$0xff]
          %v1459 = vld [vmem:[%s1455 + $0x18] sm:$0xff]
          %v1460 = vld [vmem:[%s1455 + $0x20] sm:$0xff]
          %v1461 = vld [vmem:[%s1455 + $0x28] sm:$0xff]
          %v1462 = vld [vmem:[%s1455 + $0x30] sm:$0xff]
          %v1463 = vld [vmem:[%s1455 + $0x38] sm:$0xff]
          %v1465 = vrot.slane %v1420, 1
          %v1466 = vrot.slane %v1421, 1
          %v1467 = vsel %vm1245, %v1465, %v1466
          %v1468 = vsel %vm470, %v1467, 0
          %1470 = vmatpush.msra.mxu0 0.0
          %1471 = vmatpush.msra.mxu0 0.0
          %1472 = vmatpush.msra.mxu0 0.0
          %1473 = vmatpush.msra.mxu0 0.0
          %1474 = vmatpush.msra.mxu0 0.0
          %1475 = vmatpush.msra.mxu0 0.0
          %1476 = vmatpush.msra.mxu0 0.0
          %1477 = vmatpush.msra.mxu0 0.0
          %1478 = vmatpush.msra.mxu0 %v1463
          %1479 = vmatpush.msra.mxu0 %v1462
          %1480 = vmatpush.msra.mxu0 %v1461
          %1481 = vmatpush.msra.mxu0 %v1460
          %1482 = vmatpush.msra.mxu0 %v1459
          %1483 = vmatpush.msra.mxu0 %v1458
          %1484 = vmatpush.msra.mxu0 %v1457
          %1485 = vmatpush.msra.mxu0 %v1456
          %1486 = vmatmul.f32.gmra.mxu0 %v1468
          %v1487 = vpop.f32.mrf.mxu0
          %v1488 = vadd.f32 0.0, %v1487
          %1489 = vdwg.mxu0
          %v1490 = vadd.f32 %v1454, %v1488
          %s1491 = scalar_lea.vmem [#allocation10], 512
          %v1492 = vld [vmem:[%s1491] sm:$0xff]
          %v1493 = vld [vmem:[%s1491 + $0x8] sm:$0xff]
          %v1494 = vld [vmem:[%s1491 + $0x10] sm:$0xff]
          %v1495 = vld [vmem:[%s1491 + $0x18] sm:$0xff]
          %v1496 = vld [vmem:[%s1491 + $0x20] sm:$0xff]
          %v1497 = vld [vmem:[%s1491 + $0x28] sm:$0xff]
          %v1498 = vld [vmem:[%s1491 + $0x30] sm:$0xff]
          %v1499 = vld [vmem:[%s1491 + $0x38] sm:$0xff]
          %v1500 = vrot.slane %v1420, 2
          %v1501 = vrot.slane %v1421, 2
          %v1502 = vsel %vm1281, %v1500, %v1501
          %v1503 = vsel %vm470, %v1502, 0
          %1505 = vmatpush.msra.mxu0 0.0
          %1506 = vmatpush.msra.mxu0 0.0
          %1507 = vmatpush.msra.mxu0 0.0
          %1508 = vmatpush.msra.mxu0 0.0
          %1509 = vmatpush.msra.mxu0 0.0
          %1510 = vmatpush.msra.mxu0 0.0
          %1511 = vmatpush.msra.mxu0 0.0
          %1512 = vmatpush.msra.mxu0 0.0
          %1513 = vmatpush.msra.mxu0 %v1499
          %1514 = vmatpush.msra.mxu0 %v1498
          %1515 = vmatpush.msra.mxu0 %v1497
          %1516 = vmatpush.msra.mxu0 %v1496
          %1517 = vmatpush.msra.mxu0 %v1495
          %1518 = vmatpush.msra.mxu0 %v1494
          %1519 = vmatpush.msra.mxu0 %v1493
          %1520 = vmatpush.msra.mxu0 %v1492
          %1521 = vmatmul.f32.gmra.mxu0 %v1503
          %v1522 = vpop.f32.mrf.mxu0
          %v1523 = vadd.f32 0.0, %v1522
          %1524 = vdwg.mxu0
          %v1525 = vadd.f32 %v1490, %v1523
          %s1526 = smul.u32 %s1189, 8
          %s1527 = scalar_lea.vmem [#allocation4], %s1526
          %vm1528 = vcmask 785408
          %1529 = vst.msk [vmem:[%s1527] sm:$0xff] %vm1528, %v1525
        $region95: #{offset_diversity_forward.2} parent=55 // loop_footer
          %s1193 = sadd.s32 1, %s1189
        $region96: #{offset_diversity_forward.2} parent=55 // loop_footer_branch
          %1188 = sbr.rel target = $region92
        $region97: #{offset_diversity_forward.2} parent=55 // loop_exit
          _
        %v1530 = vld [vmem:[%s8] sm:$0xff]
        %v1531 = vld [vmem:[%s8 + $0x8] sm:$0xff]
        loop: start=0, step=1, limit=8
        $region98: #{offset_diversity_forward.2} parent=55 // loop_pre_header
          _
        $region99: #{offset_diversity_forward.2} parent=55 // loop_header
          %s1533 = sphi 0, %s1537
          %p1534 = scmp.ge.s32.totalorder %s1533, 8
        $region100: #{offset_diversity_forward.2} parent=55 // loop_header_branch
          %1536 = sbr.rel (%p1534) target = $region104
        $region101: #{offset_diversity_forward.2} parent=55 // loop_body
          %s1538 = smul.u32 %s1533, 8
          %s1539 = scalar_lea.vmem [#allocation4], %s1538
          %v1540 = vld [vmem:[%s1539] sm:$0xff]
          %s1541 = ssub.s32 %s1533, 1
          %p1542 = scmp.gt.s32.totalorder %s1541, 0
          %s1543 = scalar_select %p1542, %s1541, 0
          %s1544 = smul.u32 %s1543, 8
          %s1545 = scalar_lea.vmem [#allocation4], %s1544
          %v1546 = vld [vmem:[%s1545] sm:$0xff]
          %s1547 = sadd.s32 %s1533, 1
          %p1548 = scmp.lt.s32.totalorder %s1547, 7
          %s1549 = scalar_select %p1548, %s1547, 7
          %s1550 = smul.u32 %s1549, 8
          %s1551 = scalar_lea.vmem [#allocation4], %s1550
          %v1552 = vld [vmem:[%s1551] sm:$0xff]
          %v1553 = vmul.f32 %v1540, 0.75
          %v1554 = vmul.f32 %v1546, 0.25
          %v1555 = vadd.f32 %v1553, %v1554
          %v1556 = vmul.f32 %v1552, 0.25
          %v1557 = vadd.f32 %v1553, %v1556
          %s1558 = smul.u32 %s1533, 2
          %vm1559 = vcmask 64512
          %v1561 = vsel %vm1559, %v1530, 0
          %v1564 = vsel %vm1559, %v1531, 0
          %1566 = vmatpush.msra.mxu0 0.0
          %1567 = vmatpush.msra.mxu0 0.0
          %1568 = vmatpush.msra.mxu0 0.0
          %1569 = vmatpush.msra.mxu0 0.0
          %1570 = vmatpush.msra.mxu0 0.0
          %1571 = vmatpush.msra.mxu0 0.0
          %1572 = vmatpush.msra.mxu0 0.0
          %1573 = vmatpush.msra.mxu0 0.0
          %1574 = vmatpush.msra.mxu0 0.0
          %1575 = vmatpush.msra.mxu0 0.0
          %1576 = vmatpush.msra.mxu0 0.0
          %1577 = vmatpush.msra.mxu0 0.0
          %1578 = vmatpush.msra.mxu0 0.0
          %1579 = vmatpush.msra.mxu0 0.0
          %1580 = vmatpush.msra.mxu0 0.0
          %1581 = vmatpush.msra.mxu0 %v1555
          %1582 = vmatmul.f32.gmra.mxu0 %v1561
          %v1583 = vpop.f32.mrf.mxu0
          %v1584 = vadd.f32 0.0, %v1583
          %1585 = vmatmul.f32.gmra.mxu0 %v1564
          %v1586 = vpop.f32.mrf.mxu0
          %v1587 = vadd.f32 0.0, %v1586
          %1588 = vdwg.mxu0
          %s1589 = smul.u32 %s1558, 16
          %s1590 = scalar_lea.vmem %s459, %s1589
          %v1591 = vld [vmem:[%s1590] sm:$0xff]
          %v1592 = vld [vmem:[%s1590 + $0x8] sm:$0xff]
          %v1593 = vlaneseq
          %v1594 = vand.u32 %v1593, 127
          %vm1595 = vcmp.lt.s32.totalorder %v1594, 0
          %v1596 = vsub.s32 0, %v1594
          %v1597 = vsel %vm1595, %v1596, %v1594
          %v1598 = vshrl.u32 %v1597, 1
          %v1599 = vand.u32 %v1597, 1
          %v1600 = vsub.s32 0, %v1599
          %v1601 = vsel %vm1595, %v1600, %v1599
          %vm1602 = vcmp.ne.s32.totalorder %v1601, 0
          %vm1603 = vcmp.lt.s32.totalorder %v1601, 0
          %vm1604 = vmand %vm1603, %vm1602
          %v1605 = vadd.s32 %v1601, 2
          %v1606 = vsel %vm1604, %v1605, %v1601
          %vm1607 = vcmp.eq.s32.totalorder %v1606, 0
          %1609 = vset.pattern.permute.xlu0 0
          %1610 = vperm.xlu0 %1609, %v1591
          %v1611 = vpop.permute.xlu0 %1610
          %1614 = vset.pattern.permute.xlu0 0
          %1615 = vperm.xlu0 %1614, %v1592
          %v1616 = vpop.permute.xlu0 %1615
          %1618 = vset.pattern.permute.xlu0 1
          %1619 = vperm.xlu0 %1618, %v1591
          %v1620 = vpop.permute.xlu0 %1619
          %1622 = vset.pattern.permute.xlu0 1
          %1623 = vperm.xlu0 %1622, %v1592
          %v1624 = vpop.permute.xlu0 %1623
          %v1626 = vsel %vm1607, %v1611, %v1620
          %v1627 = vsel %vm1607, %v1616, %v1624
          %v1628 = vtanh.pop %v1584
          %v1629 = vtanh.pop %v1587
          %v1630 = vmul.f32 %v1628, 40.0
          %v1631 = vmul.f32 %v1629, 40.0
          %v1632 = vadd.f32 %v1630, %v1626
          %v1633 = vadd.f32 %v1631, %v1627
          %v1634 = vsub.f32 0.0, %v1584
          %v1635 = vsub.f32 0.0, %v1587
          %v1636 = vmul.f32 %v1634, 1.442695
          %v1637 = vpow.pop %v1636
          %v1638 = vmul.f32 %v1635, 1.442695
          %v1639 = vpow.pop %v1638
          %v1640 = vadd.f32 %v1637, 1.0
          %v1641 = vadd.f32 %v1639, 1.0
          %v1642 = vrcp.pop %v1640
          %v1643 = vrcp.pop %v1641
          %s1644 = scalar_lea.vmem %s464, %s1589
          %1645 = vst.msk [vmem:[%s1644] sm:$0xff] %vm470, %v1632
          %1646 = vst.msk [vmem:[%s1644 + $0x8] sm:$0xff] %vm470, %v1633
          %v1647 = vpack.c.bf16 %v1642, %v1642
          %v1648 = vpack.c.bf16 %v1643, %v1643
          %1651 = vrot.lane.b32.xlu0 %v1647, 64
          %v1652 = vpop.permute.xlu0 %1651
          %1653 = vrot.lane.b32.xlu0 %v1648, 64
          %v1654 = vpop.permute.xlu0 %1653
          %s1657 = smul.u32 %s1558, 2
          %s1658 = smul.addr %s1657, 4
          %s1659 = scalar_lea.vmem %s469, %s1658
          %vm1660 = vcmask 257024
          %1661 = vst.msk [vmem:[%s1659] sm:$0xf] %vm1660, %v1652
          %1662 = vst.msk [vmem:[%s1659 + $0x4] sm:$0xf] %vm1660, %v1654
          %s1663 = sadd.s32 %s1558, 1
          %1664 = vmatpush.msra.mxu0 0.0
          %1665 = vmatpush.msra.mxu0 0.0
          %1666 = vmatpush.msra.mxu0 0.0
          %1667 = vmatpush.msra.mxu0 0.0
          %1668 = vmatpush.msra.mxu0 0.0
          %1669 = vmatpush.msra.mxu0 0.0
          %1670 = vmatpush.msra.mxu0 0.0
          %1671 = vmatpush.msra.mxu0 0.0
          %1672 = vmatpush.msra.mxu0 0.0
          %1673 = vmatpush.msra.mxu0 0.0
          %1674 = vmatpush.msra.mxu0 0.0
          %1675 = vmatpush.msra.mxu0 0.0
          %1676 = vmatpush.msra.mxu0 0.0
          %1677 = vmatpush.msra.mxu0 0.0
          %1678 = vmatpush.msra.mxu0 0.0
          %1679 = vmatpush.msra.mxu0 %v1557
          %1680 = vmatmul.f32.gmra.mxu0 %v1561
          %v1681 = vpop.f32.mrf.mxu0
          %v1682 = vadd.f32 0.0, %v1681
          %1683 = vmatmul.f32.gmra.mxu0 %v1564
          %v1684 = vpop.f32.mrf.mxu0
          %v1685 = vadd.f32 0.0, %v1684
          %1686 = vdwg.mxu0
          %s1687 = smul.u32 %s1663, 16
          %s1688 = scalar_lea.vmem %s459, %s1687
          %v1689 = vld [vmem:[%s1688] sm:$0xff]
          %v1690 = vld [vmem:[%s1688 + $0x8] sm:$0xff]
          %1692 = vset.pattern.permute.xlu0 0
          %1693 = vperm.xlu0 %1692, %v1689
          %v1694 = vpop.permute.xlu0 %1693
          %1697 = vset.pattern.permute.xlu0 0
          %1698 = vperm.xlu0 %1697, %v1690
          %v1699 = vpop.permute.xlu0 %1698
          %1701 = vset.pattern.permute.xlu0 1
          %1702 = vperm.xlu0 %1701, %v1689
          %v1703 = vpop.permute.xlu0 %1702
          %1705 = vset.pattern.permute.xlu0 1
          %1706 = vperm.xlu0 %1705, %v1690
          %v1707 = vpop.permute.xlu0 %1706
          %v1709 = vsel %vm1607, %v1694, %v1703
          %v1710 = vsel %vm1607, %v1699, %v1707
          %v1711 = vtanh.pop %v1682
          %v1712 = vtanh.pop %v1685
          %v1713 = vmul.f32 %v1711, 40.0
          %v1714 = vmul.f32 %v1712, 40.0
          %v1715 = vadd.f32 %v1713, %v1709
          %v1716 = vadd.f32 %v1714, %v1710
          %v1717 = vsub.f32 0.0, %v1682
          %v1718 = vsub.f32 0.0, %v1685
          %v1719 = vmul.f32 %v1717, 1.442695
          %v1720 = vpow.pop %v1719
          %v1721 = vmul.f32 %v1718, 1.442695
          %v1722 = vpow.pop %v1721
          %v1723 = vadd.f32 %v1720, 1.0
          %v1724 = vadd.f32 %v1722, 1.0
          %v1725 = vrcp.pop %v1723
          %v1726 = vrcp.pop %v1724
          %s1727 = scalar_lea.vmem %s464, %s1687
          %1728 = vst.msk [vmem:[%s1727] sm:$0xff] %vm470, %v1715
          %1729 = vst.msk [vmem:[%s1727 + $0x8] sm:$0xff] %vm470, %v1716
          %v1730 = vpack.c.bf16 %v1725, %v1725
          %v1731 = vpack.c.bf16 %v1726, %v1726
          %1734 = vrot.lane.b32.xlu0 %v1730, 64
          %v1735 = vpop.permute.xlu0 %1734
          %1736 = vrot.lane.b32.xlu0 %v1731, 64
          %v1737 = vpop.permute.xlu0 %1736
          %s1740 = smul.u32 %s1663, 2
          %s1741 = smul.addr %s1740, 4
          %s1742 = scalar_lea.vmem %s469, %s1741
          %1743 = vst.msk [vmem:[%s1742] sm:$0xf] %vm1660, %v1735
          %1744 = vst.msk [vmem:[%s1742 + $0x4] sm:$0xf] %vm1660, %v1737
        $region102: #{offset_diversity_forward.2} parent=55 // loop_footer
          %s1537 = sadd.s32 1, %s1533
        $region103: #{offset_diversity_forward.2} parent=55 // loop_footer_branch
          %1532 = sbr.rel target = $region99
        $region104: #{offset_diversity_forward.2} parent=55 // loop_exit
          _
        %p1745 = scmp.lt.s32.totalorder %s25, 1
        %s1746 = scalar_select %p1745, %s25, 1
        %s1747 = smul.addr %s1746, 32
        %s1748 = smul.addr %s1747, 8
        %s1749 = scalar_lea.vmem %s9, %s1748
        %p1750 = scmp.lt.s32.totalorder %s25, 1
        %s1751 = scalar_select %p1750, %s25, 1
        %s1752 = smul.addr %s1751, 32
        %s1753 = smul.addr %s1752, 4
        %s1754 = scalar_lea.vmem %s10, %s1753
        // Predicated region
        $region105: #{offset_diversity_forward.2} parent=55 // pred_check
          %p1755 = pneg %p242
        $region106: #{offset_diversity_forward.2} parent=55 // pred_check_branch
          %1757 = sbr.rel (%p1755) target = $region108
        $region107: #{offset_diversity_forward.2} parent=55 // pred_region
          _
        $region108: #{offset_diversity_forward.2} parent=55 // pred_fallthru
          _
        // Predicated region
        $region109: #{offset_diversity_forward.2} parent=55 // pred_check
          %p1758 = pneg %p268
        $region110: #{offset_diversity_forward.2} parent=55 // pred_check_branch
          %1760 = sbr.rel (%p1758) target = $region112
        $region111: #{offset_diversity_forward.2} parent=55 // pred_region
          _
        $region112: #{offset_diversity_forward.2} parent=55 // pred_fallthru
          _
      $region56: #{offset_diversity_forward.2} parent=5 // pred_fallthru
        _
      %p1761 = scmp.le.s32.totalorder 2, %s20
      // Predicated region
      $region113: #{offset_diversity_forward.2} parent=5 // pred_check
        %p1762 = pneg %p1761
      $region114: #{offset_diversity_forward.2} parent=5 // pred_check_branch
        %1764 = sbr.rel (%p1762) target = $region116
      $region115: #{offset_diversity_forward.2} parent=5 // pred_region
        %s1765 = ssub.s32 %s20, 2
        // Predicated region
        $region117: #{offset_diversity_forward.2} parent=115 // pred_check
          %p1766 = pneg %p248
        $region118: #{offset_diversity_forward.2} parent=115 // pred_check_branch
          %1768 = sbr.rel (%p1766) target = $region120
        $region119: #{offset_diversity_forward.2} parent=115 // pred_region
          %p1769 = scmp.lt.s32.totalorder %s26, 1
          %s1770 = scalar_select %p1769, %s26, 1
          %s1771 = smul.addr %s1770, 32
          %s1772 = smul.addr %s1771, 8
          %s1773 = scalar_lea.vmem %s9, %s1772
        $region120: #{offset_diversity_forward.2} parent=115 // pred_fallthru
          _
        // Predicated region
        $region121: #{offset_diversity_forward.2} parent=115 // pred_check
          %p1774 = pneg %p274
        $region122: #{offset_diversity_forward.2} parent=115 // pred_check_branch
          %1776 = sbr.rel (%p1774) target = $region124
        $region123: #{offset_diversity_forward.2} parent=115 // pred_region
          %p1777 = scmp.lt.s32.totalorder %s26, 1
          %s1778 = scalar_select %p1777, %s26, 1
          %s1779 = smul.addr %s1778, 32
          %s1780 = smul.addr %s1779, 4
          %s1781 = scalar_lea.vmem %s10, %s1780
        $region124: #{offset_diversity_forward.2} parent=115 // pred_fallthru
          _
      $region116: #{offset_diversity_forward.2} parent=5 // pred_fallthru
        _
    $region6: #{offset_diversity_forward.2} parent=1 // loop_footer
      %s24 = sadd.s32 1, %s20
    $region7: #{offset_diversity_forward.2} parent=1 // loop_footer_branch
      %19 = sbr.rel target = $region3
    $region8: #{offset_diversity_forward.2} parent=1 // loop_exit
      _
    %1782 = vsyncpa [#allocation6], 1
    %s1783 = scalar_lea.sflag [#allocation6], 1
    %1784 = vsyncpa %s1783, 1
    %1785 = vsyncpa [#allocation8], 1
    %1786 = vsyncpa [#allocation11], 1

// kernel: offset_diversity_forward.3
$region0: #{offset_diversity_forward.3}
  #allocation0 [shape = 'u32[]', space=smem, size = 0x4, offset = 0x4, fixed_abs, tag = 'smem constant byte address 0x4 - core index']
  #allocation1 [shape = 'u32[72,128]{1,0:T(1,128)}', space=vmem, size = 0x9000, scoped, tag = 'internal scratch']
  %s0 = inlined_call_operand.vmem [shape: bf16[512,96], index: 0, kind: input, shape index: {}]
  %s1 = inlined_call_operand.vmem [shape: bf16[512,32], index: 1, kind: input, shape index: {}]
  %s2 = inlined_call_operand.vmem [shape: bf16[32,96], index: 2, kind: input, shape index: {}]
  %s3 = inlined_call_operand.vmem [shape: bf16[96,48], index: 3, kind: input, shape index: {}]
  %s4 = inlined_call_operand.vmem [shape: f32[1,48], index: 4, kind: input, shape index: {}]
  %s5 = inlined_call_operand.hbm [shape: f32[512,48], index: 5, kind: output, shape index: {}]
  %s6 = sld [smem:[#allocation0]]
  $region30: #{offset_diversity_forward.3} parent=0
    _
  %s8 = ssub.s32 1, %s6
  %s9 = scalar_select 0, %s8, %s6
  $region1: #{offset_diversity_forward.3} parent=0
    #allocation2 [shape = 'u8[262144]{0}', space=vmem, size = 0x40000, scoped, tag = 'output window, operand 0, single buffered']
    #allocation3 [shape = 's32[1]{0}', space=sflag, size = 0x4, scoped, tag = 'scoped memory for offset_diversity_forward.3']
    %10 = vsyncpa [#allocation3], 0
    // Predicated region
    $region2: #{offset_diversity_forward.3} parent=1 // pred_check
      _
    $region3: #{offset_diversity_forward.3} parent=1 // pred_check_branch
      %12 = sbr.rel (0) target = $region5
    $region4: #{offset_diversity_forward.3} parent=1 // pred_region
      _
    $region5: #{offset_diversity_forward.3} parent=1 // pred_fallthru
      _
    // Predicated region
    $region6: #{offset_diversity_forward.3} parent=1 // pred_check
      _
    $region7: #{offset_diversity_forward.3} parent=1 // pred_check_branch
      %14 = sbr.rel (0) target = $region9
    $region8: #{offset_diversity_forward.3} parent=1 // pred_region
      _
    $region9: #{offset_diversity_forward.3} parent=1 // pred_fallthru
      _
    // Predicated region
    $region10: #{offset_diversity_forward.3} parent=1 // pred_check
      _
    $region11: #{offset_diversity_forward.3} parent=1 // pred_check_branch
      %16 = sbr.rel (0) target = $region13
    $region12: #{offset_diversity_forward.3} parent=1 // pred_region
      _
    $region13: #{offset_diversity_forward.3} parent=1 // pred_fallthru
      _
    // Predicated region
    $region14: #{offset_diversity_forward.3} parent=1 // pred_check
      _
    $region15: #{offset_diversity_forward.3} parent=1 // pred_check_branch
      %18 = sbr.rel (0) target = $region17
    $region16: #{offset_diversity_forward.3} parent=1 // pred_region
      _
    $region17: #{offset_diversity_forward.3} parent=1 // pred_fallthru
      _
    // Predicated region
    $region18: #{offset_diversity_forward.3} parent=1 // pred_check
      _
    $region19: #{offset_diversity_forward.3} parent=1 // pred_check_branch
      %20 = sbr.rel (0) target = $region21
    $region20: #{offset_diversity_forward.3} parent=1 // pred_region
      _
    $region21: #{offset_diversity_forward.3} parent=1 // pred_fallthru
      _
    %v22 = vld [vmem:[%s1] sm:$0xf]
    %v23 = vld [vmem:[%s1 + $0x4] sm:$0xf]
    %v24 = vld [vmem:[%s1 + $0x8] sm:$0xf]
    %v25 = vld [vmem:[%s1 + $0xc] sm:$0xf]
    %v26 = vld [vmem:[%s1 + $0x10] sm:$0xf]
    %v27 = vld [vmem:[%s1 + $0x14] sm:$0xf]
    %v28 = vld [vmem:[%s1 + $0x18] sm:$0xf]
    %v29 = vld [vmem:[%s1 + $0x1c] sm:$0xf]
    %v30 = vld [vmem:[%s1 + $0x20] sm:$0xf]
    %v31 = vld [vmem:[%s1 + $0x24] sm:$0xf]
    %v32 = vld [vmem:[%s1 + $0x28] sm:$0xf]
    %v33 = vld [vmem:[%s1 + $0x2c] sm:$0xf]
    %v34 = vld [vmem:[%s1 + $0x30] sm:$0xf]
    %v35 = vld [vmem:[%s1 + $0x34] sm:$0xf]
    %v36 = vld [vmem:[%s1 + $0x38] sm:$0xf]
    %v37 = vld [vmem:[%s1 + $0x3c] sm:$0xf]
    %v38 = vld [vmem:[%s1 + $0x40] sm:$0xf]
    %v39 = vld [vmem:[%s1 + $0x44] sm:$0xf]
    %v40 = vld [vmem:[%s1 + $0x48] sm:$0xf]
    %v41 = vld [vmem:[%s1 + $0x4c] sm:$0xf]
    %v42 = vld [vmem:[%s1 + $0x50] sm:$0xf]
    %v43 = vld [vmem:[%s1 + $0x54] sm:$0xf]
    %v44 = vld [vmem:[%s1 + $0x58] sm:$0xf]
    %v45 = vld [vmem:[%s1 + $0x5c] sm:$0xf]
    %v46 = vld [vmem:[%s1 + $0x60] sm:$0xf]
    %v47 = vld [vmem:[%s1 + $0x64] sm:$0xf]
    %v48 = vld [vmem:[%s1 + $0x68] sm:$0xf]
    %v49 = vld [vmem:[%s1 + $0x6c] sm:$0xf]
    %v50 = vld [vmem:[%s1 + $0x70] sm:$0xf]
    %v51 = vld [vmem:[%s1 + $0x74] sm:$0xf]
    %v52 = vld [vmem:[%s1 + $0x78] sm:$0xf]
    %v53 = vld [vmem:[%s1 + $0x7c] sm:$0xf]
    %v54 = vld [vmem:[%s1 + $0x80] sm:$0xf]
    %v55 = vld [vmem:[%s1 + $0x84] sm:$0xf]
    %v56 = vld [vmem:[%s1 + $0x88] sm:$0xf]
    %v57 = vld [vmem:[%s1 + $0x8c] sm:$0xf]
    %v58 = vld [vmem:[%s1 + $0x90] sm:$0xf]
    %v59 = vld [vmem:[%s1 + $0x94] sm:$0xf]
    %v60 = vld [vmem:[%s1 + $0x98] sm:$0xf]
    %v61 = vld [vmem:[%s1 + $0x9c] sm:$0xf]
    %v62 = vld [vmem:[%s1 + $0xa0] sm:$0xf]
    %v63 = vld [vmem:[%s1 + $0xa4] sm:$0xf]
    %v64 = vld [vmem:[%s1 + $0xa8] sm:$0xf]
    %v65 = vld [vmem:[%s1 + $0xac] sm:$0xf]
    %v66 = vld [vmem:[%s1 + $0xb0] sm:$0xf]
    %v67 = vld [vmem:[%s1 + $0xb4] sm:$0xf]
    %v68 = vld [vmem:[%s1 + $0xb8] sm:$0xf]
    %v69 = vld [vmem:[%s1 + $0xbc] sm:$0xf]
    %v70 = vld [vmem:[%s1 + $0xc0] sm:$0xf]
    %v71 = vld [vmem:[%s1 + $0xc4] sm:$0xf]
    %v72 = vld [vmem:[%s1 + $0xc8] sm:$0xf]
    %v73 = vld [vmem:[%s1 + $0xcc] sm:$0xf]
    %v74 = vld [vmem:[%s1 + $0xd0] sm:$0xf]
    %v75 = vld [vmem:[%s1 + $0xd4] sm:$0xf]
    %v76 = vld [vmem:[%s1 + $0xd8] sm:$0xf]
    %v77 = vld [vmem:[%s1 + $0xdc] sm:$0xf]
    %v78 = vld [vmem:[%s1 + $0xe0] sm:$0xf]
    %v79 = vld [vmem:[%s1 + $0xe4] sm:$0xf]
    %v80 = vld [vmem:[%s1 + $0xe8] sm:$0xf]
    %v81 = vld [vmem:[%s1 + $0xec] sm:$0xf]
    %v82 = vld [vmem:[%s1 + $0xf0] sm:$0xf]
    %v83 = vld [vmem:[%s1 + $0xf4] sm:$0xf]
    %v84 = vld [vmem:[%s1 + $0xf8] sm:$0xf]
    %v85 = vld [vmem:[%s1 + $0xfc] sm:$0xf]
    %v86 = vld [vmem:[%s2] sm:$0xf]
    %v87 = vld [vmem:[%s2 + $0x4] sm:$0xf]
    %v88 = vld [vmem:[%s2 + $0x8] sm:$0xf]
    %v89 = vld [vmem:[%s2 + $0xc] sm:$0xf]
    %v154 = vunpack.c.l.b16 %v22
    %v155 = vunpack.c.l.b16 %v23
    %v156 = vunpack.c.l.b16 %v24
    %v157 = vunpack.c.l.b16 %v25
    %v158 = vunpack.c.l.b16 %v26
    %v159 = vunpack.c.l.b16 %v27
    %v160 = vunpack.c.l.b16 %v28
    %v161 = vunpack.c.l.b16 %v29
    %v162 = vunpack.c.l.b16 %v30
    %v163 = vunpack.c.l.b16 %v31
    %v164 = vunpack.c.l.b16 %v32
    %v165 = vunpack.c.l.b16 %v33
    %v166 = vunpack.c.l.b16 %v34
    %v167 = vunpack.c.l.b16 %v35
    %v168 = vunpack.c.l.b16 %v36
    %v169 = vunpack.c.l.b16 %v37
    %v170 = vunpack.c.l.b16 %v38
    %v171 = vunpack.c.l.b16 %v39
    %v172 = vunpack.c.l.b16 %v40
    %v173 = vunpack.c.l.b16 %v41
    %v174 = vunpack.c.l.b16 %v42
    %v175 = vunpack.c.l.b16 %v43
    %v176 = vunpack.c.l.b16 %v44
    %v177 = vunpack.c.l.b16 %v45
    %v178 = vunpack.c.l.b16 %v46
    %v179 = vunpack.c.l.b16 %v47
    %v180 = vunpack.c.l.b16 %v48
    %v181 = vunpack.c.l.b16 %v49
    %v182 = vunpack.c.l.b16 %v50
    %v183 = vunpack.c.l.b16 %v51
    %v184 = vunpack.c.l.b16 %v52
    %v185 = vunpack.c.l.b16 %v53
    %v186 = vunpack.c.l.b16 %v54
    %v187 = vunpack.c.l.b16 %v55
    %v188 = vunpack.c.l.b16 %v56
    %v189 = vunpack.c.l.b16 %v57
    %v190 = vunpack.c.l.b16 %v58
    %v191 = vunpack.c.l.b16 %v59
    %v192 = vunpack.c.l.b16 %v60
    %v193 = vunpack.c.l.b16 %v61
    %v194 = vunpack.c.l.b16 %v62
    %v195 = vunpack.c.l.b16 %v63
    %v196 = vunpack.c.l.b16 %v64
    %v197 = vunpack.c.l.b16 %v65
    %v198 = vunpack.c.l.b16 %v66
    %v199 = vunpack.c.l.b16 %v67
    %v200 = vunpack.c.l.b16 %v68
    %v201 = vunpack.c.l.b16 %v69
    %v202 = vunpack.c.l.b16 %v70
    %v203 = vunpack.c.l.b16 %v71
    %v204 = vunpack.c.l.b16 %v72
    %v205 = vunpack.c.l.b16 %v73
    %v206 = vunpack.c.l.b16 %v74
    %v207 = vunpack.c.l.b16 %v75
    %v208 = vunpack.c.l.b16 %v76
    %v209 = vunpack.c.l.b16 %v77
    %v210 = vunpack.c.l.b16 %v78
    %v211 = vunpack.c.l.b16 %v79
    %v212 = vunpack.c.l.b16 %v80
    %v213 = vunpack.c.l.b16 %v81
    %v214 = vunpack.c.l.b16 %v82
    %v215 = vunpack.c.l.b16 %v83
    %v216 = vunpack.c.l.b16 %v84
    %v217 = vunpack.c.l.b16 %v85
    %v218 = vpack.c.b16 %v155, %v154
    %v219 = vpack.c.b16 %v157, %v156
    %v220 = vpack.c.b16 %v159, %v158
    %v221 = vpack.c.b16 %v161, %v160
    %v222 = vpack.c.b16 %v163, %v162
    %v223 = vpack.c.b16 %v165, %v164
    %v224 = vpack.c.b16 %v167, %v166
    %v225 = vpack.c.b16 %v169, %v168
    %v226 = vpack.c.b16 %v171, %v170
    %v227 = vpack.c.b16 %v173, %v172
    %v228 = vpack.c.b16 %v175, %v174
    %v229 = vpack.c.b16 %v177, %v176
    %v230 = vpack.c.b16 %v179, %v178
    %v231 = vpack.c.b16 %v181, %v180
    %v232 = vpack.c.b16 %v183, %v182
    %v233 = vpack.c.b16 %v185, %v184
    %v234 = vpack.c.b16 %v187, %v186
    %v235 = vpack.c.b16 %v189, %v188
    %v236 = vpack.c.b16 %v191, %v190
    %v237 = vpack.c.b16 %v193, %v192
    %v238 = vpack.c.b16 %v195, %v194
    %v239 = vpack.c.b16 %v197, %v196
    %v240 = vpack.c.b16 %v199, %v198
    %v241 = vpack.c.b16 %v201, %v200
    %v242 = vpack.c.b16 %v203, %v202
    %v243 = vpack.c.b16 %v205, %v204
    %v244 = vpack.c.b16 %v207, %v206
    %v245 = vpack.c.b16 %v209, %v208
    %v246 = vpack.c.b16 %v211, %v210
    %v247 = vpack.c.b16 %v213, %v212
    %v248 = vpack.c.b16 %v215, %v214
    %v249 = vpack.c.b16 %v217, %v216
    %v254 = vunpack.c.l.b16 %v86
    %v255 = vunpack.c.l.b16 %v87
    %v256 = vunpack.c.l.b16 %v88
    %v257 = vunpack.c.l.b16 %v89
    %v258 = vpack.c.b16 %v255, %v254
    %v259 = vpack.c.b16 %v257, %v256
    %vm262 = vcmask 261120
    %v264 = vsel %vm262, %v218, 0
    %v267 = vsel %vm262, %v219, 0
    %v270 = vsel %vm262, %v220, 0
    %v273 = vsel %vm262, %v221, 0
    %v276 = vsel %vm262, %v222, 0
    %v279 = vsel %vm262, %v223, 0
    %v282 = vsel %vm262, %v224, 0
    %v285 = vsel %vm262, %v225, 0
    %v288 = vsel %vm262, %v226, 0
    %v291 = vsel %vm262, %v227, 0
    %v294 = vsel %vm262, %v228, 0
    %v297 = vsel %vm262, %v229, 0
    %v300 = vsel %vm262, %v230, 0
    %v303 = vsel %vm262, %v231, 0
    %v306 = vsel %vm262, %v232, 0
    %v309 = vsel %vm262, %v233, 0
    %v312 = vsel %vm262, %v234, 0
    %v315 = vsel %vm262, %v235, 0
    %v318 = vsel %vm262, %v236, 0
    %v321 = vsel %vm262, %v237, 0
    %v324 = vsel %vm262, %v238, 0
    %v327 = vsel %vm262, %v239, 0
    %v330 = vsel %vm262, %v240, 0
    %v333 = vsel %vm262, %v241, 0
    %v336 = vsel %vm262, %v242, 0
    %v339 = vsel %vm262, %v243, 0
    %v342 = vsel %vm262, %v244, 0
    %v345 = vsel %vm262, %v245, 0
    %v348 = vsel %vm262, %v246, 0
    %v351 = vsel %vm262, %v247, 0
    %v354 = vsel %vm262, %v248, 0
    %v357 = vsel %vm262, %v249, 0
    %359 = vmatpush.bf16.msra.mxu0 0
    %360 = vmatpush.bf16.msra.mxu0 0
    %361 = vmatpush.bf16.msra.mxu0 0
    %362 = vmatpush.bf16.msra.mxu0 0
    %363 = vmatpush.bf16.msra.mxu0 0
    %364 = vmatpush.bf16.msra.mxu0 0
    %365 = vmatpush.bf16.msra.mxu0 %v259
    %366 = vmatpush.bf16.msra.mxu0 %v258
    %367 = vmatmul.bf16.gmra.mxu0 %v264
    %v368 = vpop.f32.mrf.mxu0
    %v369 = vadd.f32 0.0, %v368
    %v370 = vpop.f32.mrf.mxu0
    %v371 = vadd.f32 0.0, %v370
    %372 = vmatmul.bf16.gmra.mxu0 %v267
    %v373 = vpop.f32.mrf.mxu0
    %v374 = vadd.f32 0.0, %v373
    %v375 = vpop.f32.mrf.mxu0
    %v376 = vadd.f32 0.0, %v375
    %377 = vmatmul.bf16.gmra.mxu0 %v270
    %v378 = vpop.f32.mrf.mxu0
    %v379 = vadd.f32 0.0, %v378
    %v380 = vpop.f32.mrf.mxu0
    %v381 = vadd.f32 0.0, %v380
    %382 = vmatmul.bf16.gmra.mxu0 %v273
    %v383 = vpop.f32.mrf.mxu0
    %v384 = vadd.f32 0.0, %v383
    %v385 = vpop.f32.mrf.mxu0
    %v386 = vadd.f32 0.0, %v385
    %387 = vmatmul.bf16.gmra.mxu0 %v276
    %v388 = vpop.f32.mrf.mxu0
    %v389 = vadd.f32 0.0, %v388
    %v390 = vpop.f32.mrf.mxu0
    %v391 = vadd.f32 0.0, %v390
    %392 = vmatmul.bf16.gmra.mxu0 %v279
    %v393 = vpop.f32.mrf.mxu0
    %v394 = vadd.f32 0.0, %v393
    %v395 = vpop.f32.mrf.mxu0
    %v396 = vadd.f32 0.0, %v395
    %397 = vmatmul.bf16.gmra.mxu0 %v282
    %v398 = vpop.f32.mrf.mxu0
    %v399 = vadd.f32 0.0, %v398
    %v400 = vpop.f32.mrf.mxu0
    %v401 = vadd.f32 0.0, %v400
    %402 = vmatmul.bf16.gmra.mxu0 %v285
    %v403 = vpop.f32.mrf.mxu0
    %v404 = vadd.f32 0.0, %v403
    %v405 = vpop.f32.mrf.mxu0
    %v406 = vadd.f32 0.0, %v405
    %407 = vmatmul.bf16.gmra.mxu0 %v288
    %v408 = vpop.f32.mrf.mxu0
    %v409 = vadd.f32 0.0, %v408
    %v410 = vpop.f32.mrf.mxu0
    %v411 = vadd.f32 0.0, %v410
    %412 = vmatmul.bf16.gmra.mxu0 %v291
    %v413 = vpop.f32.mrf.mxu0
    %v414 = vadd.f32 0.0, %v413
    %v415 = vpop.f32.mrf.mxu0
    %v416 = vadd.f32 0.0, %v415
    %417 = vmatmul.bf16.gmra.mxu0 %v294
    %v418 = vpop.f32.mrf.mxu0
    %v419 = vadd.f32 0.0, %v418
    %v420 = vpop.f32.mrf.mxu0
    %v421 = vadd.f32 0.0, %v420
    %422 = vmatmul.bf16.gmra.mxu0 %v297
    %v423 = vpop.f32.mrf.mxu0
    %v424 = vadd.f32 0.0, %v423
    %v425 = vpop.f32.mrf.mxu0
    %v426 = vadd.f32 0.0, %v425
    %427 = vmatmul.bf16.gmra.mxu0 %v300
    %v428 = vpop.f32.mrf.mxu0
    %v429 = vadd.f32 0.0, %v428
    %v430 = vpop.f32.mrf.mxu0
    %v431 = vadd.f32 0.0, %v430
    %432 = vmatmul.bf16.gmra.mxu0 %v303
    %v433 = vpop.f32.mrf.mxu0
    %v434 = vadd.f32 0.0, %v433
    %v435 = vpop.f32.mrf.mxu0
    %v436 = vadd.f32 0.0, %v435
    %437 = vmatmul.bf16.gmra.mxu0 %v306
    %v438 = vpop.f32.mrf.mxu0
    %v439 = vadd.f32 0.0, %v438
    %v440 = vpop.f32.mrf.mxu0
    %v441 = vadd.f32 0.0, %v440
    %442 = vmatmul.bf16.gmra.mxu0 %v309
    %v443 = vpop.f32.mrf.mxu0
    %v444 = vadd.f32 0.0, %v443
    %v445 = vpop.f32.mrf.mxu0
    %v446 = vadd.f32 0.0, %v445
    %447 = vmatmul.bf16.gmra.mxu0 %v312
    %v448 = vpop.f32.mrf.mxu0
    %v449 = vadd.f32 0.0, %v448
    %v450 = vpop.f32.mrf.mxu0
    %v451 = vadd.f32 0.0, %v450
    %452 = vmatmul.bf16.gmra.mxu0 %v315
    %v453 = vpop.f32.mrf.mxu0
    %v454 = vadd.f32 0.0, %v453
    %v455 = vpop.f32.mrf.mxu0
    %v456 = vadd.f32 0.0, %v455
    %457 = vmatmul.bf16.gmra.mxu0 %v318
    %v458 = vpop.f32.mrf.mxu0
    %v459 = vadd.f32 0.0, %v458
    %v460 = vpop.f32.mrf.mxu0
    %v461 = vadd.f32 0.0, %v460
    %462 = vmatmul.bf16.gmra.mxu0 %v321
    %v463 = vpop.f32.mrf.mxu0
    %v464 = vadd.f32 0.0, %v463
    %v465 = vpop.f32.mrf.mxu0
    %v466 = vadd.f32 0.0, %v465
    %467 = vmatmul.bf16.gmra.mxu0 %v324
    %v468 = vpop.f32.mrf.mxu0
    %v469 = vadd.f32 0.0, %v468
    %v470 = vpop.f32.mrf.mxu0
    %v471 = vadd.f32 0.0, %v470
    %472 = vmatmul.bf16.gmra.mxu0 %v327
    %v473 = vpop.f32.mrf.mxu0
    %v474 = vadd.f32 0.0, %v473
    %v475 = vpop.f32.mrf.mxu0
    %v476 = vadd.f32 0.0, %v475
    %477 = vmatmul.bf16.gmra.mxu0 %v330
    %v478 = vpop.f32.mrf.mxu0
    %v479 = vadd.f32 0.0, %v478
    %v480 = vpop.f32.mrf.mxu0
    %v481 = vadd.f32 0.0, %v480
    %482 = vmatmul.bf16.gmra.mxu0 %v333
    %v483 = vpop.f32.mrf.mxu0
    %v484 = vadd.f32 0.0, %v483
    %v485 = vpop.f32.mrf.mxu0
    %v486 = vadd.f32 0.0, %v485
    %487 = vmatmul.bf16.gmra.mxu0 %v336
    %v488 = vpop.f32.mrf.mxu0
    %v489 = vadd.f32 0.0, %v488
    %v490 = vpop.f32.mrf.mxu0
    %v491 = vadd.f32 0.0, %v490
    %492 = vmatmul.bf16.gmra.mxu0 %v339
    %v493 = vpop.f32.mrf.mxu0
    %v494 = vadd.f32 0.0, %v493
    %v495 = vpop.f32.mrf.mxu0
    %v496 = vadd.f32 0.0, %v495
    %497 = vmatmul.bf16.gmra.mxu0 %v342
    %v498 = vpop.f32.mrf.mxu0
    %v499 = vadd.f32 0.0, %v498
    %v500 = vpop.f32.mrf.mxu0
    %v501 = vadd.f32 0.0, %v500
    %502 = vmatmul.bf16.gmra.mxu0 %v345
    %v503 = vpop.f32.mrf.mxu0
    %v504 = vadd.f32 0.0, %v503
    %v505 = vpop.f32.mrf.mxu0
    %v506 = vadd.f32 0.0, %v505
    %507 = vmatmul.bf16.gmra.mxu0 %v348
    %v508 = vpop.f32.mrf.mxu0
    %v509 = vadd.f32 0.0, %v508
    %v510 = vpop.f32.mrf.mxu0
    %v511 = vadd.f32 0.0, %v510
    %512 = vmatmul.bf16.gmra.mxu0 %v351
    %v513 = vpop.f32.mrf.mxu0
    %v514 = vadd.f32 0.0, %v513
    %v515 = vpop.f32.mrf.mxu0
    %v516 = vadd.f32 0.0, %v515
    %517 = vmatmul.bf16.gmra.mxu0 %v354
    %v518 = vpop.f32.mrf.mxu0
    %v519 = vadd.f32 0.0, %v518
    %v520 = vpop.f32.mrf.mxu0
    %v521 = vadd.f32 0.0, %v520
    %522 = vmatmul.bf16.gmra.mxu0 %v357
    %v523 = vpop.f32.mrf.mxu0
    %v524 = vadd.f32 0.0, %v523
    %v525 = vpop.f32.mrf.mxu0
    %v526 = vadd.f32 0.0, %v525
    %527 = vdwg.mxu0
    %v528 = vld [vmem:[%s0] sm:$0xf]
    %v529 = vld [vmem:[%s0 + $0x4] sm:$0xf]
    %v530 = vld [vmem:[%s0 + $0x8] sm:$0xf]
    %v531 = vld [vmem:[%s0 + $0xc] sm:$0xf]
    %v532 = vld [vmem:[%s0 + $0x10] sm:$0xf]
    %v533 = vld [vmem:[%s0 + $0x14] sm:$0xf]
    %v534 = vld [vmem:[%s0 + $0x18] sm:$0xf]
    %v535 = vld [vmem:[%s0 + $0x1c] sm:$0xf]
    %v536 = vld [vmem:[%s0 + $0x20] sm:$0xf]
    %v537 = vld [vmem:[%s0 + $0x24] sm:$0xf]
    %v538 = vld [vmem:[%s0 + $0x28] sm:$0xf]
    %v539 = vld [vmem:[%s0 + $0x2c] sm:$0xf]
    %v540 = vld [vmem:[%s0 + $0x30] sm:$0xf]
    %v541 = vld [vmem:[%s0 + $0x34] sm:$0xf]
    %v542 = vld [vmem:[%s0 + $0x38] sm:$0xf]
    %v543 = vld [vmem:[%s0 + $0x3c] sm:$0xf]
    %v544 = vld [vmem:[%s0 + $0x40] sm:$0xf]
    %v545 = vld [vmem:[%s0 + $0x44] sm:$0xf]
    %v546 = vld [vmem:[%s0 + $0x48] sm:$0xf]
    %v547 = vld [vmem:[%s0 + $0x4c] sm:$0xf]
    %v548 = vld [vmem:[%s0 + $0x50] sm:$0xf]
    %v549 = vld [vmem:[%s0 + $0x54] sm:$0xf]
    %v550 = vld [vmem:[%s0 + $0x58] sm:$0xf]
    %v551 = vld [vmem:[%s0 + $0x5c] sm:$0xf]
    %v552 = vld [vmem:[%s0 + $0x60] sm:$0xf]
    %v553 = vld [vmem:[%s0 + $0x64] sm:$0xf]
    %v554 = vld [vmem:[%s0 + $0x68] sm:$0xf]
    %v555 = vld [vmem:[%s0 + $0x6c] sm:$0xf]
    %v556 = vld [vmem:[%s0 + $0x70] sm:$0xf]
    %v557 = vld [vmem:[%s0 + $0x74] sm:$0xf]
    %v558 = vld [vmem:[%s0 + $0x78] sm:$0xf]
    %v559 = vld [vmem:[%s0 + $0x7c] sm:$0xf]
    %v560 = vld [vmem:[%s0 + $0x80] sm:$0xf]
    %v561 = vld [vmem:[%s0 + $0x84] sm:$0xf]
    %v562 = vld [vmem:[%s0 + $0x88] sm:$0xf]
    %v563 = vld [vmem:[%s0 + $0x8c] sm:$0xf]
    %v564 = vld [vmem:[%s0 + $0x90] sm:$0xf]
    %v565 = vld [vmem:[%s0 + $0x94] sm:$0xf]
    %v566 = vld [vmem:[%s0 + $0x98] sm:$0xf]
    %v567 = vld [vmem:[%s0 + $0x9c] sm:$0xf]
    %v568 = vld [vmem:[%s0 + $0xa0] sm:$0xf]
    %v569 = vld [vmem:[%s0 + $0xa4] sm:$0xf]
    %v570 = vld [vmem:[%s0 + $0xa8] sm:$0xf]
    %v571 = vld [vmem:[%s0 + $0xac] sm:$0xf]
    %v572 = vld [vmem:[%s0 + $0xb0] sm:$0xf]
    %v573 = vld [vmem:[%s0 + $0xb4] sm:$0xf]
    %v574 = vld [vmem:[%s0 + $0xb8] sm:$0xf]
    %v575 = vld [vmem:[%s0 + $0xbc] sm:$0xf]
    %v576 = vld [vmem:[%s0 + $0xc0] sm:$0xf]
    %v577 = vld [vmem:[%s0 + $0xc4] sm:$0xf]
    %v578 = vld [vmem:[%s0 + $0xc8] sm:$0xf]
    %v579 = vld [vmem:[%s0 + $0xcc] sm:$0xf]
    %v580 = vld [vmem:[%s0 + $0xd0] sm:$0xf]
    %v581 = vld [vmem:[%s0 + $0xd4] sm:$0xf]
    %v582 = vld [vmem:[%s0 + $0xd8] sm:$0xf]
    %v583 = vld [vmem:[%s0 + $0xdc] sm:$0xf]
    %v584 = vld [vmem:[%s0 + $0xe0] sm:$0xf]
    %v585 = vld [vmem:[%s0 + $0xe4] sm:$0xf]
    %v586 = vld [vmem:[%s0 + $0xe8] sm:$0xf]
    %v587 = vld [vmem:[%s0 + $0xec] sm:$0xf]
    %v588 = vld [vmem:[%s0 + $0xf0] sm:$0xf]
    %v589 = vld [vmem:[%s0 + $0xf4] sm:$0xf]
    %v590 = vld [vmem:[%s0 + $0xf8] sm:$0xf]
    %v591 = vld [vmem:[%s0 + $0xfc] sm:$0xf]
    %v592 = vunpack.c.l.bf16 %v528
    %v593 = vunpack.c.l.bf16 %v529
    %v594 = vunpack.c.l.bf16 %v530
    %v595 = vunpack.c.l.bf16 %v531
    %v596 = vunpack.c.l.bf16 %v532
    %v597 = vunpack.c.l.bf16 %v533
    %v598 = vunpack.c.l.bf16 %v534
    %v599 = vunpack.c.l.bf16 %v535
    %v600 = vunpack.c.l.bf16 %v536
    %v601 = vunpack.c.l.bf16 %v537
    %v602 = vunpack.c.l.bf16 %v538
    %v603 = vunpack.c.l.bf16 %v539
    %v604 = vunpack.c.l.bf16 %v540
    %v605 = vunpack.c.l.bf16 %v541
    %v606 = vunpack.c.l.bf16 %v542
    %v607 = vunpack.c.l.bf16 %v543
    %v608 = vunpack.c.l.bf16 %v544
    %v609 = vunpack.c.l.bf16 %v545
    %v610 = vunpack.c.l.bf16 %v546
    %v611 = vunpack.c.l.bf16 %v547
    %v612 = vunpack.c.l.bf16 %v548
    %v613 = vunpack.c.l.bf16 %v549
    %v614 = vunpack.c.l.bf16 %v550
    %v615 = vunpack.c.l.bf16 %v551
    %v616 = vunpack.c.l.bf16 %v552
    %v617 = vunpack.c.l.bf16 %v553
    %v618 = vunpack.c.l.bf16 %v554
    %v619 = vunpack.c.l.bf16 %v555
    %v620 = vunpack.c.l.bf16 %v556
    %v621 = vunpack.c.l.bf16 %v557
    %v622 = vunpack.c.l.bf16 %v558
    %v623 = vunpack.c.l.bf16 %v559
    %v624 = vunpack.c.l.bf16 %v560
    %v625 = vunpack.c.l.bf16 %v561
    %v626 = vunpack.c.l.bf16 %v562
    %v627 = vunpack.c.l.bf16 %v563
    %v628 = vunpack.c.l.bf16 %v564
    %v629 = vunpack.c.l.bf16 %v565
    %v630 = vunpack.c.l.bf16 %v566
    %v631 = vunpack.c.l.bf16 %v567
    %v632 = vunpack.c.l.bf16 %v568
    %v633 = vunpack.c.l.bf16 %v569
    %v634 = vunpack.c.l.bf16 %v570
    %v635 = vunpack.c.l.bf16 %v571
    %v636 = vunpack.c.l.bf16 %v572
    %v637 = vunpack.c.l.bf16 %v573
    %v638 = vunpack.c.l.bf16 %v574
    %v639 = vunpack.c.l.bf16 %v575
    %v640 = vunpack.c.l.bf16 %v576
    %v641 = vunpack.c.l.bf16 %v577
    %v642 = vunpack.c.l.bf16 %v578
    %v643 = vunpack.c.l.bf16 %v579
    %v644 = vunpack.c.l.bf16 %v580
    %v645 = vunpack.c.l.bf16 %v581
    %v646 = vunpack.c.l.bf16 %v582
    %v647 = vunpack.c.l.bf16 %v583
    %v648 = vunpack.c.l.bf16 %v584
    %v649 = vunpack.c.l.bf16 %v585
    %v650 = vunpack.c.l.bf16 %v586
    %v651 = vunpack.c.l.bf16 %v587
    %v652 = vunpack.c.l.bf16 %v588
    %v653 = vunpack.c.l.bf16 %v589
    %v654 = vunpack.c.l.bf16 %v590
    %v655 = vunpack.c.l.bf16 %v591
    %v656 = vmul.f32 %v592, %v369
    %v657 = vmul.f32 %v593, %v371
    %v658 = vmul.f32 %v594, %v374
    %v659 = vmul.f32 %v595, %v376
    %v660 = vmul.f32 %v596, %v379
    %v661 = vmul.f32 %v597, %v381
    %v662 = vmul.f32 %v598, %v384
    %v663 = vmul.f32 %v599, %v386
    %v664 = vmul.f32 %v600, %v389
    %v665 = vmul.f32 %v601, %v391
    %v666 = vmul.f32 %v602, %v394
    %v667 = vmul.f32 %v603, %v396
    %v668 = vmul.f32 %v604, %v399
    %v669 = vmul.f32 %v605, %v401
    %v670 = vmul.f32 %v606, %v404
    %v671 = vmul.f32 %v607, %v406
    %v672 = vmul.f32 %v608, %v409
    %v673 = vmul.f32 %v609, %v411
    %v674 = vmul.f32 %v610, %v414
    %v675 = vmul.f32 %v611, %v416
    %v676 = vmul.f32 %v612, %v419
    %v677 = vmul.f32 %v613, %v421
    %v678 = vmul.f32 %v614, %v424
    %v679 = vmul.f32 %v615, %v426
    %v680 = vmul.f32 %v616, %v429
    %v681 = vmul.f32 %v617, %v431
    %v682 = vmul.f32 %v618, %v434
    %v683 = vmul.f32 %v619, %v436
    %v684 = vmul.f32 %v620, %v439
    %v685 = vmul.f32 %v621, %v441
    %v686 = vmul.f32 %v622, %v444
    %v687 = vmul.f32 %v623, %v446
    %v688 = vmul.f32 %v624, %v449
    %v689 = vmul.f32 %v625, %v451
    %v690 = vmul.f32 %v626, %v454
    %v691 = vmul.f32 %v627, %v456
    %v692 = vmul.f32 %v628, %v459
    %v693 = vmul.f32 %v629, %v461
    %v694 = vmul.f32 %v630, %v464
    %v695 = vmul.f32 %v631, %v466
    %v696 = vmul.f32 %v632, %v469
    %v697 = vmul.f32 %v633, %v471
    %v698 = vmul.f32 %v634, %v474
    %v699 = vmul.f32 %v635, %v476
    %v700 = vmul.f32 %v636, %v479
    %v701 = vmul.f32 %v637, %v481
    %v702 = vmul.f32 %v638, %v484
    %v703 = vmul.f32 %v639, %v486
    %v704 = vmul.f32 %v640, %v489
    %v705 = vmul.f32 %v641, %v491
    %v706 = vmul.f32 %v642, %v494
    %v707 = vmul.f32 %v643, %v496
    %v708 = vmul.f32 %v644, %v499
    %v709 = vmul.f32 %v645, %v501
    %v710 = vmul.f32 %v646, %v504
    %v711 = vmul.f32 %v647, %v506
    %v712 = vmul.f32 %v648, %v509
    %v713 = vmul.f32 %v649, %v511
    %v714 = vmul.f32 %v650, %v514
    %v715 = vmul.f32 %v651, %v516
    %v716 = vmul.f32 %v652, %v519
    %v717 = vmul.f32 %v653, %v521
    %v718 = vmul.f32 %v654, %v524
    %v719 = vmul.f32 %v655, %v526
    %v720 = vpack.c.bf16 %v657, %v656
    %v721 = vpack.c.bf16 %v659, %v658
    %v722 = vpack.c.bf16 %v661, %v660
    %v723 = vpack.c.bf16 %v663, %v662
    %v724 = vpack.c.bf16 %v665, %v664
    %v725 = vpack.c.bf16 %v667, %v666
    %v726 = vpack.c.bf16 %v669, %v668
    %v727 = vpack.c.bf16 %v671, %v670
    %v728 = vpack.c.bf16 %v673, %v672
    %v729 = vpack.c.bf16 %v675, %v674
    %v730 = vpack.c.bf16 %v677, %v676
    %v731 = vpack.c.bf16 %v679, %v678
    %v732 = vpack.c.bf16 %v681, %v680
    %v733 = vpack.c.bf16 %v683, %v682
    %v734 = vpack.c.bf16 %v685, %v684
    %v735 = vpack.c.bf16 %v687, %v686
    %v736 = vpack.c.bf16 %v689, %v688
    %v737 = vpack.c.bf16 %v691, %v690
    %v738 = vpack.c.bf16 %v693, %v692
    %v739 = vpack.c.bf16 %v695, %v694
    %v740 = vpack.c.bf16 %v697, %v696
    %v741 = vpack.c.bf16 %v699, %v698
    %v742 = vpack.c.bf16 %v701, %v700
    %v743 = vpack.c.bf16 %v703, %v702
    %v744 = vpack.c.bf16 %v705, %v704
    %v745 = vpack.c.bf16 %v707, %v706
    %v746 = vpack.c.bf16 %v709, %v708
    %v747 = vpack.c.bf16 %v711, %v710
    %v748 = vpack.c.bf16 %v713, %v712
    %v749 = vpack.c.bf16 %v715, %v714
    %v750 = vpack.c.bf16 %v717, %v716
    %v751 = vpack.c.bf16 %v719, %v718
    %v752 = vld [vmem:[%s3] sm:$0xf]
    %v753 = vld [vmem:[%s3 + $0x4] sm:$0xf]
    %v754 = vld [vmem:[%s3 + $0x8] sm:$0xf]
    %v755 = vld [vmem:[%s3 + $0xc] sm:$0xf]
    %v756 = vld [vmem:[%s3 + $0x10] sm:$0xf]
    %v757 = vld [vmem:[%s3 + $0x14] sm:$0xf]
    %v758 = vld [vmem:[%s3 + $0x18] sm:$0xf]
    %v759 = vld [vmem:[%s3 + $0x1c] sm:$0xf]
    %v760 = vld [vmem:[%s3 + $0x20] sm:$0xf]
    %v761 = vld [vmem:[%s3 + $0x24] sm:$0xf]
    %v762 = vld [vmem:[%s3 + $0x28] sm:$0xf]
    %v763 = vld [vmem:[%s3 + $0x2c] sm:$0xf]
    %v764 = vld [vmem:[%s4] sm:$0x1]
    %v766 = vperm.slane %v764, 0
    %v780 = vunpack.c.l.b16 %v752
    %v781 = vunpack.c.l.b16 %v753
    %v782 = vunpack.c.l.b16 %v754
    %v783 = vunpack.c.l.b16 %v755
    %v784 = vunpack.c.l.b16 %v756
    %v785 = vunpack.c.l.b16 %v757
    %v786 = vunpack.c.l.b16 %v758
    %v787 = vunpack.c.l.b16 %v759
    %v788 = vunpack.c.l.b16 %v760
    %v789 = vunpack.c.l.b16 %v761
    %v790 = vunpack.c.l.b16 %v762
    %v791 = vunpack.c.l.b16 %v763
    %v792 = vpack.c.b16 %v781, %v780
    %v793 = vpack.c.b16 %v783, %v782
    %v794 = vpack.c.b16 %v785, %v784
    %v795 = vpack.c.b16 %v787, %v786
    %v796 = vpack.c.b16 %v789, %v788
    %v797 = vpack.c.b16 %v791, %v790
    %vm804 = vcmask 785408
    %v806 = vsel %vm804, %v720, 0
    %v809 = vsel %vm804, %v721, 0
    %v812 = vsel %vm804, %v722, 0
    %v815 = vsel %vm804, %v723, 0
    %v818 = vsel %vm804, %v724, 0
    %v821 = vsel %vm804, %v725, 0
    %v824 = vsel %vm804, %v726, 0
    %v827 = vsel %vm804, %v727, 0
    %v830 = vsel %vm804, %v728, 0
    %v833 = vsel %vm804, %v729, 0
    %v836 = vsel %vm804, %v730, 0
    %v839 = vsel %vm804, %v731, 0
    %v842 = vsel %vm804, %v732, 0
    %v845 = vsel %vm804, %v733, 0
    %v848 = vsel %vm804, %v734, 0
    %v851 = vsel %vm804, %v735, 0
    %v854 = vsel %vm804, %v736, 0
    %v857 = vsel %vm804, %v737, 0
    %v860 = vsel %vm804, %v738, 0
    %v863 = vsel %vm804, %v739, 0
    %v866 = vsel %vm804, %v740, 0
    %v869 = vsel %vm804, %v741, 0
    %v872 = vsel %vm804, %v742, 0
    %v875 = vsel %vm804, %v743, 0
    %v878 = vsel %vm804, %v744, 0
    %v881 = vsel %vm804, %v745, 0
    %v884 = vsel %vm804, %v746, 0
    %v887 = vsel %vm804, %v747, 0
    %v890 = vsel %vm804, %v748, 0
    %v893 = vsel %vm804, %v749, 0
    %v896 = vsel %vm804, %v750, 0
    %v899 = vsel %vm804, %v751, 0
    %901 = vmatpush.bf16.msra.mxu0 0
    %902 = vmatpush.bf16.msra.mxu0 0
    %903 = vmatpush.bf16.msra.mxu0 %v797
    %904 = vmatpush.bf16.msra.mxu0 %v796
    %905 = vmatpush.bf16.msra.mxu0 %v795
    %906 = vmatpush.bf16.msra.mxu0 %v794
    %907 = vmatpush.bf16.msra.mxu0 %v793
    %908 = vmatpush.bf16.msra.mxu0 %v792
    %909 = vmatmul.bf16.gmra.mxu0 %v806
    %v910 = vpop.f32.mrf.mxu0
    %v911 = vadd.f32 %v766, %v910
    %v912 = vpop.f32.mrf.mxu0
    %v913 = vadd.f32 %v766, %v912
    %914 = vmatmul.bf16.gmra.mxu0 %v809
    %v915 = vpop.f32.mrf.mxu0
    %v916 = vadd.f32 %v766, %v915
    %v917 = vpop.f32.mrf.mxu0
    %v918 = vadd.f32 %v766, %v917
    %919 = vmatmul.bf16.gmra.mxu0 %v812
    %v920 = vpop.f32.mrf.mxu0
    %v921 = vadd.f32 %v766, %v920
    %v922 = vpop.f32.mrf.mxu0
    %v923 = vadd.f32 %v766, %v922
    %924 = vmatmul.bf16.gmra.mxu0 %v815
    %v925 = vpop.f32.mrf.mxu0
    %v926 = vadd.f32 %v766, %v925
    %v927 = vpop.f32.mrf.mxu0
    %v928 = vadd.f32 %v766, %v927
    %929 = vmatmul.bf16.gmra.mxu0 %v818
    %v930 = vpop.f32.mrf.mxu0
    %v931 = vadd.f32 %v766, %v930
    %v932 = vpop.f32.mrf.mxu0
    %v933 = vadd.f32 %v766, %v932
    %934 = vmatmul.bf16.gmra.mxu0 %v821
    %v935 = vpop.f32.mrf.mxu0
    %v936 = vadd.f32 %v766, %v935
    %v937 = vpop.f32.mrf.mxu0
    %v938 = vadd.f32 %v766, %v937
    %939 = vmatmul.bf16.gmra.mxu0 %v824
    %v940 = vpop.f32.mrf.mxu0
    %v941 = vadd.f32 %v766, %v940
    %v942 = vpop.f32.mrf.mxu0
    %v943 = vadd.f32 %v766, %v942
    %944 = vmatmul.bf16.gmra.mxu0 %v827
    %v945 = vpop.f32.mrf.mxu0
    %v946 = vadd.f32 %v766, %v945
    %v947 = vpop.f32.mrf.mxu0
    %v948 = vadd.f32 %v766, %v947
    %949 = vmatmul.bf16.gmra.mxu0 %v830
    %v950 = vpop.f32.mrf.mxu0
    %v951 = vadd.f32 %v766, %v950
    %v952 = vpop.f32.mrf.mxu0
    %v953 = vadd.f32 %v766, %v952
    %954 = vmatmul.bf16.gmra.mxu0 %v833
    %v955 = vpop.f32.mrf.mxu0
    %v956 = vadd.f32 %v766, %v955
    %v957 = vpop.f32.mrf.mxu0
    %v958 = vadd.f32 %v766, %v957
    %959 = vmatmul.bf16.gmra.mxu0 %v836
    %v960 = vpop.f32.mrf.mxu0
    %v961 = vadd.f32 %v766, %v960
    %v962 = vpop.f32.mrf.mxu0
    %v963 = vadd.f32 %v766, %v962
    %964 = vmatmul.bf16.gmra.mxu0 %v839
    %v965 = vpop.f32.mrf.mxu0
    %v966 = vadd.f32 %v766, %v965
    %v967 = vpop.f32.mrf.mxu0
    %v968 = vadd.f32 %v766, %v967
    %969 = vmatmul.bf16.gmra.mxu0 %v842
    %v970 = vpop.f32.mrf.mxu0
    %v971 = vadd.f32 %v766, %v970
    %v972 = vpop.f32.mrf.mxu0
    %v973 = vadd.f32 %v766, %v972
    %974 = vmatmul.bf16.gmra.mxu0 %v845
    %v975 = vpop.f32.mrf.mxu0
    %v976 = vadd.f32 %v766, %v975
    %v977 = vpop.f32.mrf.mxu0
    %v978 = vadd.f32 %v766, %v977
    %979 = vmatmul.bf16.gmra.mxu0 %v848
    %v980 = vpop.f32.mrf.mxu0
    %v981 = vadd.f32 %v766, %v980
    %v982 = vpop.f32.mrf.mxu0
    %v983 = vadd.f32 %v766, %v982
    %984 = vmatmul.bf16.gmra.mxu0 %v851
    %v985 = vpop.f32.mrf.mxu0
    %v986 = vadd.f32 %v766, %v985
    %v987 = vpop.f32.mrf.mxu0
    %v988 = vadd.f32 %v766, %v987
    %989 = vmatmul.bf16.gmra.mxu0 %v854
    %v990 = vpop.f32.mrf.mxu0
    %v991 = vadd.f32 %v766, %v990
    %v992 = vpop.f32.mrf.mxu0
    %v993 = vadd.f32 %v766, %v992
    %994 = vmatmul.bf16.gmra.mxu0 %v857
    %v995 = vpop.f32.mrf.mxu0
    %v996 = vadd.f32 %v766, %v995
    %v997 = vpop.f32.mrf.mxu0
    %v998 = vadd.f32 %v766, %v997
    %999 = vmatmul.bf16.gmra.mxu0 %v860
    %v1000 = vpop.f32.mrf.mxu0
    %v1001 = vadd.f32 %v766, %v1000
    %v1002 = vpop.f32.mrf.mxu0
    %v1003 = vadd.f32 %v766, %v1002
    %1004 = vmatmul.bf16.gmra.mxu0 %v863
    %v1005 = vpop.f32.mrf.mxu0
    %v1006 = vadd.f32 %v766, %v1005
    %v1007 = vpop.f32.mrf.mxu0
    %v1008 = vadd.f32 %v766, %v1007
    %1009 = vmatmul.bf16.gmra.mxu0 %v866
    %v1010 = vpop.f32.mrf.mxu0
    %v1011 = vadd.f32 %v766, %v1010
    %v1012 = vpop.f32.mrf.mxu0
    %v1013 = vadd.f32 %v766, %v1012
    %1014 = vmatmul.bf16.gmra.mxu0 %v869
    %v1015 = vpop.f32.mrf.mxu0
    %v1016 = vadd.f32 %v766, %v1015
    %v1017 = vpop.f32.mrf.mxu0
    %v1018 = vadd.f32 %v766, %v1017
    %1019 = vmatmul.bf16.gmra.mxu0 %v872
    %v1020 = vpop.f32.mrf.mxu0
    %v1021 = vadd.f32 %v766, %v1020
    %v1022 = vpop.f32.mrf.mxu0
    %v1023 = vadd.f32 %v766, %v1022
    %1024 = vmatmul.bf16.gmra.mxu0 %v875
    %v1025 = vpop.f32.mrf.mxu0
    %v1026 = vadd.f32 %v766, %v1025
    %v1027 = vpop.f32.mrf.mxu0
    %v1028 = vadd.f32 %v766, %v1027
    %1029 = vmatmul.bf16.gmra.mxu0 %v878
    %v1030 = vpop.f32.mrf.mxu0
    %v1031 = vadd.f32 %v766, %v1030
    %v1032 = vpop.f32.mrf.mxu0
    %v1033 = vadd.f32 %v766, %v1032
    %1034 = vmatmul.bf16.gmra.mxu0 %v881
    %v1035 = vpop.f32.mrf.mxu0
    %v1036 = vadd.f32 %v766, %v1035
    %v1037 = vpop.f32.mrf.mxu0
    %v1038 = vadd.f32 %v766, %v1037
    %1039 = vmatmul.bf16.gmra.mxu0 %v884
    %v1040 = vpop.f32.mrf.mxu0
    %v1041 = vadd.f32 %v766, %v1040
    %v1042 = vpop.f32.mrf.mxu0
    %v1043 = vadd.f32 %v766, %v1042
    %1044 = vmatmul.bf16.gmra.mxu0 %v887
    %v1045 = vpop.f32.mrf.mxu0
    %v1046 = vadd.f32 %v766, %v1045
    %v1047 = vpop.f32.mrf.mxu0
    %v1048 = vadd.f32 %v766, %v1047
    %1049 = vmatmul.bf16.gmra.mxu0 %v890
    %v1050 = vpop.f32.mrf.mxu0
    %v1051 = vadd.f32 %v766, %v1050
    %v1052 = vpop.f32.mrf.mxu0
    %v1053 = vadd.f32 %v766, %v1052
    %1054 = vmatmul.bf16.gmra.mxu0 %v893
    %v1055 = vpop.f32.mrf.mxu0
    %v1056 = vadd.f32 %v766, %v1055
    %v1057 = vpop.f32.mrf.mxu0
    %v1058 = vadd.f32 %v766, %v1057
    %1059 = vmatmul.bf16.gmra.mxu0 %v896
    %v1060 = vpop.f32.mrf.mxu0
    %v1061 = vadd.f32 %v766, %v1060
    %v1062 = vpop.f32.mrf.mxu0
    %v1063 = vadd.f32 %v766, %v1062
    %1064 = vmatmul.bf16.gmra.mxu0 %v899
    %v1065 = vpop.f32.mrf.mxu0
    %v1066 = vadd.f32 %v766, %v1065
    %v1067 = vpop.f32.mrf.mxu0
    %v1068 = vadd.f32 %v766, %v1067
    %1069 = vdwg.mxu0
    %vm1070 = vcmask 392192
    %1071 = vst.msk [vmem:[#allocation2] sm:$0xff] %vm1070, %v911
    %1072 = vst.msk [vmem:[#allocation2 + $0x8] sm:$0xff] %vm1070, %v913
    %1073 = vst.msk [vmem:[#allocation2 + $0x10] sm:$0xff] %vm1070, %v916
    %1074 = vst.msk [vmem:[#allocation2 + $0x18] sm:$0xff] %vm1070, %v918
    %1075 = vst.msk [vmem:[#allocation2 + $0x20] sm:$0xff] %vm1070, %v921
    %1076 = vst.msk [vmem:[#allocation2 + $0x28] sm:$0xff] %vm1070, %v923
    %1077 = vst.msk [vmem:[#allocation2 + $0x30] sm:$0xff] %vm1070, %v926
    %1078 = vst.msk [vmem:[#allocation2 + $0x38] sm:$0xff] %vm1070, %v928
    %1079 = vst.msk [vmem:[#allocation2 + $0x40] sm:$0xff] %vm1070, %v931
    %1080 = vst.msk [vmem:[#allocation2 + $0x48] sm:$0xff] %vm1070, %v933
    %1081 = vst.msk [vmem:[#allocation2 + $0x50] sm:$0xff] %vm1070, %v936
    %1082 = vst.msk [vmem:[#allocation2 + $0x58] sm:$0xff] %vm1070, %v938
    %1083 = vst.msk [vmem:[#allocation2 + $0x60] sm:$0xff] %vm1070, %v941
    %1084 = vst.msk [vmem:[#allocation2 + $0x68] sm:$0xff] %vm1070, %v943
    %1085 = vst.msk [vmem:[#allocation2 + $0x70] sm:$0xff] %vm1070, %v946
    %1086 = vst.msk [vmem:[#allocation2 + $0x78] sm:$0xff] %vm1070, %v948
    %1087 = vst.msk [vmem:[#allocation2 + $0x80] sm:$0xff] %vm1070, %v951
    %1088 = vst.msk [vmem:[#allocation2 + $0x88] sm:$0xff] %vm1070, %v953
    %1089 = vst.msk [vmem:[#allocation2 + $0x90] sm:$0xff] %vm1070, %v956
    %1090 = vst.msk [vmem:[#allocation2 + $0x98] sm:$0xff] %vm1070, %v958
    %1091 = vst.msk [vmem:[#allocation2 + $0xa0] sm:$0xff] %vm1070, %v961
    %1092 = vst.msk [vmem:[#allocation2 + $0xa8] sm:$0xff] %vm1070, %v963
    %1093 = vst.msk [vmem:[#allocation2 + $0xb0] sm:$0xff] %vm1070, %v966
    %1094 = vst.msk [vmem:[#allocation2 + $0xb8] sm:$0xff] %vm1070, %v968
    %1095 = vst.msk [vmem:[#allocation2 + $0xc0] sm:$0xff] %vm1070, %v971
    %1096 = vst.msk [vmem:[#allocation2 + $0xc8] sm:$0xff] %vm1070, %v973
    %1097 = vst.msk [vmem:[#allocation2 + $0xd0] sm:$0xff] %vm1070, %v976
    %1098 = vst.msk [vmem:[#allocation2 + $0xd8] sm:$0xff] %vm1070, %v978
    %1099 = vst.msk [vmem:[#allocation2 + $0xe0] sm:$0xff] %vm1070, %v981
    %1100 = vst.msk [vmem:[#allocation2 + $0xe8] sm:$0xff] %vm1070, %v983
    %1101 = vst.msk [vmem:[#allocation2 + $0xf0] sm:$0xff] %vm1070, %v986
    %1102 = vst.msk [vmem:[#allocation2 + $0xf8] sm:$0xff] %vm1070, %v988
    %1103 = vst.msk [vmem:[#allocation2 + $0x100] sm:$0xff] %vm1070, %v991
    %1104 = vst.msk [vmem:[#allocation2 + $0x108] sm:$0xff] %vm1070, %v993
    %1105 = vst.msk [vmem:[#allocation2 + $0x110] sm:$0xff] %vm1070, %v996
    %1106 = vst.msk [vmem:[#allocation2 + $0x118] sm:$0xff] %vm1070, %v998
    %1107 = vst.msk [vmem:[#allocation2 + $0x120] sm:$0xff] %vm1070, %v1001
    %1108 = vst.msk [vmem:[#allocation2 + $0x128] sm:$0xff] %vm1070, %v1003
    %1109 = vst.msk [vmem:[#allocation2 + $0x130] sm:$0xff] %vm1070, %v1006
    %1110 = vst.msk [vmem:[#allocation2 + $0x138] sm:$0xff] %vm1070, %v1008
    %1111 = vst.msk [vmem:[#allocation2 + $0x140] sm:$0xff] %vm1070, %v1011
    %1112 = vst.msk [vmem:[#allocation2 + $0x148] sm:$0xff] %vm1070, %v1013
    %1113 = vst.msk [vmem:[#allocation2 + $0x150] sm:$0xff] %vm1070, %v1016
    %1114 = vst.msk [vmem:[#allocation2 + $0x158] sm:$0xff] %vm1070, %v1018
    %1115 = vst.msk [vmem:[#allocation2 + $0x160] sm:$0xff] %vm1070, %v1021
    %1116 = vst.msk [vmem:[#allocation2 + $0x168] sm:$0xff] %vm1070, %v1023
    %1117 = vst.msk [vmem:[#allocation2 + $0x170] sm:$0xff] %vm1070, %v1026
    %1118 = vst.msk [vmem:[#allocation2 + $0x178] sm:$0xff] %vm1070, %v1028
    %1119 = vst.msk [vmem:[#allocation2 + $0x180] sm:$0xff] %vm1070, %v1031
    %1120 = vst.msk [vmem:[#allocation2 + $0x188] sm:$0xff] %vm1070, %v1033
    %1121 = vst.msk [vmem:[#allocation2 + $0x190] sm:$0xff] %vm1070, %v1036
    %1122 = vst.msk [vmem:[#allocation2 + $0x198] sm:$0xff] %vm1070, %v1038
    %1123 = vst.msk [vmem:[#allocation2 + $0x1a0] sm:$0xff] %vm1070, %v1041
    %1124 = vst.msk [vmem:[#allocation2 + $0x1a8] sm:$0xff] %vm1070, %v1043
    %1125 = vst.msk [vmem:[#allocation2 + $0x1b0] sm:$0xff] %vm1070, %v1046
    %1126 = vst.msk [vmem:[#allocation2 + $0x1b8] sm:$0xff] %vm1070, %v1048
    %1127 = vst.msk [vmem:[#allocation2 + $0x1c0] sm:$0xff] %vm1070, %v1051
    %1128 = vst.msk [vmem:[#allocation2 + $0x1c8] sm:$0xff] %vm1070, %v1053
    %1129 = vst.msk [vmem:[#allocation2 + $0x1d0] sm:$0xff] %vm1070, %v1056
    %1130 = vst.msk [vmem:[#allocation2 + $0x1d8] sm:$0xff] %vm1070, %v1058
    %1131 = vst.msk [vmem:[#allocation2 + $0x1e0] sm:$0xff] %vm1070, %v1061
    %1132 = vst.msk [vmem:[#allocation2 + $0x1e8] sm:$0xff] %vm1070, %v1063
    %1133 = vst.msk [vmem:[#allocation2 + $0x1f0] sm:$0xff] %vm1070, %v1066
    %1134 = vst.msk [vmem:[#allocation2 + $0x1f8] sm:$0xff] %vm1070, %v1068
    // Predicated region
    $region22: #{offset_diversity_forward.3} parent=1 // pred_check
      _
    $region23: #{offset_diversity_forward.3} parent=1 // pred_check_branch
      %1136 = sbr.rel (0) target = $region25
    $region24: #{offset_diversity_forward.3} parent=1 // pred_region
      %1138 = vsyncadd [#allocation3], 0
      %s1139 = sshll.u32 [#allocation2], 4
      %s1140 = int_to_ptr.vmem [resolvable:$true] %s1139
      %s1141 = sshll.u32 %s5, 4
      %s1142 = int_to_ptr.hbm [resolvable:$true] %s1141
      %1147 = dma.vmem_to_hbm [thread:$0]  %s1140, 8192, %s1142, [#allocation3], 128, 128, 8
    $region25: #{offset_diversity_forward.3} parent=1 // pred_fallthru
      _
    // Predicated region
    $region26: #{offset_diversity_forward.3} parent=1 // pred_check
      _
    $region27: #{offset_diversity_forward.3} parent=1 // pred_check_branch
      %1149 = sbr.rel (0) target = $region29
    $region28: #{offset_diversity_forward.3} parent=1 // pred_region
      %1151 = dma.done [#allocation3], 8192
    $region29: #{offset_diversity_forward.3} parent=1 // pred_fallthru
      _
    %1152 = vsyncpa [#allocation3], 1

</llo_original>
